<compile_context>
chip_gen: v6e
topology: v6e:2x2x1
jax: 0.10.0
libtpu: 0.0.40
codegen_flags: <defaults>
</compile_context>

<pallas_src>
import functools

import jax
import jax.numpy as jnp
from jax import lax
from jax.experimental import pallas as pl
from jax.experimental.pallas import tpu as pltpu


def _bottleneck_kernel(
    x_ref,      # (1, H, W, Cin)   full image for this batch element
    w1_ref,     # (Cin, P)         conv1 1x1, BN1 scale folded in
    w2_ref,     # (9, P, P)        conv2 3x3 per-tap weights, BN2 folded in
    w3_ref,     # (P, 4P)          conv3 1x1, BN3 scale folded in
    b1_ref,     # (1, P)   f32     BN1 shift
    b2_ref,     # (1, P)   f32     BN2 shift
    b3_ref,     # (1, 4P)  f32     BN3 shift
    o_ref,      # (1, TH, W, 4P)   output row tile
    hp_ref,     # scratch: (TH+2, W+2, P) column-padded conv1 activations
    *, TH, W,
):
    r = pl.program_id(1)
    num_r = pl.num_programs(1)
    row0 = pl.multiple_of(r * TH, TH)

    cin = x_ref.shape[-1]
    p = w1_ref.shape[-1]
    cdt = x_ref.dtype  # matmul operand dtype (no forced f32 upcast)

    # ---- conv1 (1x1) + bias + relu on a row window -------------------------
    def conv1_rows(start, nrows):
        xr = x_ref[0, pl.ds(start, nrows), :, :].reshape(nrows * W, cin)
        h = jnp.dot(xr, w1_ref[...], preferred_element_type=jnp.float32)
        h = jnp.maximum(h + b1_ref[...], 0.0)
        return h.astype(cdt)

    # Zero only the two padding columns (never written by the conv1 stores).
    # The scratch persists across grid steps, so this must happen every step.
    zero_col = jnp.zeros((TH + 2, 1, p), cdt)
    hp_ref[pl.ds(0, TH + 2), pl.ds(0, 1), :] = zero_col
    hp_ref[pl.ds(0, TH + 2), pl.ds(W + 1, 1), :] = zero_col

    # Interior TH rows of this tile -> hp[1:TH+1, 1:W+1, :]
    hp_ref[pl.ds(1, TH), pl.ds(1, W), :] = (
        conv1_rows(row0, TH).reshape(TH, W, p)
    )

    zero_row = jnp.zeros((1, W, p), cdt)

    # Top halo row (row0 - 1): recompute conv1 if it exists, else zero padding.
    # (With the default large TH there is often only one row tile, so these
    #  small halo matmuls rarely execute at runtime.)
    @pl.when(r > 0)
    def _():
        hp_ref[pl.ds(0, 1), pl.ds(1, W), :] = (
            conv1_rows(row0 - 1, 1).reshape(1, W, p)
        )

    @pl.when(r == 0)
    def _():
        hp_ref[pl.ds(0, 1), pl.ds(1, W), :] = zero_row

    # Bottom halo row (row0 + TH).
    @pl.when(r < num_r - 1)
    def _():
        hp_ref[pl.ds(TH + 1, 1), pl.ds(1, W), :] = (
            conv1_rows(row0 + TH, 1).reshape(1, W, p)
        )

    @pl.when(r == num_r - 1)
    def _():
        hp_ref[pl.ds(TH + 1, 1), pl.ds(1, W), :] = zero_row

    # ---- conv2 (3x3, pad=1, stride=1): 9 accumulating per-tap matmuls -------
    acc = jnp.zeros((TH * W, p), jnp.float32)
    tap_idx = 0
    for dy in range(3):
        for dx in range(3):
            tap = hp_ref[pl.ds(dy, TH), pl.ds(dx, W), :].reshape(TH * W, p)
            acc = acc + jnp.dot(tap, w2_ref[tap_idx],
                                preferred_element_type=jnp.float32)
            tap_idx += 1
    h2 = jnp.maximum(acc + b2_ref[...], 0.0).astype(cdt)      # (TH*W, P)

    # ---- conv3 (1x1) + bias + residual add + relu ---------------------------
    h3 = jnp.dot(h2, w3_ref[...], preferred_element_type=jnp.float32)
    h3 = h3 + b3_ref[...]                                     # (TH*W, 4P)
    ident = x_ref[0, pl.ds(row0, TH), :, :].reshape(TH * W, cin)
    out = jnp.maximum(h3 + ident.astype(jnp.float32), 0.0)

    o_ref[0] = out.reshape(TH, W, -1).astype(o_ref.dtype)


def _vmem_bytes_per_step(H, W, Cin, P, Cout, TH, itemsize):
    """Rough per-grid-step VMEM estimate (double-buffered blocks + scratch)."""
    x_blk = H * W * Cin * itemsize                 # full image (not r-tiled)
    out_blk = TH * W * Cout * itemsize
    scratch = (TH + 2) * (W + 2) * P * itemsize
    weights = (Cin * P + 9 * P * P + P * Cout) * itemsize + (2 * P + Cout) * 4
    interm = TH * W * (2 * P + 2 * Cout) * 4       # f32 acc / epilogue values
    return 2 * x_blk + 2 * out_blk + scratch + 2 * weights + interm


def _pick_tile_h(H, W, Cin, P, Cout, itemsize,
                 target_m=1024, vmem_budget=40 << 20):
    """Row-tile height: smallest divisor of H with TH*W >= target_m that fits
    the VMEM budget; if none reaches target_m, the largest fitting divisor."""
    divisors = [d for d in range(1, H + 1) if H % d == 0]
    fitting = [d for d in divisors
               if _vmem_bytes_per_step(H, W, Cin, P, Cout, d, itemsize)
               <= vmem_budget]
    if not fitting:
        return 1
    big_enough = [d for d in fitting if d * W >= target_m]
    if big_enough:
        return min(big_enough)   # reach MXU-filling M but keep grid depth
    return max(fitting)


def fold_bottleneck_params(w1_oihw, w2_oihw, w3_oihw, bn1, bn2, bn3,
                           dtype, eps=1e-5):
    """Fold eval-mode BN into conv weights; return kernel-ready params.

    bn* = (gamma, beta, running_mean, running_var)
    Returns (w1 (Cin,P), w2 (9,P,P), w3 (P,4P), b1 (1,P), b2 (1,P), b3 (1,4P)).
    """
    def fold(g, b, m, v):
        s = g / jnp.sqrt(v + eps)
        return s, b - m * s

    s1, sh1 = fold(*bn1)
    s2, sh2 = fold(*bn2)
    s3, sh3 = fold(*bn3)

    w1 = (w1_oihw[:, :, 0, 0].T * s1[None, :]).astype(dtype)          # (Cin, P)
    w2_hwio = jnp.transpose(w2_oihw, (2, 3, 1, 0)) * s2[None, None, None, :]
    p_in, p_out = w2_hwio.shape[2], w2_hwio.shape[3]
    w2 = w2_hwio.reshape(9, p_in, p_out).astype(dtype)                # (9, P, P)
    w3 = (w3_oihw[:, :, 0, 0].T * s3[None, :]).astype(dtype)          # (P, 4P)

    b1 = sh1[None, :].astype(jnp.float32)
    b2 = sh2[None, :].astype(jnp.float32)
    b3 = sh3[None, :].astype(jnp.float32)
    return w1, w2, w3, b1, b2, b3


def bottleneck_pallas(x_nhwc, folded_params, *, tile_h=None):
    """x_nhwc: (B, H, W, Cin) with Cin == 4 * planes (stride=1, no downsample)."""
    B, H, W, Cin = x_nhwc.shape
    w1, w2, w3, b1, b2, b3 = folded_params
    P = w1.shape[-1]
    Cout = w3.shape[-1]
    assert Cout == Cin, "identity add requires inplanes == planes * expansion"

    itemsize = jnp.dtype(x_nhwc.dtype).itemsize
    TH = tile_h if tile_h is not None else _pick_tile_h(
        H, W, Cin, P, Cout, itemsize)
    assert H % TH == 0, "tile_h must divide H"
    R = H // TH

    est = _vmem_bytes_per_step(H, W, Cin, P, Cout, TH, itemsize)
    vmem_limit = int(max(32 * 1024 * 1024, min(64 * 1024 * 1024, 2 * est)))

    flops = 2 * B * H * W * (Cin * P + 9 * P * P + P * Cout)
    bytes_accessed = int(
        2 * x_nhwc.size * itemsize
        + w1.size * jnp.dtype(w1.dtype).itemsize
        + w2.size * jnp.dtype(w2.dtype).itemsize
        + w3.size * jnp.dtype(w3.dtype).itemsize
        + (b1.size + b2.size + b3.size) * 4)

    kernel = functools.partial(_bottleneck_kernel, TH=TH, W=W)
    const = lambda shape: pl.BlockSpec(shape, lambda b, r: (0,) * len(shape))

    return pl.pallas_call(
        kernel,
        out_shape=jax.ShapeDtypeStruct((B, H, W, Cout), x_nhwc.dtype),
        grid_spec=pltpu.PrefetchScalarGridSpec(
            num_scalar_prefetch=0,
            grid=(B, R),
            in_specs=[
                # Full image per batch element; block index ignores r, so the
                # block is re-used across the row tiles of one image.
                pl.BlockSpec((1, H, W, Cin), lambda b, r: (b, 0, 0, 0)),
                const(w1.shape), const(w2.shape), const(w3.shape),
                const(b1.shape), const(b2.shape), const(b3.shape),
            ],
            out_specs=pl.BlockSpec((1, TH, W, Cout), lambda b, r: (b, r, 0, 0)),
            scratch_shapes=[
                pltpu.VMEM((TH + 2, W + 2, P), x_nhwc.dtype),  # padded conv1 act
            ],
        ),
        compiler_params=pltpu.CompilerParams(
            # (B, H/TH) are independent -> both megacore-shardable.
            dimension_semantics=("parallel", "parallel"),
            vmem_limit_bytes=vmem_limit,
        ),
        cost_estimate=pl.CostEstimate(
            flops=flops, transcendentals=0, bytes_accessed=bytes_accessed),
    )(x_nhwc, w1, w2, w3, b1, b2, b3)


def _reference(x_nhwc, w1_hwio, w2_hwio, w3_hwio, bns, eps=1e-5):
    """Pure-JAX reference with *unfolded* BN (validates the weight folding)."""
    dn = ("NHWC", "HWIO", "NHWC")

    def bn(h, g, b, m, v):
        return (h - m) / jnp.sqrt(v + eps) * g + b

    h = lax.conv_general_dilated(x_nhwc, w1_hwio, (1, 1), "VALID",
                                 dimension_numbers=dn)
    h = jnp.maximum(bn(h, *bns[0]), 0.0)
    h = lax.conv_general_dilated(h, w2_hwio, (1, 1), ((1, 1), (1, 1)),
                                 dimension_numbers=dn)
    h = jnp.maximum(bn(h, *bns[1]), 0.0)
    h = lax.conv_general_dilated(h, w3_hwio, (1, 1), "VALID",
                                 dimension_numbers=dn)
    h = bn(h, *bns[2])
    return jnp.maximum(h + x_nhwc, 0.0)


if __name__ == "__main__":
    # Shapes consistent with Bottleneck(inplanes=16, planes=4), stride=1,
    # downsample=None  ->  PyTorch input x: (B=2, C=16, H=16, W=16) NCHW.
    # NOTE: tiny channel counts (P=4 -> 4/128 lanes) measure overhead, not MXU
    # throughput; production shapes should have C >= 128 and bf16 operands.
    B, H, W = 2, 16, 16
    planes = 4
    inplanes = planes * 4  # expansion = 4; identity add must match

    key = jax.random.PRNGKey(0)
    ks = jax.random.split(key, 16)

    x_nchw = jax.random.normal(ks[0], (B, inplanes, H, W), jnp.float32)
    x_nhwc = jnp.transpose(x_nchw, (0, 2, 3, 1))

    # Conv weights in PyTorch OIHW layout (bias=False, as in the module).
    w1_oihw = jax.random.normal(ks[1], (planes, inplanes, 1, 1), jnp.float32) * 0.1
    w2_oihw = jax.random.normal(ks[2], (planes, planes, 3, 3), jnp.float32) * 0.1
    w3_oihw = jax.random.normal(ks[3], (planes * 4, planes, 1, 1), jnp.float32) * 0.1

    def bn_params(kg, kb, km, kv, c):
        gamma = 1.0 + 0.1 * jax.random.normal(kg, (c,), jnp.float32)
        beta = 0.1 * jax.random.normal(kb, (c,), jnp.float32)
        mean = 0.1 * jax.random.normal(km, (c,), jnp.float32)
        var = jax.random.uniform(kv, (c,), jnp.float32, 0.5, 1.5)
        return gamma, beta, mean, var

    bn1 = bn_params(ks[4], ks[5], ks[6], ks[7], planes)
    bn2 = bn_params(ks[8], ks[9], ks[10], ks[11], planes)
    bn3 = bn_params(ks[12], ks[13], ks[14], ks[15], planes * 4)

    folded = fold_bottleneck_params(
        w1_oihw, w2_oihw, w3_oihw, bn1, bn2, bn3, dtype=x_nhwc.dtype)

    # Reference with raw HWIO weights + explicit BN.
    to_hwio = lambda w: jnp.transpose(w, (2, 3, 1, 0))
    ref = _reference(x_nhwc, to_hwio(w1_oihw), to_hwio(w2_oihw),
                     to_hwio(w3_oihw), (bn1, bn2, bn3))

    # 1) Default tiling (whole-image row tile here -> no halo recompute).
    out = bottleneck_pallas(x_nhwc, folded)
    out = jax.block_until_ready(out)
    assert out.shape == (B, H, W, inplanes)
    assert jnp.allclose(out, ref, atol=2e-4, rtol=2e-4), "mismatch (default TH)"

    # 2) Forced tile_h=8 -> 2 row tiles per image: exercises both halo branches
    #    and the conditional halo-row zeroing.
    out2 = bottleneck_pallas(x_nhwc, folded, tile_h=8)
    out2 = jax.block_until_ready(out2)
    assert jnp.allclose(out2, ref, atol=2e-4, rtol=2e-4), "mismatch (TH=8)"

    # Back to NCHW to mirror the PyTorch output convention (glue only).
    _ = jnp.transpose(out, (0, 3, 1, 2))

    print("KERNEL_OK")
</pallas_src>

<mosaic_0001>
module attributes {stable_mosaic.version = 11 : i64} {
  func.func @_bottleneck_kernel(%arg0: i32, %arg1: i32, %arg2: memref<1x16x16x16xf32, #tpu.memory_space<vmem>>, %arg3: memref<16x4xf32, #tpu.memory_space<vmem>>, %arg4: memref<9x4x4xf32, #tpu.memory_space<vmem>>, %arg5: memref<4x16xf32, #tpu.memory_space<vmem>>, %arg6: memref<1x4xf32, #tpu.memory_space<vmem>>, %arg7: memref<1x4xf32, #tpu.memory_space<vmem>>, %arg8: memref<1x16xf32, #tpu.memory_space<vmem>>, %arg9: memref<1x16x16x16xf32, #tpu.memory_space<vmem>>, %arg10: memref<18x18x4xf32, #tpu.memory_space<vmem>>) attributes {dimension_semantics = [#tpu.dimension_semantics<parallel>, #tpu.dimension_semantics<parallel>], iteration_bounds = array<i64: 2, 1>, scalar_prefetch = 0 : i64, scratch_operands = 1 : i64, tpu.core_type = #tpu.core_type<tc>, window_params = [{transform_indices = @transform_0, window_bounds = array<i64: 1, 16, 16, 16>}, {pipeline_mode = #tpu.pipeline_mode<synchronous>, transform_indices = @transform_1, window_bounds = array<i64: 16, 4>}, {pipeline_mode = #tpu.pipeline_mode<synchronous>, transform_indices = @transform_2, window_bounds = array<i64: 9, 4, 4>}, {pipeline_mode = #tpu.pipeline_mode<synchronous>, transform_indices = @transform_3, window_bounds = array<i64: 4, 16>}, {pipeline_mode = #tpu.pipeline_mode<synchronous>, transform_indices = @transform_4, window_bounds = array<i64: 1, 4>}, {pipeline_mode = #tpu.pipeline_mode<synchronous>, transform_indices = @transform_5, window_bounds = array<i64: 1, 4>}, {pipeline_mode = #tpu.pipeline_mode<synchronous>, transform_indices = @transform_6, window_bounds = array<i64: 1, 16>}, {transform_indices = @transform_7, window_bounds = array<i64: 1, 16, 16, 16>}]} {
    %c16_i32 = arith.constant 16 : i32
    %0 = arith.muli %arg1, %c16_i32 : i32
    %1 = tpu.assume_multiple %0, 16 : i32
    %cst = arith.constant 0.000000e+00 : f32
    %2 = vector.broadcast %cst : f32 to vector<18x1x4xf32>
    %c0 = arith.constant 0 : index
    %c0_0 = arith.constant 0 : index
    %c0_1 = arith.constant 0 : index
    %3 = vector.load %arg10[%c0, %c0_0, %c0_1] : memref<18x18x4xf32, #tpu.memory_space<vmem>>, vector<18x1x4xf32>
    tpu.vector_store %arg10[%c0, %c0_0, %c0_1], %2 {strides = array<i32>} : memref<18x18x4xf32, #tpu.memory_space<vmem>>, vector<18x1x4xf32>,
    %c0_2 = arith.constant 0 : index
    %c17 = arith.constant 17 : index
    %c0_3 = arith.constant 0 : index
    %4 = vector.load %arg10[%c0_2, %c17, %c0_3] : memref<18x18x4xf32, #tpu.memory_space<vmem>>, vector<18x1x4xf32>
    tpu.vector_store %arg10[%c0_2, %c17, %c0_3], %2 {strides = array<i32>} : memref<18x18x4xf32, #tpu.memory_space<vmem>>, vector<18x1x4xf32>,
    %c0_4 = arith.constant 0 : index
    %5 = arith.index_cast %1 : i32 to index
    %c0_5 = arith.constant 0 : index
    %c0_6 = arith.constant 0 : index
    %6 = vector.load %arg2[%c0_4, %5, %c0_5, %c0_6] : memref<1x16x16x16xf32, #tpu.memory_space<vmem>>, vector<1x16x16x16xf32>
    %7 = vector.shape_cast %6 : vector<1x16x16x16xf32> to vector<16x16x16xf32>
    %8 = vector.shape_cast %7 : vector<16x16x16xf32> to vector<256x16xf32>
    %c0_7 = arith.constant 0 : index
    %c0_8 = arith.constant 0 : index
    %9 = vector.load %arg3[%c0_7, %c0_8] : memref<16x4xf32, #tpu.memory_space<vmem>>, vector<16x4xf32>
    %cst_9 = arith.constant dense<0.000000e+00> : vector<256x4xf32>
    %10 = tpu.matmul %8, %9, %cst_9 {dimension_numbers = #tpu.dot_dimension_numbers<[1], [0], [0], [1], [0, 0, 1, 1], [], []>} : vector<256x16xf32>, vector<16x4xf32>, vector<256x4xf32> -> vector<256x4xf32>
    %c0_10 = arith.constant 0 : index
    %c0_11 = arith.constant 0 : index
    %11 = vector.load %arg6[%c0_10, %c0_11] : memref<1x4xf32, #tpu.memory_space<vmem>>, vector<1x4xf32>
    %12 = vector.broadcast %11 : vector<1x4xf32> to vector<256x4xf32>
    %13 = arith.addf %10, %12 : vector<256x4xf32>
    %cst_12 = arith.constant 0.000000e+00 : f32
    %14 = vector.broadcast %cst_12 : f32 to vector<256x4xf32>
    %15 = arith.maximumf %13, %14 : vector<256x4xf32>
    %16 = vector.shape_cast %15 : vector<256x4xf32> to vector<16x16x4xf32>
    %c1 = arith.constant 1 : index
    %c1_13 = arith.constant 1 : index
    %c0_14 = arith.constant 0 : index
    %17 = vector.load %arg10[%c1, %c1_13, %c0_14] : memref<18x18x4xf32, #tpu.memory_space<vmem>>, vector<16x16x4xf32>
    tpu.vector_store %arg10[%c1, %c1_13, %c0_14], %16 {strides = array<i32>} : memref<18x18x4xf32, #tpu.memory_space<vmem>>, vector<16x16x4xf32>,
    %cst_15 = arith.constant 0.000000e+00 : f32
    %18 = vector.broadcast %cst_15 : f32 to vector<1x16x4xf32>
    %c0_i32 = arith.constant 0 : i32
    %19 = arith.cmpi sgt, %arg1, %c0_i32 : i32
    %20 = arith.extui %19 : i1 to i32
    %c0_i32_16 = arith.constant 0 : i32
    %21 = arith.cmpi ne, %20, %c0_i32_16 : i32
    scf.if %21 {
      %c1_i32 = arith.constant 1 : i32
      %107 = arith.subi %1, %c1_i32 : i32
      %c0_96 = arith.constant 0 : index
      %108 = arith.index_cast %107 : i32 to index
      %c0_97 = arith.constant 0 : index
      %c0_98 = arith.constant 0 : index
      %109 = vector.load %arg2[%c0_96, %108, %c0_97, %c0_98] : memref<1x16x16x16xf32, #tpu.memory_space<vmem>>, vector<1x1x16x16xf32>
      %110 = vector.shape_cast %109 : vector<1x1x16x16xf32> to vector<1x16x16xf32>
      %111 = vector.shape_cast %110 : vector<1x16x16xf32> to vector<16x16xf32>
      %c0_99 = arith.constant 0 : index
      %c0_100 = arith.constant 0 : index
      %112 = vector.load %arg3[%c0_99, %c0_100] : memref<16x4xf32, #tpu.memory_space<vmem>>, vector<16x4xf32>
      %cst_101 = arith.constant dense<0.000000e+00> : vector<16x4xf32>
      %113 = tpu.matmul %111, %112, %cst_101 {dimension_numbers = #tpu.dot_dimension_numbers<[1], [0], [0], [1], [0, 0, 1, 1], [], []>} : vector<16x16xf32>, vector<16x4xf32>, vector<16x4xf32> -> vector<16x4xf32>
      %c0_102 = arith.constant 0 : index
      %c0_103 = arith.constant 0 : index
      %114 = vector.load %arg6[%c0_102, %c0_103] : memref<1x4xf32, #tpu.memory_space<vmem>>, vector<1x4xf32>
      %115 = vector.broadcast %114 : vector<1x4xf32> to vector<16x4xf32>
      %116 = arith.addf %113, %115 : vector<16x4xf32>
      %cst_104 = arith.constant 0.000000e+00 : f32
      %117 = vector.broadcast %cst_104 : f32 to vector<16x4xf32>
      %118 = arith.maximumf %116, %117 : vector<16x4xf32>
      %119 = vector.shape_cast %118 : vector<16x4xf32> to vector<1x16x4xf32>
      %c0_105 = arith.constant 0 : index
      %c1_106 = arith.constant 1 : index
      %c0_107 = arith.constant 0 : index
      %120 = vector.load %arg10[%c0_105, %c1_106, %c0_107] : memref<18x18x4xf32, #tpu.memory_space<vmem>>, vector<1x16x4xf32>
      tpu.vector_store %arg10[%c0_105, %c1_106, %c0_107], %119 {strides = array<i32>} : memref<18x18x4xf32, #tpu.memory_space<vmem>>, vector<1x16x4xf32>,
    } else {
    }
    %c0_i32_17 = arith.constant 0 : i32
    %22 = arith.cmpi eq, %arg1, %c0_i32_17 : i32
    %23 = arith.extui %22 : i1 to i32
    %c0_i32_18 = arith.constant 0 : i32
    %24 = arith.cmpi ne, %23, %c0_i32_18 : i32
    scf.if %24 {
      %c0_96 = arith.constant 0 : index
      %c1_97 = arith.constant 1 : index
      %c0_98 = arith.constant 0 : index
      %107 = vector.load %arg10[%c0_96, %c1_97, %c0_98] : memref<18x18x4xf32, #tpu.memory_space<vmem>>, vector<1x16x4xf32>
      tpu.vector_store %arg10[%c0_96, %c1_97, %c0_98], %18 {strides = array<i32>} : memref<18x18x4xf32, #tpu.memory_space<vmem>>, vector<1x16x4xf32>,
    } else {
    }
    %c0_i32_19 = arith.constant 0 : i32
    %25 = arith.cmpi slt, %arg1, %c0_i32_19 : i32
    %26 = arith.extui %25 : i1 to i32
    %c0_i32_20 = arith.constant 0 : i32
    %27 = arith.cmpi ne, %26, %c0_i32_20 : i32
    scf.if %27 {
      %c16_i32_96 = arith.constant 16 : i32
      %107 = arith.addi %1, %c16_i32_96 : i32
      %c0_97 = arith.constant 0 : index
      %108 = arith.index_cast %107 : i32 to index
      %c0_98 = arith.constant 0 : index
      %c0_99 = arith.constant 0 : index
      %109 = vector.load %arg2[%c0_97, %108, %c0_98, %c0_99] : memref<1x16x16x16xf32, #tpu.memory_space<vmem>>, vector<1x1x16x16xf32>
      %110 = vector.shape_cast %109 : vector<1x1x16x16xf32> to vector<1x16x16xf32>
      %111 = vector.shape_cast %110 : vector<1x16x16xf32> to vector<16x16xf32>
      %c0_100 = arith.constant 0 : index
      %c0_101 = arith.constant 0 : index
      %112 = vector.load %arg3[%c0_100, %c0_101] : memref<16x4xf32, #tpu.memory_space<vmem>>, vector<16x4xf32>
      %cst_102 = arith.constant dense<0.000000e+00> : vector<16x4xf32>
      %113 = tpu.matmul %111, %112, %cst_102 {dimension_numbers = #tpu.dot_dimension_numbers<[1], [0], [0], [1], [0, 0, 1, 1], [], []>} : vector<16x16xf32>, vector<16x4xf32>, vector<16x4xf32> -> vector<16x4xf32>
      %c0_103 = arith.constant 0 : index
      %c0_104 = arith.constant 0 : index
      %114 = vector.load %arg6[%c0_103, %c0_104] : memref<1x4xf32, #tpu.memory_space<vmem>>, vector<1x4xf32>
      %115 = vector.broadcast %114 : vector<1x4xf32> to vector<16x4xf32>
      %116 = arith.addf %113, %115 : vector<16x4xf32>
      %cst_105 = arith.constant 0.000000e+00 : f32
      %117 = vector.broadcast %cst_105 : f32 to vector<16x4xf32>
      %118 = arith.maximumf %116, %117 : vector<16x4xf32>
      %119 = vector.shape_cast %118 : vector<16x4xf32> to vector<1x16x4xf32>
      %c17_106 = arith.constant 17 : index
      %c1_107 = arith.constant 1 : index
      %c0_108 = arith.constant 0 : index
      %120 = vector.load %arg10[%c17_106, %c1_107, %c0_108] : memref<18x18x4xf32, #tpu.memory_space<vmem>>, vector<1x16x4xf32>
      tpu.vector_store %arg10[%c17_106, %c1_107, %c0_108], %119 {strides = array<i32>} : memref<18x18x4xf32, #tpu.memory_space<vmem>>, vector<1x16x4xf32>,
    } else {
    }
    %c0_i32_21 = arith.constant 0 : i32
    %28 = arith.cmpi eq, %arg1, %c0_i32_21 : i32
    %29 = arith.extui %28 : i1 to i32
    %c0_i32_22 = arith.constant 0 : i32
    %30 = arith.cmpi ne, %29, %c0_i32_22 : i32
    scf.if %30 {
      %c17_96 = arith.constant 17 : index
      %c1_97 = arith.constant 1 : index
      %c0_98 = arith.constant 0 : index
      %107 = vector.load %arg10[%c17_96, %c1_97, %c0_98] : memref<18x18x4xf32, #tpu.memory_space<vmem>>, vector<1x16x4xf32>
      tpu.vector_store %arg10[%c17_96, %c1_97, %c0_98], %18 {strides = array<i32>} : memref<18x18x4xf32, #tpu.memory_space<vmem>>, vector<1x16x4xf32>,
    } else {
    }
    %cst_23 = arith.constant 0.000000e+00 : f32
    %31 = vector.broadcast %cst_23 : f32 to vector<256x4xf32>
    %c0_24 = arith.constant 0 : index
    %c0_25 = arith.constant 0 : index
    %c0_26 = arith.constant 0 : index
    %32 = vector.load %arg10[%c0_24, %c0_25, %c0_26] : memref<18x18x4xf32, #tpu.memory_space<vmem>>, vector<16x16x4xf32>
    %33 = vector.shape_cast %32 : vector<16x16x4xf32> to vector<256x4xf32>
    %c0_27 = arith.constant 0 : index
    %c0_28 = arith.constant 0 : index
    %c0_29 = arith.constant 0 : index
    %34 = vector.load %arg4[%c0_27, %c0_28, %c0_29] : memref<9x4x4xf32, #tpu.memory_space<vmem>>, vector<1x4x4xf32>
    %35 = vector.shape_cast %34 : vector<1x4x4xf32> to vector<4x4xf32>
    %cst_30 = arith.constant dense<0.000000e+00> : vector<256x4xf32>
    %36 = tpu.matmul %33, %35, %cst_30 {dimension_numbers = #tpu.dot_dimension_numbers<[1], [0], [0], [1], [0, 0, 1, 1], [], []>} : vector<256x4xf32>, vector<4x4xf32>, vector<256x4xf32> -> vector<256x4xf32>
    %37 = arith.addf %31, %36 : vector<256x4xf32>
    %c0_31 = arith.constant 0 : index
    %c1_32 = arith.constant 1 : index
    %c0_33 = arith.constant 0 : index
    %38 = vector.load %arg10[%c0_31, %c1_32, %c0_33] : memref<18x18x4xf32, #tpu.memory_space<vmem>>, vector<16x16x4xf32>
    %39 = vector.shape_cast %38 : vector<16x16x4xf32> to vector<256x4xf32>
    %c1_34 = arith.constant 1 : index
    %c0_35 = arith.constant 0 : index
    %c0_36 = arith.constant 0 : index
    %40 = vector.load %arg4[%c1_34, %c0_35, %c0_36] : memref<9x4x4xf32, #tpu.memory_space<vmem>>, vector<1x4x4xf32>
    %41 = vector.shape_cast %40 : vector<1x4x4xf32> to vector<4x4xf32>
    %cst_37 = arith.constant dense<0.000000e+00> : vector<256x4xf32>
    %42 = tpu.matmul %39, %41, %cst_37 {dimension_numbers = #tpu.dot_dimension_numbers<[1], [0], [0], [1], [0, 0, 1, 1], [], []>} : vector<256x4xf32>, vector<4x4xf32>, vector<256x4xf32> -> vector<256x4xf32>
    %43 = arith.addf %37, %42 : vector<256x4xf32>
    %c0_38 = arith.constant 0 : index
    %c2 = arith.constant 2 : index
    %c0_39 = arith.constant 0 : index
    %44 = vector.load %arg10[%c0_38, %c2, %c0_39] : memref<18x18x4xf32, #tpu.memory_space<vmem>>, vector<16x16x4xf32>
    %45 = vector.shape_cast %44 : vector<16x16x4xf32> to vector<256x4xf32>
    %c2_40 = arith.constant 2 : index
    %c0_41 = arith.constant 0 : index
    %c0_42 = arith.constant 0 : index
    %46 = vector.load %arg4[%c2_40, %c0_41, %c0_42] : memref<9x4x4xf32, #tpu.memory_space<vmem>>, vector<1x4x4xf32>
    %47 = vector.shape_cast %46 : vector<1x4x4xf32> to vector<4x4xf32>
    %cst_43 = arith.constant dense<0.000000e+00> : vector<256x4xf32>
    %48 = tpu.matmul %45, %47, %cst_43 {dimension_numbers = #tpu.dot_dimension_numbers<[1], [0], [0], [1], [0, 0, 1, 1], [], []>} : vector<256x4xf32>, vector<4x4xf32>, vector<256x4xf32> -> vector<256x4xf32>
    %49 = arith.addf %43, %48 : vector<256x4xf32>
    %c1_44 = arith.constant 1 : index
    %c0_45 = arith.constant 0 : index
    %c0_46 = arith.constant 0 : index
    %50 = vector.load %arg10[%c1_44, %c0_45, %c0_46] : memref<18x18x4xf32, #tpu.memory_space<vmem>>, vector<16x16x4xf32>
    %51 = vector.shape_cast %50 : vector<16x16x4xf32> to vector<256x4xf32>
    %c3 = arith.constant 3 : index
    %c0_47 = arith.constant 0 : index
    %c0_48 = arith.constant 0 : index
    %52 = vector.load %arg4[%c3, %c0_47, %c0_48] : memref<9x4x4xf32, #tpu.memory_space<vmem>>, vector<1x4x4xf32>
    %53 = vector.shape_cast %52 : vector<1x4x4xf32> to vector<4x4xf32>
    %cst_49 = arith.constant dense<0.000000e+00> : vector<256x4xf32>
    %54 = tpu.matmul %51, %53, %cst_49 {dimension_numbers = #tpu.dot_dimension_numbers<[1], [0], [0], [1], [0, 0, 1, 1], [], []>} : vector<256x4xf32>, vector<4x4xf32>, vector<256x4xf32> -> vector<256x4xf32>
    %55 = arith.addf %49, %54 : vector<256x4xf32>
    %c1_50 = arith.constant 1 : index
    %c1_51 = arith.constant 1 : index
    %c0_52 = arith.constant 0 : index
    %56 = vector.load %arg10[%c1_50, %c1_51, %c0_52] : memref<18x18x4xf32, #tpu.memory_space<vmem>>, vector<16x16x4xf32>
    %57 = vector.shape_cast %56 : vector<16x16x4xf32> to vector<256x4xf32>
    %c4 = arith.constant 4 : index
    %c0_53 = arith.constant 0 : index
    %c0_54 = arith.constant 0 : index
    %58 = vector.load %arg4[%c4, %c0_53, %c0_54] : memref<9x4x4xf32, #tpu.memory_space<vmem>>, vector<1x4x4xf32>
    %59 = vector.shape_cast %58 : vector<1x4x4xf32> to vector<4x4xf32>
    %cst_55 = arith.constant dense<0.000000e+00> : vector<256x4xf32>
    %60 = tpu.matmul %57, %59, %cst_55 {dimension_numbers = #tpu.dot_dimension_numbers<[1], [0], [0], [1], [0, 0, 1, 1], [], []>} : vector<256x4xf32>, vector<4x4xf32>, vector<256x4xf32> -> vector<256x4xf32>
    %61 = arith.addf %55, %60 : vector<256x4xf32>
    %c1_56 = arith.constant 1 : index
    %c2_57 = arith.constant 2 : index
    %c0_58 = arith.constant 0 : index
    %62 = vector.load %arg10[%c1_56, %c2_57, %c0_58] : memref<18x18x4xf32, #tpu.memory_space<vmem>>, vector<16x16x4xf32>
    %63 = vector.shape_cast %62 : vector<16x16x4xf32> to vector<256x4xf32>
    %c5 = arith.constant 5 : index
    %c0_59 = arith.constant 0 : index
    %c0_60 = arith.constant 0 : index
    %64 = vector.load %arg4[%c5, %c0_59, %c0_60] : memref<9x4x4xf32, #tpu.memory_space<vmem>>, vector<1x4x4xf32>
    %65 = vector.shape_cast %64 : vector<1x4x4xf32> to vector<4x4xf32>
    %cst_61 = arith.constant dense<0.000000e+00> : vector<256x4xf32>
    %66 = tpu.matmul %63, %65, %cst_61 {dimension_numbers = #tpu.dot_dimension_numbers<[1], [0], [0], [1], [0, 0, 1, 1], [], []>} : vector<256x4xf32>, vector<4x4xf32>, vector<256x4xf32> -> vector<256x4xf32>
    %67 = arith.addf %61, %66 : vector<256x4xf32>
    %c2_62 = arith.constant 2 : index
    %c0_63 = arith.constant 0 : index
    %c0_64 = arith.constant 0 : index
    %68 = vector.load %arg10[%c2_62, %c0_63, %c0_64] : memref<18x18x4xf32, #tpu.memory_space<vmem>>, vector<16x16x4xf32>
    %69 = vector.shape_cast %68 : vector<16x16x4xf32> to vector<256x4xf32>
    %c6 = arith.constant 6 : index
    %c0_65 = arith.constant 0 : index
    %c0_66 = arith.constant 0 : index
    %70 = vector.load %arg4[%c6, %c0_65, %c0_66] : memref<9x4x4xf32, #tpu.memory_space<vmem>>, vector<1x4x4xf32>
    %71 = vector.shape_cast %70 : vector<1x4x4xf32> to vector<4x4xf32>
    %cst_67 = arith.constant dense<0.000000e+00> : vector<256x4xf32>
    %72 = tpu.matmul %69, %71, %cst_67 {dimension_numbers = #tpu.dot_dimension_numbers<[1], [0], [0], [1], [0, 0, 1, 1], [], []>} : vector<256x4xf32>, vector<4x4xf32>, vector<256x4xf32> -> vector<256x4xf32>
    %73 = arith.addf %67, %72 : vector<256x4xf32>
    %c2_68 = arith.constant 2 : index
    %c1_69 = arith.constant 1 : index
    %c0_70 = arith.constant 0 : index
    %74 = vector.load %arg10[%c2_68, %c1_69, %c0_70] : memref<18x18x4xf32, #tpu.memory_space<vmem>>, vector<16x16x4xf32>
    %75 = vector.shape_cast %74 : vector<16x16x4xf32> to vector<256x4xf32>
    %c7 = arith.constant 7 : index
    %c0_71 = arith.constant 0 : index
    %c0_72 = arith.constant 0 : index
    %76 = vector.load %arg4[%c7, %c0_71, %c0_72] : memref<9x4x4xf32, #tpu.memory_space<vmem>>, vector<1x4x4xf32>
    %77 = vector.shape_cast %76 : vector<1x4x4xf32> to vector<4x4xf32>
    %cst_73 = arith.constant dense<0.000000e+00> : vector<256x4xf32>
    %78 = tpu.matmul %75, %77, %cst_73 {dimension_numbers = #tpu.dot_dimension_numbers<[1], [0], [0], [1], [0, 0, 1, 1], [], []>} : vector<256x4xf32>, vector<4x4xf32>, vector<256x4xf32> -> vector<256x4xf32>
    %79 = arith.addf %73, %78 : vector<256x4xf32>
    %c2_74 = arith.constant 2 : index
    %c2_75 = arith.constant 2 : index
    %c0_76 = arith.constant 0 : index
    %80 = vector.load %arg10[%c2_74, %c2_75, %c0_76] : memref<18x18x4xf32, #tpu.memory_space<vmem>>, vector<16x16x4xf32>
    %81 = vector.shape_cast %80 : vector<16x16x4xf32> to vector<256x4xf32>
    %c8 = arith.constant 8 : index
    %c0_77 = arith.constant 0 : index
    %c0_78 = arith.constant 0 : index
    %82 = vector.load %arg4[%c8, %c0_77, %c0_78] : memref<9x4x4xf32, #tpu.memory_space<vmem>>, vector<1x4x4xf32>
    %83 = vector.shape_cast %82 : vector<1x4x4xf32> to vector<4x4xf32>
    %cst_79 = arith.constant dense<0.000000e+00> : vector<256x4xf32>
    %84 = tpu.matmul %81, %83, %cst_79 {dimension_numbers = #tpu.dot_dimension_numbers<[1], [0], [0], [1], [0, 0, 1, 1], [], []>} : vector<256x4xf32>, vector<4x4xf32>, vector<256x4xf32> -> vector<256x4xf32>
    %85 = arith.addf %79, %84 : vector<256x4xf32>
    %c0_80 = arith.constant 0 : index
    %c0_81 = arith.constant 0 : index
    %86 = vector.load %arg7[%c0_80, %c0_81] : memref<1x4xf32, #tpu.memory_space<vmem>>, vector<1x4xf32>
    %87 = vector.broadcast %86 : vector<1x4xf32> to vector<256x4xf32>
    %88 = arith.addf %85, %87 : vector<256x4xf32>
    %cst_82 = arith.constant 0.000000e+00 : f32
    %89 = vector.broadcast %cst_82 : f32 to vector<256x4xf32>
    %90 = arith.maximumf %88, %89 : vector<256x4xf32>
    %c0_83 = arith.constant 0 : index
    %c0_84 = arith.constant 0 : index
    %91 = vector.load %arg5[%c0_83, %c0_84] : memref<4x16xf32, #tpu.memory_space<vmem>>, vector<4x16xf32>
    %cst_85 = arith.constant dense<0.000000e+00> : vector<256x16xf32>
    %92 = tpu.matmul %90, %91, %cst_85 {dimension_numbers = #tpu.dot_dimension_numbers<[1], [0], [0], [1], [0, 0, 1, 1], [], []>} : vector<256x4xf32>, vector<4x16xf32>, vector<256x16xf32> -> vector<256x16xf32>
    %c0_86 = arith.constant 0 : index
    %c0_87 = arith.constant 0 : index
    %93 = vector.load %arg8[%c0_86, %c0_87] : memref<1x16xf32, #tpu.memory_space<vmem>>, vector<1x16xf32>
    %94 = vector.broadcast %93 : vector<1x16xf32> to vector<256x16xf32>
    %95 = arith.addf %92, %94 : vector<256x16xf32>
    %c0_88 = arith.constant 0 : index
    %96 = arith.index_cast %1 : i32 to index
    %c0_89 = arith.constant 0 : index
    %c0_90 = arith.constant 0 : index
    %97 = vector.load %arg2[%c0_88, %96, %c0_89, %c0_90] : memref<1x16x16x16xf32, #tpu.memory_space<vmem>>, vector<1x16x16x16xf32>
    %98 = vector.shape_cast %97 : vector<1x16x16x16xf32> to vector<16x16x16xf32>
    %99 = vector.shape_cast %98 : vector<16x16x16xf32> to vector<256x16xf32>
    %100 = arith.addf %95, %99 : vector<256x16xf32>
    %cst_91 = arith.constant 0.000000e+00 : f32
    %101 = vector.broadcast %cst_91 : f32 to vector<256x16xf32>
    %102 = arith.maximumf %100, %101 : vector<256x16xf32>
    %103 = vector.shape_cast %102 : vector<256x16xf32> to vector<16x16x16xf32>
    %c0_92 = arith.constant 0 : index
    %c0_93 = arith.constant 0 : index
    %c0_94 = arith.constant 0 : index
    %c0_95 = arith.constant 0 : index
    %104 = vector.load %arg9[%c0_92, %c0_93, %c0_94, %c0_95] : memref<1x16x16x16xf32, #tpu.memory_space<vmem>>, vector<1x16x16x16xf32>
    %105 = vector.shape_cast %104 : vector<1x16x16x16xf32> to vector<16x16x16xf32>
    %106 = vector.shape_cast %103 : vector<16x16x16xf32> to vector<1x16x16x16xf32>
    tpu.vector_store %arg9[%c0_92, %c0_93, %c0_94, %c0_95], %106 {strides = array<i32>} : memref<1x16x16x16xf32, #tpu.memory_space<vmem>>, vector<1x16x16x16xf32>,
    return
  }
  func.func @transform_0(%arg0: i32, %arg1: i32) -> (i32, i32, i32, i32) {
    %c0_i32 = arith.constant 0 : i32
    %c0_i32_0 = arith.constant 0 : i32
    %c0_i32_1 = arith.constant 0 : i32
    %c0_i32_2 = arith.constant 0 : i32
    return %arg0, %c0_i32, %c0_i32_0, %c0_i32_1 : i32, i32, i32, i32
  }
  func.func @transform_1(%arg0: i32, %arg1: i32) -> (i32, i32) {
    %c0_i32 = arith.constant 0 : i32
    %c0_i32_0 = arith.constant 0 : i32
    %c0_i32_1 = arith.constant 0 : i32
    return %c0_i32, %c0_i32_0 : i32, i32
  }
  func.func @transform_2(%arg0: i32, %arg1: i32) -> (i32, i32, i32) {
    %c0_i32 = arith.constant 0 : i32
    %c0_i32_0 = arith.constant 0 : i32
    %c0_i32_1 = arith.constant 0 : i32
    %c0_i32_2 = arith.constant 0 : i32
    return %c0_i32, %c0_i32_0, %c0_i32_1 : i32, i32, i32
  }
  func.func @transform_3(%arg0: i32, %arg1: i32) -> (i32, i32) {
    %c0_i32 = arith.constant 0 : i32
    %c0_i32_0 = arith.constant 0 : i32
    %c0_i32_1 = arith.constant 0 : i32
    return %c0_i32, %c0_i32_0 : i32, i32
  }
  func.func @transform_4(%arg0: i32, %arg1: i32) -> (i32, i32) {
    %c0_i32 = arith.constant 0 : i32
    %c0_i32_0 = arith.constant 0 : i32
    %c0_i32_1 = arith.constant 0 : i32
    return %c0_i32, %c0_i32_0 : i32, i32
  }
  func.func @transform_5(%arg0: i32, %arg1: i32) -> (i32, i32) {
    %c0_i32 = arith.constant 0 : i32
    %c0_i32_0 = arith.constant 0 : i32
    %c0_i32_1 = arith.constant 0 : i32
    return %c0_i32, %c0_i32_0 : i32, i32
  }
  func.func @transform_6(%arg0: i32, %arg1: i32) -> (i32, i32) {
    %c0_i32 = arith.constant 0 : i32
    %c0_i32_0 = arith.constant 0 : i32
    %c0_i32_1 = arith.constant 0 : i32
    return %c0_i32, %c0_i32_0 : i32, i32
  }
  func.func @transform_7(%arg0: i32, %arg1: i32) -> (i32, i32, i32, i32) {
    %c0_i32 = arith.constant 0 : i32
    %c0_i32_0 = arith.constant 0 : i32
    %c0_i32_1 = arith.constant 0 : i32
    return %arg0, %arg1, %c0_i32, %c0_i32_0 : i32, i32, i32, i32
  }
}

</mosaic_0001>

<llo_original>
// kernel: tpu_custom_call.1
$region0: #{tpu_custom_call.1}
  #allocation0 [shape = 'u32[]', space=smem, size = 0x4, offset = 0x4, fixed_abs, tag = 'smem constant byte address 0x4 - core index']
  #allocation1 [shape = 'u32[144,128]{1,0:T(1,128)}', space=vmem, size = 0x12000, scoped, tag = 'internal scratch']
  #allocation2 [shape = 'f32[18,18,4]{2,1,0:T(8,128)}', space=vmem, size = 0x36000, scoped, tag = 'scratch operand']
  %s0 = inlined_call_operand.hbm [shape: f32[2,16,16,16], index: 0, kind: input, shape index: {}]
  %s1 = inlined_call_operand.vmem [shape: f32[16,4], index: 1, kind: input, shape index: {}]
  %s2 = inlined_call_operand.vmem [shape: f32[9,4,4], index: 2, kind: input, shape index: {}]
  %s3 = inlined_call_operand.vmem [shape: f32[4,16], index: 3, kind: input, shape index: {}]
  %s4 = inlined_call_operand.vmem [shape: f32[1,4], index: 4, kind: input, shape index: {}]
  %s5 = inlined_call_operand.vmem [shape: f32[1,4], index: 5, kind: input, shape index: {}]
  %s6 = inlined_call_operand.vmem [shape: f32[1,16], index: 6, kind: input, shape index: {}]
  %s7 = inlined_call_operand.hbm [shape: f32[2,16,16,16], index: 7, kind: output, shape index: {}]
  %s8 = sld [smem:[#allocation0]]
  $region81: #{tpu_custom_call.1} parent=0
    _
  %s10 = ssub.s32 1, %s8
  %s11 = scalar_select 0, %s10, %s8
  $region1: #{tpu_custom_call.1} parent=0
    #allocation3 [shape = 'u8[262144]{0}', space=vmem, size = 0x40000, scoped, tag = 'input window, operand 0']
    #allocation4 [shape = 's32[2]{0}', space=sflag, size = 0x8, scoped, tag = 'scoped memory for tpu_custom_call.1']
    #allocation5 [shape = 's32[2]{0}', space=sflag, size = 0x8, scoped, tag = 'scoped memory for tpu_custom_call.1']
    #allocation6 [shape = 'u8[262144]{0}', space=vmem, size = 0x40000, scoped, tag = 'output window, operand 0']
    %12 = vsyncpa [#allocation4], 0
    %s13 = scalar_lea.sflag [#allocation4], 1
    %14 = vsyncpa %s13, 0
    %15 = vsyncpa [#allocation5], 0
    %s16 = scalar_lea.sflag [#allocation5], 1
    %17 = vsyncpa %s16, 0
    loop: start=0, step=1, limit=4
    $region2: #{tpu_custom_call.1} parent=1 // loop_pre_header
      _
    $region3: #{tpu_custom_call.1} parent=1 // loop_header
      %s19 = sphi 0, %s23
      %p20 = scmp.ge.s32.totalorder %s19, 4
      %s26 = sphi 0, %s38
      %s27 = sphi 0, %s34
      %s28 = sphi 0, %s26
      %s29 = sphi 0, %s27
      %s30 = sphi 0, %s28
      %s31 = sphi 0, %s29
      %s41 = sphi 0, %s43
      %s44 = sphi 0, %s41
      %s45 = sphi 0, %s44
      %s61 = sphi 0, %s45
      %s65 = sphi 0, %s65
      %s67 = sphi 0, %s65
      %s68 = sphi 0, %s67
      %s82 = sphi 0, %s68
      %s86 = sphi 0, %s86
      %s88 = sphi 0, %s86
      %s89 = sphi 0, %s88
      %s103 = sphi 0, %s89
      %s107 = sphi 0, %s107
      %s109 = sphi 0, %s107
      %s110 = sphi 0, %s109
      %s124 = sphi 0, %s110
      %s128 = sphi 0, %s128
      %s130 = sphi 0, %s128
      %s131 = sphi 0, %s130
      %s145 = sphi 0, %s131
      %s149 = sphi 0, %s149
      %s151 = sphi 0, %s149
      %s152 = sphi 0, %s151
      %s166 = sphi 0, %s152
      %s170 = sphi 0, %s170
      %s172 = sphi 0, %s170
      %s173 = sphi 0, %s172
      %s187 = sphi 0, %s173
      %s195 = sphi 0, %s197
      %s198 = sphi 0, %s195
      %s199 = sphi 0, %s198
      %s215 = sphi 0, %s199
    $region4: #{tpu_custom_call.1} parent=1 // loop_header_branch
      %22 = sbr.rel (%p20) target = $region8
    $region5: #{tpu_custom_call.1} parent=1 // loop_body
      %s24 = ssub.s32 %s19, 1
      %s25 = ssub.s32 %s19, 2
      %s32 = sadd.s32 1, %s27
      %p33 = scmp.ge.s32.totalorder %s32, 1
      %s34 = scalar_select %p33, 0, %s32
      %s35 = sadd.s32 1, %s26
      %s36 = scalar_select %p33, %s35, %s26
      %p37 = scmp.ge.s32.totalorder %s36, 2
      %s38 = scalar_select %p37, 0, %s36
      %s39 = ssub.s32 %s26, %s38
      %p40 = scmp.eq.s32.totalorder %s39, 0
      %s42 = sadd.s32 %s41, 1
      %s43 = scalar_select %p40, %s41, %s42
      %p46 = pneg %p40
      %p47 = scmp.eq.s32.totalorder %s19, 1
      %p48 = por %p46, %p47
      %p49 = scmp.ne.s32.totalorder %s41, %s44
      %p50 = scmp.eq.s32.totalorder %s19, 0
      %p51 = por %p49, %p50
      %p52 = scmp.ne.s32.totalorder %s41, %s44
      %p53 = scmp.eq.s32.totalorder %s24, 1
      %p54 = por %p52, %p53
      %p55 = scmp.ne.s32.totalorder %s44, %s45
      %p56 = scmp.eq.s32.totalorder %s24, 0
      %p57 = por %p55, %p56
      %p58 = scmp.ne.s32.totalorder %s44, %s45
      %p59 = scmp.eq.s32.totalorder %s25, 1
      %p60 = por %p58, %p59
      %p62 = scmp.ne.s32.totalorder %s45, %s61
      %p63 = scmp.eq.s32.totalorder %s25, 0
      %p64 = por %p62, %p63
      %s66 = sadd.s32 %s65, 1
      %p69 = scmp.eq.s32.totalorder %s19, 1
      %p70 = scmp.ne.s32.totalorder %s65, %s67
      %p71 = scmp.eq.s32.totalorder %s19, 0
      %p72 = por %p70, %p71
      %p73 = scmp.ne.s32.totalorder %s65, %s67
      %p74 = scmp.eq.s32.totalorder %s24, 1
      %p75 = por %p73, %p74
      %p76 = scmp.ne.s32.totalorder %s67, %s68
      %p77 = scmp.eq.s32.totalorder %s24, 0
      %p78 = por %p76, %p77
      %p79 = scmp.ne.s32.totalorder %s67, %s68
      %p80 = scmp.eq.s32.totalorder %s25, 1
      %p81 = por %p79, %p80
      %p83 = scmp.ne.s32.totalorder %s68, %s82
      %p84 = scmp.eq.s32.totalorder %s25, 0
      %p85 = por %p83, %p84
      %s87 = sadd.s32 %s86, 1
      %p90 = scmp.eq.s32.totalorder %s19, 1
      %p91 = scmp.ne.s32.totalorder %s86, %s88
      %p92 = scmp.eq.s32.totalorder %s19, 0
      %p93 = por %p91, %p92
      %p94 = scmp.ne.s32.totalorder %s86, %s88
      %p95 = scmp.eq.s32.totalorder %s24, 1
      %p96 = por %p94, %p95
      %p97 = scmp.ne.s32.totalorder %s88, %s89
      %p98 = scmp.eq.s32.totalorder %s24, 0
      %p99 = por %p97, %p98
      %p100 = scmp.ne.s32.totalorder %s88, %s89
      %p101 = scmp.eq.s32.totalorder %s25, 1
      %p102 = por %p100, %p101
      %p104 = scmp.ne.s32.totalorder %s89, %s103
      %p105 = scmp.eq.s32.totalorder %s25, 0
      %p106 = por %p104, %p105
      %s108 = sadd.s32 %s107, 1
      %p111 = scmp.eq.s32.totalorder %s19, 1
      %p112 = scmp.ne.s32.totalorder %s107, %s109
      %p113 = scmp.eq.s32.totalorder %s19, 0
      %p114 = por %p112, %p113
      %p115 = scmp.ne.s32.totalorder %s107, %s109
      %p116 = scmp.eq.s32.totalorder %s24, 1
      %p117 = por %p115, %p116
      %p118 = scmp.ne.s32.totalorder %s109, %s110
      %p119 = scmp.eq.s32.totalorder %s24, 0
      %p120 = por %p118, %p119
      %p121 = scmp.ne.s32.totalorder %s109, %s110
      %p122 = scmp.eq.s32.totalorder %s25, 1
      %p123 = por %p121, %p122
      %p125 = scmp.ne.s32.totalorder %s110, %s124
      %p126 = scmp.eq.s32.totalorder %s25, 0
      %p127 = por %p125, %p126
      %s129 = sadd.s32 %s128, 1
      %p132 = scmp.eq.s32.totalorder %s19, 1
      %p133 = scmp.ne.s32.totalorder %s128, %s130
      %p134 = scmp.eq.s32.totalorder %s19, 0
      %p135 = por %p133, %p134
      %p136 = scmp.ne.s32.totalorder %s128, %s130
      %p137 = scmp.eq.s32.totalorder %s24, 1
      %p138 = por %p136, %p137
      %p139 = scmp.ne.s32.totalorder %s130, %s131
      %p140 = scmp.eq.s32.totalorder %s24, 0
      %p141 = por %p139, %p140
      %p142 = scmp.ne.s32.totalorder %s130, %s131
      %p143 = scmp.eq.s32.totalorder %s25, 1
      %p144 = por %p142, %p143
      %p146 = scmp.ne.s32.totalorder %s131, %s145
      %p147 = scmp.eq.s32.totalorder %s25, 0
      %p148 = por %p146, %p147
      %s150 = sadd.s32 %s149, 1
      %p153 = scmp.eq.s32.totalorder %s19, 1
      %p154 = scmp.ne.s32.totalorder %s149, %s151
      %p155 = scmp.eq.s32.totalorder %s19, 0
      %p156 = por %p154, %p155
      %p157 = scmp.ne.s32.totalorder %s149, %s151
      %p158 = scmp.eq.s32.totalorder %s24, 1
      %p159 = por %p157, %p158
      %p160 = scmp.ne.s32.totalorder %s151, %s152
      %p161 = scmp.eq.s32.totalorder %s24, 0
      %p162 = por %p160, %p161
      %p163 = scmp.ne.s32.totalorder %s151, %s152
      %p164 = scmp.eq.s32.totalorder %s25, 1
      %p165 = por %p163, %p164
      %p167 = scmp.ne.s32.totalorder %s152, %s166
      %p168 = scmp.eq.s32.totalorder %s25, 0
      %p169 = por %p167, %p168
      %s171 = sadd.s32 %s170, 1
      %p174 = scmp.eq.s32.totalorder %s19, 1
      %p175 = scmp.ne.s32.totalorder %s170, %s172
      %p176 = scmp.eq.s32.totalorder %s19, 0
      %p177 = por %p175, %p176
      %p178 = scmp.ne.s32.totalorder %s170, %s172
      %p179 = scmp.eq.s32.totalorder %s24, 1
      %p180 = por %p178, %p179
      %p181 = scmp.ne.s32.totalorder %s172, %s173
      %p182 = scmp.eq.s32.totalorder %s24, 0
      %p183 = por %p181, %p182
      %p184 = scmp.ne.s32.totalorder %s172, %s173
      %p185 = scmp.eq.s32.totalorder %s25, 1
      %p186 = por %p184, %p185
      %p188 = scmp.ne.s32.totalorder %s173, %s187
      %p189 = scmp.eq.s32.totalorder %s25, 0
      %p190 = por %p188, %p189
      %s191 = ssub.s32 %s26, %s38
      %s192 = ssub.s32 %s27, %s34
      %s193 = sor.u32 %s191, %s192
      %p194 = scmp.eq.s32.totalorder %s193, 0
      %s196 = sadd.s32 %s195, 1
      %s197 = scalar_select %p194, %s195, %s196
      %p200 = pneg %p194
      %p201 = scmp.eq.s32.totalorder %s19, 1
      %p202 = por %p200, %p201
      %p203 = scmp.ne.s32.totalorder %s195, %s198
      %p204 = scmp.eq.s32.totalorder %s19, 0
      %p205 = por %p203, %p204
      %p206 = scmp.ne.s32.totalorder %s195, %s198
      %p207 = scmp.eq.s32.totalorder %s24, 1
      %p208 = por %p206, %p207
      %p209 = scmp.ne.s32.totalorder %s198, %s199
      %p210 = scmp.eq.s32.totalorder %s24, 0
      %p211 = por %p209, %p210
      %p212 = scmp.ne.s32.totalorder %s198, %s199
      %p213 = scmp.eq.s32.totalorder %s25, 1
      %p214 = por %p212, %p213
      %p216 = scmp.ne.s32.totalorder %s199, %s215
      %p217 = scmp.eq.s32.totalorder %s25, 0
      %p218 = por %p216, %p217
      %p219 = scmp.le.s32.totalorder 1, %s19
      %p220 = scmp.lt.s32.totalorder %s19, 3
      %p221 = pnand %p219, %p220
      %p222 = pneg %p221
      // Predicated region
      $region9: #{tpu_custom_call.1} parent=5 // pred_check
        _
      $region10: #{tpu_custom_call.1} parent=5 // pred_check_branch
        %224 = sbr.rel (%p221) target = $region12
      $region11: #{tpu_custom_call.1} parent=5 // pred_region
        %s225 = ssub.s32 %s19, 1
        // Predicated region
        $region13: #{tpu_custom_call.1} parent=11 // pred_check
          %p226 = pneg %p78
        $region14: #{tpu_custom_call.1} parent=11 // pred_check_branch
          %228 = sbr.rel (%p226) target = $region16
        $region15: #{tpu_custom_call.1} parent=11 // pred_region
          _
        $region16: #{tpu_custom_call.1} parent=11 // pred_fallthru
          _
        // Predicated region
        $region17: #{tpu_custom_call.1} parent=11 // pred_check
          %p229 = pneg %p99
        $region18: #{tpu_custom_call.1} parent=11 // pred_check_branch
          %231 = sbr.rel (%p229) target = $region20
        $region19: #{tpu_custom_call.1} parent=11 // pred_region
          _
        $region20: #{tpu_custom_call.1} parent=11 // pred_fallthru
          _
        // Predicated region
        $region21: #{tpu_custom_call.1} parent=11 // pred_check
          %p232 = pneg %p120
        $region22: #{tpu_custom_call.1} parent=11 // pred_check_branch
          %234 = sbr.rel (%p232) target = $region24
        $region23: #{tpu_custom_call.1} parent=11 // pred_region
          _
        $region24: #{tpu_custom_call.1} parent=11 // pred_fallthru
          _
        // Predicated region
        $region25: #{tpu_custom_call.1} parent=11 // pred_check
          %p235 = pneg %p141
        $region26: #{tpu_custom_call.1} parent=11 // pred_check_branch
          %237 = sbr.rel (%p235) target = $region28
        $region27: #{tpu_custom_call.1} parent=11 // pred_region
          _
        $region28: #{tpu_custom_call.1} parent=11 // pred_fallthru
          _
        // Predicated region
        $region29: #{tpu_custom_call.1} parent=11 // pred_check
          %p238 = pneg %p162
        $region30: #{tpu_custom_call.1} parent=11 // pred_check_branch
          %240 = sbr.rel (%p238) target = $region32
        $region31: #{tpu_custom_call.1} parent=11 // pred_region
          _
        $region32: #{tpu_custom_call.1} parent=11 // pred_fallthru
          _
        // Predicated region
        $region33: #{tpu_custom_call.1} parent=11 // pred_check
          %p241 = pneg %p183
        $region34: #{tpu_custom_call.1} parent=11 // pred_check_branch
          %243 = sbr.rel (%p241) target = $region36
        $region35: #{tpu_custom_call.1} parent=11 // pred_region
          _
        $region36: #{tpu_custom_call.1} parent=11 // pred_fallthru
          _
      $region12: #{tpu_custom_call.1} parent=5 // pred_fallthru
        _
      %p244 = scmp.lt.s32.totalorder %s19, 2
      // Predicated region
      $region37: #{tpu_custom_call.1} parent=5 // pred_check
        %p245 = pneg %p244
      $region38: #{tpu_custom_call.1} parent=5 // pred_check_branch
        %247 = sbr.rel (%p245) target = $region40
      $region39: #{tpu_custom_call.1} parent=5 // pred_region
        // Predicated region
        $region41: #{tpu_custom_call.1} parent=39 // pred_check
          %p248 = pneg %p51
        $region42: #{tpu_custom_call.1} parent=39 // pred_check_branch
          %250 = sbr.rel (%p248) target = $region44
        $region43: #{tpu_custom_call.1} parent=39 // pred_region
          %s251 = sand.u32 %s41, 1
          %s252 = scalar_lea.sflag [#allocation4], %s251
          %s253 = sand.u32 %s41, 1
          %s254 = smul.addr %s253, 256
          %s255 = scalar_lea.vmem [#allocation3], %s254
          %s257 = ssub.s32 4096, 4096
          %258 = vsyncadd %s252, %s257
          %s259 = smul.addr %s26, 32
          %s260 = smul.addr %s259, 128
          %s261 = scalar_lea.hbm %s0, %s260
          %s262 = sshll.u32 %s255, 4
          %s263 = int_to_ptr.vmem [resolvable:$true] %s262
          %268 = dma.hbm_to_vmem [thread:$0]  %s261, 4096, %s263, %s252, 128, 128, 8
        $region44: #{tpu_custom_call.1} parent=39 // pred_fallthru
          _
      $region40: #{tpu_custom_call.1} parent=5 // pred_fallthru
        _
      %p269 = scmp.le.s32.totalorder 1, %s19
      %p270 = scmp.lt.s32.totalorder %s19, 3
      %p271 = pnand %p269, %p270
      %p272 = pneg %p271
      // Predicated region
      $region45: #{tpu_custom_call.1} parent=5 // pred_check
        _
      $region46: #{tpu_custom_call.1} parent=5 // pred_check_branch
        %274 = sbr.rel (%p271) target = $region48
      $region47: #{tpu_custom_call.1} parent=5 // pred_region
        %s275 = ssub.s32 %s19, 1
        %s276 = sand.u32 %s44, 1
        %s277 = scalar_lea.sflag [#allocation4], %s276
        %s278 = sand.u32 %s44, 1
        %s279 = smul.addr %s278, 256
        %s280 = scalar_lea.vmem [#allocation3], %s279
        // Predicated region
        $region49: #{tpu_custom_call.1} parent=47 // pred_check
          %p281 = pneg %p57
        $region50: #{tpu_custom_call.1} parent=47 // pred_check_branch
          %283 = sbr.rel (%p281) target = $region52
        $region51: #{tpu_custom_call.1} parent=47 // pred_region
          %284 = dma.done %s277, 4096
        $region52: #{tpu_custom_call.1} parent=47 // pred_fallthru
          _
        %s285 = sand.u32 %s44, 1
        %s286 = scalar_lea.sflag [#allocation4], %s285
        %s287 = sand.u32 %s44, 1
        %s288 = smul.addr %s287, 256
        %s289 = scalar_lea.vmem [#allocation3], %s288
        %p290 = pneg %p57
        %p291 = pneg %p54
        %p292 = pneg %p78
        %p293 = pneg %p75
        %p294 = pneg %p99
        %p295 = pneg %p96
        %p296 = pneg %p120
        %p297 = pneg %p117
        %p298 = pneg %p141
        %p299 = pneg %p138
        %p300 = pneg %p162
        %p301 = pneg %p159
        %p302 = pneg %p183
        %p303 = pneg %p180
        %p304 = pneg %p211
        %p305 = pneg %p208
        %s306 = sand.u32 %s198, 1
        %s307 = scalar_lea.sflag [#allocation5], %s306
        %s308 = sand.u32 %s198, 1
        %s309 = smul.addr %s308, 256
        %s310 = scalar_lea.vmem [#allocation6], %s309
        %s311 = smul.u32 16, %s29
        %s312 = smul.u32 %s29, 16
        %vm313 = vcmask 24576
        %314 = vst.msk [vmem:[#allocation2] sm:$0x1] %vm313, 0.0
        %315 = vst.msk [vmem:[#allocation2 + $0x18] sm:$0x1] %vm313, 0.0
        %316 = vst.msk [vmem:[#allocation2 + $0x30] sm:$0x1] %vm313, 0.0
        %317 = vst.msk [vmem:[#allocation2 + $0x48] sm:$0x1] %vm313, 0.0
        %318 = vst.msk [vmem:[#allocation2 + $0x60] sm:$0x1] %vm313, 0.0
        %319 = vst.msk [vmem:[#allocation2 + $0x78] sm:$0x1] %vm313, 0.0
        %320 = vst.msk [vmem:[#allocation2 + $0x90] sm:$0x1] %vm313, 0.0
        %321 = vst.msk [vmem:[#allocation2 + $0xa8] sm:$0x1] %vm313, 0.0
        %322 = vst.msk [vmem:[#allocation2 + $0xc0] sm:$0x1] %vm313, 0.0
        %323 = vst.msk [vmem:[#allocation2 + $0xd8] sm:$0x1] %vm313, 0.0
        %324 = vst.msk [vmem:[#allocation2 + $0xf0] sm:$0x1] %vm313, 0.0
        %325 = vst.msk [vmem:[#allocation2 + $0x108] sm:$0x1] %vm313, 0.0
        %326 = vst.msk [vmem:[#allocation2 + $0x120] sm:$0x1] %vm313, 0.0
        %327 = vst.msk [vmem:[#allocation2 + $0x138] sm:$0x1] %vm313, 0.0
        %328 = vst.msk [vmem:[#allocation2 + $0x150] sm:$0x1] %vm313, 0.0
        %329 = vst.msk [vmem:[#allocation2 + $0x168] sm:$0x1] %vm313, 0.0
        %330 = vst.msk [vmem:[#allocation2 + $0x180] sm:$0x1] %vm313, 0.0
        %331 = vst.msk [vmem:[#allocation2 + $0x198] sm:$0x1] %vm313, 0.0
        %332 = vst.msk [vmem:[#allocation2 + $0x11] sm:$0x1] %vm313, 0.0
        %333 = vst.msk [vmem:[#allocation2 + $0x29] sm:$0x1] %vm313, 0.0
        %334 = vst.msk [vmem:[#allocation2 + $0x41] sm:$0x1] %vm313, 0.0
        %335 = vst.msk [vmem:[#allocation2 + $0x59] sm:$0x1] %vm313, 0.0
        %336 = vst.msk [vmem:[#allocation2 + $0x71] sm:$0x1] %vm313, 0.0
        %337 = vst.msk [vmem:[#allocation2 + $0x89] sm:$0x1] %vm313, 0.0
        %338 = vst.msk [vmem:[#allocation2 + $0xa1] sm:$0x1] %vm313, 0.0
        %339 = vst.msk [vmem:[#allocation2 + $0xb9] sm:$0x1] %vm313, 0.0
        %340 = vst.msk [vmem:[#allocation2 + $0xd1] sm:$0x1] %vm313, 0.0
        %341 = vst.msk [vmem:[#allocation2 + $0xe9] sm:$0x1] %vm313, 0.0
        %342 = vst.msk [vmem:[#allocation2 + $0x101] sm:$0x1] %vm313, 0.0
        %343 = vst.msk [vmem:[#allocation2 + $0x119] sm:$0x1] %vm313, 0.0
        %344 = vst.msk [vmem:[#allocation2 + $0x131] sm:$0x1] %vm313, 0.0
        %345 = vst.msk [vmem:[#allocation2 + $0x149] sm:$0x1] %vm313, 0.0
        %346 = vst.msk [vmem:[#allocation2 + $0x161] sm:$0x1] %vm313, 0.0
        %347 = vst.msk [vmem:[#allocation2 + $0x179] sm:$0x1] %vm313, 0.0
        %348 = vst.msk [vmem:[#allocation2 + $0x191] sm:$0x1] %vm313, 0.0
        %349 = vst.msk [vmem:[#allocation2 + $0x1a9] sm:$0x1] %vm313, 0.0
        %s350 = smul.u32 %s312, 16
        %s351 = scalar_lea.vmem %s280, %s350 [#allocation3]
        %v352 = vld [vmem:[%s351] sm:$0xff]
        %v353 = vld [vmem:[%s351 + $0x8] sm:$0xff]
        %v354 = vld [vmem:[%s351 + $0x10] sm:$0xff]
        %v355 = vld [vmem:[%s351 + $0x18] sm:$0xff]
        %v356 = vld [vmem:[%s351 + $0x20] sm:$0xff]
        %v357 = vld [vmem:[%s351 + $0x28] sm:$0xff]
        %v358 = vld [vmem:[%s351 + $0x30] sm:$0xff]
        %v359 = vld [vmem:[%s351 + $0x38] sm:$0xff]
        %v360 = vld [vmem:[%s351 + $0x40] sm:$0xff]
        %v361 = vld [vmem:[%s351 + $0x48] sm:$0xff]
        %v362 = vld [vmem:[%s351 + $0x50] sm:$0xff]
        %v363 = vld [vmem:[%s351 + $0x58] sm:$0xff]
        %v364 = vld [vmem:[%s351 + $0x60] sm:$0xff]
        %v365 = vld [vmem:[%s351 + $0x68] sm:$0xff]
        %v366 = vld [vmem:[%s351 + $0x70] sm:$0xff]
        %v367 = vld [vmem:[%s351 + $0x78] sm:$0xff]
        %v368 = vld [vmem:[%s351 + $0x80] sm:$0xff]
        %v369 = vld [vmem:[%s351 + $0x88] sm:$0xff]
        %v370 = vld [vmem:[%s351 + $0x90] sm:$0xff]
        %v371 = vld [vmem:[%s351 + $0x98] sm:$0xff]
        %v372 = vld [vmem:[%s351 + $0xa0] sm:$0xff]
        %v373 = vld [vmem:[%s351 + $0xa8] sm:$0xff]
        %v374 = vld [vmem:[%s351 + $0xb0] sm:$0xff]
        %v375 = vld [vmem:[%s351 + $0xb8] sm:$0xff]
        %v376 = vld [vmem:[%s351 + $0xc0] sm:$0xff]
        %v377 = vld [vmem:[%s351 + $0xc8] sm:$0xff]
        %v378 = vld [vmem:[%s351 + $0xd0] sm:$0xff]
        %v379 = vld [vmem:[%s351 + $0xd8] sm:$0xff]
        %v380 = vld [vmem:[%s351 + $0xe0] sm:$0xff]
        %v381 = vld [vmem:[%s351 + $0xe8] sm:$0xff]
        %v382 = vld [vmem:[%s351 + $0xf0] sm:$0xff]
        %v383 = vld [vmem:[%s351 + $0xf8] sm:$0xff]
        %v384 = vld [vmem:[%s1] sm:$0xff]
        %v385 = vld [vmem:[%s1 + $0x8] sm:$0xff]
        %v386 = vld [vmem:[%s4] sm:$0x1]
        %v388 = vlaneseq
        %v389 = vshrl.u32 %v388, 7
        %v390 = vsub.s32 0, %v389
        %v391 = vrot.slane %v386, %v390
        %vm393 = vcmask 130048
        %v395 = vsel %vm393, %v352, 0
        %v398 = vsel %vm393, %v353, 0
        %v401 = vsel %vm393, %v354, 0
        %v404 = vsel %vm393, %v355, 0
        %v407 = vsel %vm393, %v356, 0
        %v410 = vsel %vm393, %v357, 0
        %v413 = vsel %vm393, %v358, 0
        %v416 = vsel %vm393, %v359, 0
        %v419 = vsel %vm393, %v360, 0
        %v422 = vsel %vm393, %v361, 0
        %v425 = vsel %vm393, %v362, 0
        %v428 = vsel %vm393, %v363, 0
        %v431 = vsel %vm393, %v364, 0
        %v434 = vsel %vm393, %v365, 0
        %v437 = vsel %vm393, %v366, 0
        %v440 = vsel %vm393, %v367, 0
        %v443 = vsel %vm393, %v368, 0
        %v446 = vsel %vm393, %v369, 0
        %v449 = vsel %vm393, %v370, 0
        %v452 = vsel %vm393, %v371, 0
        %v455 = vsel %vm393, %v372, 0
        %v458 = vsel %vm393, %v373, 0
        %v461 = vsel %vm393, %v374, 0
        %v464 = vsel %vm393, %v375, 0
        %v467 = vsel %vm393, %v376, 0
        %v470 = vsel %vm393, %v377, 0
        %v473 = vsel %vm393, %v378, 0
        %v476 = vsel %vm393, %v379, 0
        %v479 = vsel %vm393, %v380, 0
        %v482 = vsel %vm393, %v381, 0
        %v485 = vsel %vm393, %v382, 0
        %v488 = vsel %vm393, %v383, 0
        %490 = vmatprep.subr.mxu0 0.0
        %491 = vmatpush1.msra.mxu0 0.0
        %492 = vmatprep.subr.mxu0 0.0
        %493 = vmatpush1.msra.mxu0 0.0
        %494 = vmatprep.subr.mxu0 0.0
        %495 = vmatpush1.msra.mxu0 0.0
        %496 = vmatprep.subr.mxu0 0.0
        %497 = vmatpush1.msra.mxu0 0.0
        %498 = vmatprep.subr.mxu0 0.0
        %499 = vmatpush1.msra.mxu0 0.0
        %500 = vmatprep.subr.mxu0 0.0
        %501 = vmatpush1.msra.mxu0 0.0
        %502 = vmatprep.subr.mxu0 0.0
        %503 = vmatpush1.msra.mxu0 0.0
        %504 = vmatprep.subr.mxu0 0.0
        %505 = vmatpush1.msra.mxu0 0.0
        %506 = vmatprep.subr.mxu0 0.0
        %507 = vmatpush1.msra.mxu0 0.0
        %508 = vmatprep.subr.mxu0 0.0
        %509 = vmatpush1.msra.mxu0 0.0
        %510 = vmatprep.subr.mxu0 0.0
        %511 = vmatpush1.msra.mxu0 0.0
        %512 = vmatprep.subr.mxu0 0.0
        %513 = vmatpush1.msra.mxu0 0.0
        %514 = vmatprep.subr.mxu0 0.0
        %515 = vmatpush1.msra.mxu0 0.0
        %516 = vmatprep.subr.mxu0 0.0
        %517 = vmatpush1.msra.mxu0 0.0
        %518 = vmatprep.subr.mxu0 0.0
        %519 = vmatpush1.msra.mxu0 %v385
        %520 = vmatprep.subr.mxu0 0.0
        %521 = vmatpush1.msra.mxu0 %v384
        %522 = vmatprep.subr.mxu0 0.0
        %523 = vmatpush2.msra.mxu0 0.0
        %524 = vmatprep.subr.mxu0 0.0
        %525 = vmatpush2.msra.mxu0 0.0
        %526 = vmatprep.subr.mxu0 0.0
        %527 = vmatpush2.msra.mxu0 0.0
        %528 = vmatprep.subr.mxu0 0.0
        %529 = vmatpush2.msra.mxu0 0.0
        %530 = vmatprep.subr.mxu0 0.0
        %531 = vmatpush2.msra.mxu0 0.0
        %532 = vmatprep.subr.mxu0 0.0
        %533 = vmatpush2.msra.mxu0 0.0
        %534 = vmatprep.subr.mxu0 0.0
        %535 = vmatpush2.msra.mxu0 0.0
        %536 = vmatprep.subr.mxu0 0.0
        %537 = vmatpush2.msra.mxu0 0.0
        %538 = vmatprep.subr.mxu0 0.0
        %539 = vmatpush2.msra.mxu0 0.0
        %540 = vmatprep.subr.mxu0 0.0
        %541 = vmatpush2.msra.mxu0 0.0
        %542 = vmatprep.subr.mxu0 0.0
        %543 = vmatpush2.msra.mxu0 0.0
        %544 = vmatprep.subr.mxu0 0.0
        %545 = vmatpush2.msra.mxu0 0.0
        %546 = vmatprep.subr.mxu0 0.0
        %547 = vmatpush2.msra.mxu0 0.0
        %548 = vmatprep.subr.mxu0 0.0
        %549 = vmatpush2.msra.mxu0 0.0
        %550 = vmatprep.subr.mxu0 0.0
        %551 = vmatpush2.msra.mxu0 0.0
        %552 = vmatprep.subr.mxu0 0.0
        %553 = vmatpush2.msra.mxu0 0.0
        %554 = vmatprep.mubr.f32.mxu0 0.0
        %555 = vmatmul.mubr.f32.gmra.mxu0 %v395
        %v556 = vpop.f32.mrf.mxu0
        %v557 = vadd.f32 %v391, %v556
        %v558 = vpop.f32.mrf.mxu0
        %559 = vmatprep.mubr.f32.mxu0 0.0
        %560 = vmatmul.mubr.f32.gmra.mxu0 %v398
        %v561 = vpop.f32.mrf.mxu0
        %v562 = vadd.f32 %v391, %v561
        %v563 = vpop.f32.mrf.mxu0
        %564 = vmatprep.mubr.f32.mxu0 0.0
        %565 = vmatmul.mubr.f32.gmra.mxu0 %v401
        %v566 = vpop.f32.mrf.mxu0
        %v567 = vadd.f32 %v391, %v566
        %v568 = vpop.f32.mrf.mxu0
        %569 = vmatprep.mubr.f32.mxu0 0.0
        %570 = vmatmul.mubr.f32.gmra.mxu0 %v404
        %v571 = vpop.f32.mrf.mxu0
        %v572 = vadd.f32 %v391, %v571
        %v573 = vpop.f32.mrf.mxu0
        %574 = vmatprep.mubr.f32.mxu0 0.0
        %575 = vmatmul.mubr.f32.gmra.mxu0 %v407
        %v576 = vpop.f32.mrf.mxu0
        %v577 = vadd.f32 %v391, %v576
        %v578 = vpop.f32.mrf.mxu0
        %579 = vmatprep.mubr.f32.mxu0 0.0
        %580 = vmatmul.mubr.f32.gmra.mxu0 %v410
        %v581 = vpop.f32.mrf.mxu0
        %v582 = vadd.f32 %v391, %v581
        %v583 = vpop.f32.mrf.mxu0
        %584 = vmatprep.mubr.f32.mxu0 0.0
        %585 = vmatmul.mubr.f32.gmra.mxu0 %v413
        %v586 = vpop.f32.mrf.mxu0
        %v587 = vadd.f32 %v391, %v586
        %v588 = vpop.f32.mrf.mxu0
        %589 = vmatprep.mubr.f32.mxu0 0.0
        %590 = vmatmul.mubr.f32.gmra.mxu0 %v416
        %v591 = vpop.f32.mrf.mxu0
        %v592 = vadd.f32 %v391, %v591
        %v593 = vpop.f32.mrf.mxu0
        %594 = vmatprep.mubr.f32.mxu0 0.0
        %595 = vmatmul.mubr.f32.gmra.mxu0 %v419
        %v596 = vpop.f32.mrf.mxu0
        %v597 = vadd.f32 %v391, %v596
        %v598 = vpop.f32.mrf.mxu0
        %599 = vmatprep.mubr.f32.mxu0 0.0
        %600 = vmatmul.mubr.f32.gmra.mxu0 %v422
        %v601 = vpop.f32.mrf.mxu0
        %v602 = vadd.f32 %v391, %v601
        %v603 = vpop.f32.mrf.mxu0
        %604 = vmatprep.mubr.f32.mxu0 0.0
        %605 = vmatmul.mubr.f32.gmra.mxu0 %v425
        %v606 = vpop.f32.mrf.mxu0
        %v607 = vadd.f32 %v391, %v606
        %v608 = vpop.f32.mrf.mxu0
        %609 = vmatprep.mubr.f32.mxu0 0.0
        %610 = vmatmul.mubr.f32.gmra.mxu0 %v428
        %v611 = vpop.f32.mrf.mxu0
        %v612 = vadd.f32 %v391, %v611
        %v613 = vpop.f32.mrf.mxu0
        %614 = vmatprep.mubr.f32.mxu0 0.0
        %615 = vmatmul.mubr.f32.gmra.mxu0 %v431
        %v616 = vpop.f32.mrf.mxu0
        %v617 = vadd.f32 %v391, %v616
        %v618 = vpop.f32.mrf.mxu0
        %619 = vmatprep.mubr.f32.mxu0 0.0
        %620 = vmatmul.mubr.f32.gmra.mxu0 %v434
        %v621 = vpop.f32.mrf.mxu0
        %v622 = vadd.f32 %v391, %v621
        %v623 = vpop.f32.mrf.mxu0
        %624 = vmatprep.mubr.f32.mxu0 0.0
        %625 = vmatmul.mubr.f32.gmra.mxu0 %v437
        %v626 = vpop.f32.mrf.mxu0
        %v627 = vadd.f32 %v391, %v626
        %v628 = vpop.f32.mrf.mxu0
        %629 = vmatprep.mubr.f32.mxu0 0.0
        %630 = vmatmul.mubr.f32.gmra.mxu0 %v440
        %v631 = vpop.f32.mrf.mxu0
        %v632 = vadd.f32 %v391, %v631
        %v633 = vpop.f32.mrf.mxu0
        %634 = vmatprep.mubr.f32.mxu0 0.0
        %635 = vmatmul.mubr.f32.gmra.mxu0 %v443
        %v636 = vpop.f32.mrf.mxu0
        %v637 = vadd.f32 %v391, %v636
        %v638 = vpop.f32.mrf.mxu0
        %639 = vmatprep.mubr.f32.mxu0 0.0
        %640 = vmatmul.mubr.f32.gmra.mxu0 %v446
        %v641 = vpop.f32.mrf.mxu0
        %v642 = vadd.f32 %v391, %v641
        %v643 = vpop.f32.mrf.mxu0
        %644 = vmatprep.mubr.f32.mxu0 0.0
        %645 = vmatmul.mubr.f32.gmra.mxu0 %v449
        %v646 = vpop.f32.mrf.mxu0
        %v647 = vadd.f32 %v391, %v646
        %v648 = vpop.f32.mrf.mxu0
        %649 = vmatprep.mubr.f32.mxu0 0.0
        %650 = vmatmul.mubr.f32.gmra.mxu0 %v452
        %v651 = vpop.f32.mrf.mxu0
        %v652 = vadd.f32 %v391, %v651
        %v653 = vpop.f32.mrf.mxu0
        %654 = vmatprep.mubr.f32.mxu0 0.0
        %655 = vmatmul.mubr.f32.gmra.mxu0 %v455
        %v656 = vpop.f32.mrf.mxu0
        %v657 = vadd.f32 %v391, %v656
        %v658 = vpop.f32.mrf.mxu0
        %659 = vmatprep.mubr.f32.mxu0 0.0
        %660 = vmatmul.mubr.f32.gmra.mxu0 %v458
        %v661 = vpop.f32.mrf.mxu0
        %v662 = vadd.f32 %v391, %v661
        %v663 = vpop.f32.mrf.mxu0
        %664 = vmatprep.mubr.f32.mxu0 0.0
        %665 = vmatmul.mubr.f32.gmra.mxu0 %v461
        %v666 = vpop.f32.mrf.mxu0
        %v667 = vadd.f32 %v391, %v666
        %v668 = vpop.f32.mrf.mxu0
        %669 = vmatprep.mubr.f32.mxu0 0.0
        %670 = vmatmul.mubr.f32.gmra.mxu0 %v464
        %v671 = vpop.f32.mrf.mxu0
        %v672 = vadd.f32 %v391, %v671
        %v673 = vpop.f32.mrf.mxu0
        %674 = vmatprep.mubr.f32.mxu0 0.0
        %675 = vmatmul.mubr.f32.gmra.mxu0 %v467
        %v676 = vpop.f32.mrf.mxu0
        %v677 = vadd.f32 %v391, %v676
        %v678 = vpop.f32.mrf.mxu0
        %679 = vmatprep.mubr.f32.mxu0 0.0
        %680 = vmatmul.mubr.f32.gmra.mxu0 %v470
        %v681 = vpop.f32.mrf.mxu0
        %v682 = vadd.f32 %v391, %v681
        %v683 = vpop.f32.mrf.mxu0
        %684 = vmatprep.mubr.f32.mxu0 0.0
        %685 = vmatmul.mubr.f32.gmra.mxu0 %v473
        %v686 = vpop.f32.mrf.mxu0
        %v687 = vadd.f32 %v391, %v686
        %v688 = vpop.f32.mrf.mxu0
        %689 = vmatprep.mubr.f32.mxu0 0.0
        %690 = vmatmul.mubr.f32.gmra.mxu0 %v476
        %v691 = vpop.f32.mrf.mxu0
        %v692 = vadd.f32 %v391, %v691
        %v693 = vpop.f32.mrf.mxu0
        %694 = vmatprep.mubr.f32.mxu0 0.0
        %695 = vmatmul.mubr.f32.gmra.mxu0 %v479
        %v696 = vpop.f32.mrf.mxu0
        %v697 = vadd.f32 %v391, %v696
        %v698 = vpop.f32.mrf.mxu0
        %699 = vmatprep.mubr.f32.mxu0 0.0
        %700 = vmatmul.mubr.f32.gmra.mxu0 %v482
        %v701 = vpop.f32.mrf.mxu0
        %v702 = vadd.f32 %v391, %v701
        %v703 = vpop.f32.mrf.mxu0
        %704 = vmatprep.mubr.f32.mxu0 0.0
        %705 = vmatmul.mubr.f32.gmra.mxu0 %v485
        %v706 = vpop.f32.mrf.mxu0
        %v707 = vadd.f32 %v391, %v706
        %v708 = vpop.f32.mrf.mxu0
        %709 = vmatprep.mubr.f32.mxu0 0.0
        %710 = vmatmul.mubr.f32.gmra.mxu0 %v488
        %v711 = vpop.f32.mrf.mxu0
        %v712 = vadd.f32 %v391, %v711
        %v713 = vpop.f32.mrf.mxu0
        %714 = vdwg.mxu0
        %v715 = vmax.f32 %v557, 0.0
        %v716 = vmax.f32 %v562, 0.0
        %v717 = vmax.f32 %v567, 0.0
        %v718 = vmax.f32 %v572, 0.0
        %v719 = vmax.f32 %v577, 0.0
        %v720 = vmax.f32 %v582, 0.0
        %v721 = vmax.f32 %v587, 0.0
        %v722 = vmax.f32 %v592, 0.0
        %v723 = vmax.f32 %v597, 0.0
        %v724 = vmax.f32 %v602, 0.0
        %v725 = vmax.f32 %v607, 0.0
        %v726 = vmax.f32 %v612, 0.0
        %v727 = vmax.f32 %v617, 0.0
        %v728 = vmax.f32 %v622, 0.0
        %v729 = vmax.f32 %v627, 0.0
        %v730 = vmax.f32 %v632, 0.0
        %v731 = vmax.f32 %v637, 0.0
        %v732 = vmax.f32 %v642, 0.0
        %v733 = vmax.f32 %v647, 0.0
        %v734 = vmax.f32 %v652, 0.0
        %v735 = vmax.f32 %v657, 0.0
        %v736 = vmax.f32 %v662, 0.0
        %v737 = vmax.f32 %v667, 0.0
        %v738 = vmax.f32 %v672, 0.0
        %v739 = vmax.f32 %v677, 0.0
        %v740 = vmax.f32 %v682, 0.0
        %v741 = vmax.f32 %v687, 0.0
        %v742 = vmax.f32 %v692, 0.0
        %v743 = vmax.f32 %v697, 0.0
        %v744 = vmax.f32 %v702, 0.0
        %v745 = vmax.f32 %v707, 0.0
        %v746 = vmax.f32 %v712, 0.0
        %s747 = scalar_lea.vmem [#allocation2], 24
        %vm748 = vcmask 31744
        %749 = vst.msk [vmem:[%s747 + $0x1] sm:$0xff] %vm748, %v715
        %750 = vst.msk [vmem:[%s747 + $0x9] sm:$0xff] %vm748, %v716
        %751 = vst.msk [vmem:[%s747 + $0x19] sm:$0xff] %vm748, %v717
        %752 = vst.msk [vmem:[%s747 + $0x21] sm:$0xff] %vm748, %v718
        %753 = vst.msk [vmem:[%s747 + $0x31] sm:$0xff] %vm748, %v719
        %754 = vst.msk [vmem:[%s747 + $0x39] sm:$0xff] %vm748, %v720
        %755 = vst.msk [vmem:[%s747 + $0x49] sm:$0xff] %vm748, %v721
        %756 = vst.msk [vmem:[%s747 + $0x51] sm:$0xff] %vm748, %v722
        %757 = vst.msk [vmem:[%s747 + $0x61] sm:$0xff] %vm748, %v723
        %758 = vst.msk [vmem:[%s747 + $0x69] sm:$0xff] %vm748, %v724
        %759 = vst.msk [vmem:[%s747 + $0x79] sm:$0xff] %vm748, %v725
        %760 = vst.msk [vmem:[%s747 + $0x81] sm:$0xff] %vm748, %v726
        %761 = vst.msk [vmem:[%s747 + $0x91] sm:$0xff] %vm748, %v727
        %762 = vst.msk [vmem:[%s747 + $0x99] sm:$0xff] %vm748, %v728
        %763 = vst.msk [vmem:[%s747 + $0xa9] sm:$0xff] %vm748, %v729
        %764 = vst.msk [vmem:[%s747 + $0xb1] sm:$0xff] %vm748, %v730
        %765 = vst.msk [vmem:[%s747 + $0xc1] sm:$0xff] %vm748, %v731
        %766 = vst.msk [vmem:[%s747 + $0xc9] sm:$0xff] %vm748, %v732
        %767 = vst.msk [vmem:[%s747 + $0xd9] sm:$0xff] %vm748, %v733
        %768 = vst.msk [vmem:[%s747 + $0xe1] sm:$0xff] %vm748, %v734
        %769 = vst.msk [vmem:[%s747 + $0xf1] sm:$0xff] %vm748, %v735
        %770 = vst.msk [vmem:[%s747 + $0xf9] sm:$0xff] %vm748, %v736
        %771 = vst.msk [vmem:[%s747 + $0x109] sm:$0xff] %vm748, %v737
        %772 = vst.msk [vmem:[%s747 + $0x111] sm:$0xff] %vm748, %v738
        %773 = vst.msk [vmem:[%s747 + $0x121] sm:$0xff] %vm748, %v739
        %774 = vst.msk [vmem:[%s747 + $0x129] sm:$0xff] %vm748, %v740
        %775 = vst.msk [vmem:[%s747 + $0x139] sm:$0xff] %vm748, %v741
        %776 = vst.msk [vmem:[%s747 + $0x141] sm:$0xff] %vm748, %v742
        %777 = vst.msk [vmem:[%s747 + $0x151] sm:$0xff] %vm748, %v743
        %778 = vst.msk [vmem:[%s747 + $0x159] sm:$0xff] %vm748, %v744
        %779 = vst.msk [vmem:[%s747 + $0x169] sm:$0xff] %vm748, %v745
        %780 = vst.msk [vmem:[%s747 + $0x171] sm:$0xff] %vm748, %v746
        %p781 = scmp.gt.s32.totalorder %s29, 0
        // Predicated region
        $region53: #{tpu_custom_call.1} parent=47 // pred_check
          %p782 = pneg %p781
        $region54: #{tpu_custom_call.1} parent=47 // pred_check_branch
          %784 = sbr.rel (%p782) target = $region56
        $region55: #{tpu_custom_call.1} parent=47 // pred_region
          %s785 = ssub.s32 %s312, 1
          %s786 = smul.u32 %s785, 16
          %s787 = scalar_lea.vmem %s280, %s786 [#allocation3]
          %v788 = vld [vmem:[%s787] sm:$0xff]
          %v789 = vld [vmem:[%s787 + $0x8] sm:$0xff]
          %v790 = vld [vmem:[%s1] sm:$0xff]
          %v791 = vld [vmem:[%s1 + $0x8] sm:$0xff]
          %v792 = vld [vmem:[%s4] sm:$0x1]
          %v794 = vlaneseq
          %v795 = vshrl.u32 %v794, 7
          %v796 = vsub.s32 0, %v795
          %v797 = vrot.slane %v792, %v796
          %v800 = vsel %vm393, %v788, 0
          %v803 = vsel %vm393, %v789, 0
          %805 = vmatprep.subr.mxu0 0.0
          %806 = vmatpush1.msra.mxu0 0.0
          %807 = vmatprep.subr.mxu0 0.0
          %808 = vmatpush1.msra.mxu0 0.0
          %809 = vmatprep.subr.mxu0 0.0
          %810 = vmatpush1.msra.mxu0 0.0
          %811 = vmatprep.subr.mxu0 0.0
          %812 = vmatpush1.msra.mxu0 0.0
          %813 = vmatprep.subr.mxu0 0.0
          %814 = vmatpush1.msra.mxu0 0.0
          %815 = vmatprep.subr.mxu0 0.0
          %816 = vmatpush1.msra.mxu0 0.0
          %817 = vmatprep.subr.mxu0 0.0
          %818 = vmatpush1.msra.mxu0 0.0
          %819 = vmatprep.subr.mxu0 0.0
          %820 = vmatpush1.msra.mxu0 0.0
          %821 = vmatprep.subr.mxu0 0.0
          %822 = vmatpush1.msra.mxu0 0.0
          %823 = vmatprep.subr.mxu0 0.0
          %824 = vmatpush1.msra.mxu0 0.0
          %825 = vmatprep.subr.mxu0 0.0
          %826 = vmatpush1.msra.mxu0 0.0
          %827 = vmatprep.subr.mxu0 0.0
          %828 = vmatpush1.msra.mxu0 0.0
          %829 = vmatprep.subr.mxu0 0.0
          %830 = vmatpush1.msra.mxu0 0.0
          %831 = vmatprep.subr.mxu0 0.0
          %832 = vmatpush1.msra.mxu0 0.0
          %833 = vmatprep.subr.mxu0 0.0
          %834 = vmatpush1.msra.mxu0 %v791
          %835 = vmatprep.subr.mxu0 0.0
          %836 = vmatpush1.msra.mxu0 %v790
          %837 = vmatprep.subr.mxu0 0.0
          %838 = vmatpush2.msra.mxu0 0.0
          %839 = vmatprep.subr.mxu0 0.0
          %840 = vmatpush2.msra.mxu0 0.0
          %841 = vmatprep.subr.mxu0 0.0
          %842 = vmatpush2.msra.mxu0 0.0
          %843 = vmatprep.subr.mxu0 0.0
          %844 = vmatpush2.msra.mxu0 0.0
          %845 = vmatprep.subr.mxu0 0.0
          %846 = vmatpush2.msra.mxu0 0.0
          %847 = vmatprep.subr.mxu0 0.0
          %848 = vmatpush2.msra.mxu0 0.0
          %849 = vmatprep.subr.mxu0 0.0
          %850 = vmatpush2.msra.mxu0 0.0
          %851 = vmatprep.subr.mxu0 0.0
          %852 = vmatpush2.msra.mxu0 0.0
          %853 = vmatprep.subr.mxu0 0.0
          %854 = vmatpush2.msra.mxu0 0.0
          %855 = vmatprep.subr.mxu0 0.0
          %856 = vmatpush2.msra.mxu0 0.0
          %857 = vmatprep.subr.mxu0 0.0
          %858 = vmatpush2.msra.mxu0 0.0
          %859 = vmatprep.subr.mxu0 0.0
          %860 = vmatpush2.msra.mxu0 0.0
          %861 = vmatprep.subr.mxu0 0.0
          %862 = vmatpush2.msra.mxu0 0.0
          %863 = vmatprep.subr.mxu0 0.0
          %864 = vmatpush2.msra.mxu0 0.0
          %865 = vmatprep.subr.mxu0 0.0
          %866 = vmatpush2.msra.mxu0 0.0
          %867 = vmatprep.subr.mxu0 0.0
          %868 = vmatpush2.msra.mxu0 0.0
          %869 = vmatprep.mubr.f32.mxu0 0.0
          %870 = vmatmul.mubr.f32.gmra.mxu0 %v800
          %v871 = vpop.f32.mrf.mxu0
          %v872 = vadd.f32 %v797, %v871
          %v873 = vpop.f32.mrf.mxu0
          %874 = vmatprep.mubr.f32.mxu0 0.0
          %875 = vmatmul.mubr.f32.gmra.mxu0 %v803
          %v876 = vpop.f32.mrf.mxu0
          %v877 = vadd.f32 %v797, %v876
          %v878 = vpop.f32.mrf.mxu0
          %879 = vdwg.mxu0
          %v880 = vmax.f32 %v872, 0.0
          %v881 = vmax.f32 %v877, 0.0
          %882 = vst.msk [vmem:[#allocation2 + $0x1] sm:$0xff] %vm748, %v880
          %883 = vst.msk [vmem:[#allocation2 + $0x9] sm:$0xff] %vm748, %v881
        $region56: #{tpu_custom_call.1} parent=47 // pred_fallthru
          _
        %p884 = scmp.eq.s32.totalorder %s29, 0
        // Predicated region
        $region57: #{tpu_custom_call.1} parent=47 // pred_check
          %p885 = pneg %p884
        $region58: #{tpu_custom_call.1} parent=47 // pred_check_branch
          %887 = sbr.rel (%p885) target = $region60
        $region59: #{tpu_custom_call.1} parent=47 // pred_region
          %888 = vst.msk [vmem:[#allocation2 + $0x1] sm:$0xff] %vm748, 0.0
          %889 = vst.msk [vmem:[#allocation2 + $0x9] sm:$0xff] %vm748, 0.0
        $region60: #{tpu_custom_call.1} parent=47 // pred_fallthru
          _
        %p890 = scmp.lt.s32.totalorder %s29, 0
        // Predicated region
        $region61: #{tpu_custom_call.1} parent=47 // pred_check
          %p891 = pneg %p890
        $region62: #{tpu_custom_call.1} parent=47 // pred_check_branch
          %893 = sbr.rel (%p891) target = $region64
        $region63: #{tpu_custom_call.1} parent=47 // pred_region
          %s894 = sadd.s32 %s312, 16
          %s895 = smul.u32 %s894, 16
          %s896 = scalar_lea.vmem %s280, %s895 [#allocation3]
          %v897 = vld [vmem:[%s896] sm:$0xff]
          %v898 = vld [vmem:[%s896 + $0x8] sm:$0xff]
          %v899 = vld [vmem:[%s1] sm:$0xff]
          %v900 = vld [vmem:[%s1 + $0x8] sm:$0xff]
          %v901 = vld [vmem:[%s4] sm:$0x1]
          %v903 = vlaneseq
          %v904 = vshrl.u32 %v903, 7
          %v905 = vsub.s32 0, %v904
          %v906 = vrot.slane %v901, %v905
          %v909 = vsel %vm393, %v897, 0
          %v912 = vsel %vm393, %v898, 0
          %914 = vmatprep.subr.mxu0 0.0
          %915 = vmatpush1.msra.mxu0 0.0
          %916 = vmatprep.subr.mxu0 0.0
          %917 = vmatpush1.msra.mxu0 0.0
          %918 = vmatprep.subr.mxu0 0.0
          %919 = vmatpush1.msra.mxu0 0.0
          %920 = vmatprep.subr.mxu0 0.0
          %921 = vmatpush1.msra.mxu0 0.0
          %922 = vmatprep.subr.mxu0 0.0
          %923 = vmatpush1.msra.mxu0 0.0
          %924 = vmatprep.subr.mxu0 0.0
          %925 = vmatpush1.msra.mxu0 0.0
          %926 = vmatprep.subr.mxu0 0.0
          %927 = vmatpush1.msra.mxu0 0.0
          %928 = vmatprep.subr.mxu0 0.0
          %929 = vmatpush1.msra.mxu0 0.0
          %930 = vmatprep.subr.mxu0 0.0
          %931 = vmatpush1.msra.mxu0 0.0
          %932 = vmatprep.subr.mxu0 0.0
          %933 = vmatpush1.msra.mxu0 0.0
          %934 = vmatprep.subr.mxu0 0.0
          %935 = vmatpush1.msra.mxu0 0.0
          %936 = vmatprep.subr.mxu0 0.0
          %937 = vmatpush1.msra.mxu0 0.0
          %938 = vmatprep.subr.mxu0 0.0
          %939 = vmatpush1.msra.mxu0 0.0
          %940 = vmatprep.subr.mxu0 0.0
          %941 = vmatpush1.msra.mxu0 0.0
          %942 = vmatprep.subr.mxu0 0.0
          %943 = vmatpush1.msra.mxu0 %v900
          %944 = vmatprep.subr.mxu0 0.0
          %945 = vmatpush1.msra.mxu0 %v899
          %946 = vmatprep.subr.mxu0 0.0
          %947 = vmatpush2.msra.mxu0 0.0
          %948 = vmatprep.subr.mxu0 0.0
          %949 = vmatpush2.msra.mxu0 0.0
          %950 = vmatprep.subr.mxu0 0.0
          %951 = vmatpush2.msra.mxu0 0.0
          %952 = vmatprep.subr.mxu0 0.0
          %953 = vmatpush2.msra.mxu0 0.0
          %954 = vmatprep.subr.mxu0 0.0
          %955 = vmatpush2.msra.mxu0 0.0
          %956 = vmatprep.subr.mxu0 0.0
          %957 = vmatpush2.msra.mxu0 0.0
          %958 = vmatprep.subr.mxu0 0.0
          %959 = vmatpush2.msra.mxu0 0.0
          %960 = vmatprep.subr.mxu0 0.0
          %961 = vmatpush2.msra.mxu0 0.0
          %962 = vmatprep.subr.mxu0 0.0
          %963 = vmatpush2.msra.mxu0 0.0
          %964 = vmatprep.subr.mxu0 0.0
          %965 = vmatpush2.msra.mxu0 0.0
          %966 = vmatprep.subr.mxu0 0.0
          %967 = vmatpush2.msra.mxu0 0.0
          %968 = vmatprep.subr.mxu0 0.0
          %969 = vmatpush2.msra.mxu0 0.0
          %970 = vmatprep.subr.mxu0 0.0
          %971 = vmatpush2.msra.mxu0 0.0
          %972 = vmatprep.subr.mxu0 0.0
          %973 = vmatpush2.msra.mxu0 0.0
          %974 = vmatprep.subr.mxu0 0.0
          %975 = vmatpush2.msra.mxu0 0.0
          %976 = vmatprep.subr.mxu0 0.0
          %977 = vmatpush2.msra.mxu0 0.0
          %978 = vmatprep.mubr.f32.mxu0 0.0
          %979 = vmatmul.mubr.f32.gmra.mxu0 %v909
          %v980 = vpop.f32.mrf.mxu0
          %v981 = vadd.f32 %v906, %v980
          %v982 = vpop.f32.mrf.mxu0
          %983 = vmatprep.mubr.f32.mxu0 0.0
          %984 = vmatmul.mubr.f32.gmra.mxu0 %v912
          %v985 = vpop.f32.mrf.mxu0
          %v986 = vadd.f32 %v906, %v985
          %v987 = vpop.f32.mrf.mxu0
          %988 = vdwg.mxu0
          %v989 = vmax.f32 %v981, 0.0
          %v990 = vmax.f32 %v986, 0.0
          %s991 = scalar_lea.vmem [#allocation2], 408
          %992 = vst.msk [vmem:[%s991 + $0x1] sm:$0xff] %vm748, %v989
          %993 = vst.msk [vmem:[%s991 + $0x9] sm:$0xff] %vm748, %v990
        $region64: #{tpu_custom_call.1} parent=47 // pred_fallthru
          _
        // Predicated region
        $region65: #{tpu_custom_call.1} parent=47 // pred_check
          %p994 = pneg %p884
        $region66: #{tpu_custom_call.1} parent=47 // pred_check_branch
          %996 = sbr.rel (%p994) target = $region68
        $region67: #{tpu_custom_call.1} parent=47 // pred_region
          %s997 = scalar_lea.vmem [#allocation2], 408
          %998 = vst.msk [vmem:[%s997 + $0x1] sm:$0xff] %vm748, 0.0
          %999 = vst.msk [vmem:[%s997 + $0x9] sm:$0xff] %vm748, 0.0
        $region68: #{tpu_custom_call.1} parent=47 // pred_fallthru
          _
        %v1000 = vld [vmem:[#allocation2] sm:$0xff]
        %v1001 = vld [vmem:[#allocation2 + $0x8] sm:$0xff]
        %v1002 = vld [vmem:[#allocation2 + $0x18] sm:$0xff]
        %v1003 = vld [vmem:[#allocation2 + $0x20] sm:$0xff]
        %v1004 = vld [vmem:[#allocation2 + $0x30] sm:$0xff]
        %v1005 = vld [vmem:[#allocation2 + $0x38] sm:$0xff]
        %v1006 = vld [vmem:[#allocation2 + $0x48] sm:$0xff]
        %v1007 = vld [vmem:[#allocation2 + $0x50] sm:$0xff]
        %v1008 = vld [vmem:[#allocation2 + $0x60] sm:$0xff]
        %v1009 = vld [vmem:[#allocation2 + $0x68] sm:$0xff]
        %v1010 = vld [vmem:[#allocation2 + $0x78] sm:$0xff]
        %v1011 = vld [vmem:[#allocation2 + $0x80] sm:$0xff]
        %v1012 = vld [vmem:[#allocation2 + $0x90] sm:$0xff]
        %v1013 = vld [vmem:[#allocation2 + $0x98] sm:$0xff]
        %v1014 = vld [vmem:[#allocation2 + $0xa8] sm:$0xff]
        %v1015 = vld [vmem:[#allocation2 + $0xb0] sm:$0xff]
        %v1016 = vld [vmem:[#allocation2 + $0xc0] sm:$0xff]
        %v1017 = vld [vmem:[#allocation2 + $0xc8] sm:$0xff]
        %v1018 = vld [vmem:[#allocation2 + $0xd8] sm:$0xff]
        %v1019 = vld [vmem:[#allocation2 + $0xe0] sm:$0xff]
        %v1020 = vld [vmem:[#allocation2 + $0xf0] sm:$0xff]
        %v1021 = vld [vmem:[#allocation2 + $0xf8] sm:$0xff]
        %v1022 = vld [vmem:[#allocation2 + $0x108] sm:$0xff]
        %v1023 = vld [vmem:[#allocation2 + $0x110] sm:$0xff]
        %v1024 = vld [vmem:[#allocation2 + $0x120] sm:$0xff]
        %v1025 = vld [vmem:[#allocation2 + $0x128] sm:$0xff]
        %v1026 = vld [vmem:[#allocation2 + $0x138] sm:$0xff]
        %v1027 = vld [vmem:[#allocation2 + $0x140] sm:$0xff]
        %v1028 = vld [vmem:[#allocation2 + $0x150] sm:$0xff]
        %v1029 = vld [vmem:[#allocation2 + $0x158] sm:$0xff]
        %v1030 = vld [vmem:[#allocation2 + $0x168] sm:$0xff]
        %v1031 = vld [vmem:[#allocation2 + $0x170] sm:$0xff]
        %v1032 = vld [vmem:[%s2] sm:$0xf]
        %v1033 = vld [vmem:[#allocation2 + $0x1] sm:$0xff]
        %v1034 = vld [vmem:[#allocation2 + $0x9] sm:$0xff]
        %v1035 = vld [vmem:[#allocation2 + $0x19] sm:$0xff]
        %v1036 = vld [vmem:[#allocation2 + $0x21] sm:$0xff]
        %v1037 = vld [vmem:[#allocation2 + $0x31] sm:$0xff]
        %v1038 = vld [vmem:[#allocation2 + $0x39] sm:$0xff]
        %v1039 = vld [vmem:[#allocation2 + $0x49] sm:$0xff]
        %v1040 = vld [vmem:[#allocation2 + $0x51] sm:$0xff]
        %v1041 = vld [vmem:[#allocation2 + $0x61] sm:$0xff]
        %v1042 = vld [vmem:[#allocation2 + $0x69] sm:$0xff]
        %v1043 = vld [vmem:[#allocation2 + $0x79] sm:$0xff]
        %v1044 = vld [vmem:[#allocation2 + $0x81] sm:$0xff]
        %v1045 = vld [vmem:[#allocation2 + $0x91] sm:$0xff]
        %v1046 = vld [vmem:[#allocation2 + $0x99] sm:$0xff]
        %v1047 = vld [vmem:[#allocation2 + $0xa9] sm:$0xff]
        %v1048 = vld [vmem:[#allocation2 + $0xb1] sm:$0xff]
        %v1049 = vld [vmem:[#allocation2 + $0xc1] sm:$0xff]
        %v1050 = vld [vmem:[#allocation2 + $0xc9] sm:$0xff]
        %v1051 = vld [vmem:[#allocation2 + $0xd9] sm:$0xff]
        %v1052 = vld [vmem:[#allocation2 + $0xe1] sm:$0xff]
        %v1053 = vld [vmem:[#allocation2 + $0xf1] sm:$0xff]
        %v1054 = vld [vmem:[#allocation2 + $0xf9] sm:$0xff]
        %v1055 = vld [vmem:[#allocation2 + $0x109] sm:$0xff]
        %v1056 = vld [vmem:[#allocation2 + $0x111] sm:$0xff]
        %v1057 = vld [vmem:[#allocation2 + $0x121] sm:$0xff]
        %v1058 = vld [vmem:[#allocation2 + $0x129] sm:$0xff]
        %v1059 = vld [vmem:[#allocation2 + $0x139] sm:$0xff]
        %v1060 = vld [vmem:[#allocation2 + $0x141] sm:$0xff]
        %v1061 = vld [vmem:[#allocation2 + $0x151] sm:$0xff]
        %v1062 = vld [vmem:[#allocation2 + $0x159] sm:$0xff]
        %v1063 = vld [vmem:[#allocation2 + $0x169] sm:$0xff]
        %v1064 = vld [vmem:[#allocation2 + $0x171] sm:$0xff]
        %s1065 = scalar_lea.vmem %s2, 4
        %v1066 = vld [vmem:[%s1065] sm:$0xf]
        %v1068 = vsel %vm748, %v1033, 0
        %v1071 = vsel %vm748, %v1034, 0
        %v1074 = vsel %vm748, %v1035, 0
        %v1077 = vsel %vm748, %v1036, 0
        %v1080 = vsel %vm748, %v1037, 0
        %v1083 = vsel %vm748, %v1038, 0
        %v1086 = vsel %vm748, %v1039, 0
        %v1089 = vsel %vm748, %v1040, 0
        %v1092 = vsel %vm748, %v1041, 0
        %v1095 = vsel %vm748, %v1042, 0
        %v1098 = vsel %vm748, %v1043, 0
        %v1101 = vsel %vm748, %v1044, 0
        %v1104 = vsel %vm748, %v1045, 0
        %v1107 = vsel %vm748, %v1046, 0
        %v1110 = vsel %vm748, %v1047, 0
        %v1113 = vsel %vm748, %v1048, 0
        %v1116 = vsel %vm748, %v1049, 0
        %v1119 = vsel %vm748, %v1050, 0
        %v1122 = vsel %vm748, %v1051, 0
        %v1125 = vsel %vm748, %v1052, 0
        %v1128 = vsel %vm748, %v1053, 0
        %v1131 = vsel %vm748, %v1054, 0
        %v1134 = vsel %vm748, %v1055, 0
        %v1137 = vsel %vm748, %v1056, 0
        %v1140 = vsel %vm748, %v1057, 0
        %v1143 = vsel %vm748, %v1058, 0
        %v1146 = vsel %vm748, %v1059, 0
        %v1149 = vsel %vm748, %v1060, 0
        %v1152 = vsel %vm748, %v1061, 0
        %v1155 = vsel %vm748, %v1062, 0
        %v1158 = vsel %vm748, %v1063, 0
        %v1161 = vsel %vm748, %v1064, 0
        %vm1163 = vcmask 1043456
        %v1165 = vsel %vm1163, %v1066, 0
        %1167 = vmatprep.subr.mxu0 0.0
        %1168 = vmatpush1.msra.mxu0 0.0
        %1169 = vmatprep.subr.mxu0 0.0
        %1170 = vmatpush1.msra.mxu0 0.0
        %1171 = vmatprep.subr.mxu0 0.0
        %1172 = vmatpush1.msra.mxu0 0.0
        %1173 = vmatprep.subr.mxu0 0.0
        %1174 = vmatpush1.msra.mxu0 0.0
        %1175 = vmatprep.subr.mxu0 0.0
        %1176 = vmatpush1.msra.mxu0 0.0
        %1177 = vmatprep.subr.mxu0 0.0
        %1178 = vmatpush1.msra.mxu0 0.0
        %1179 = vmatprep.subr.mxu0 0.0
        %1180 = vmatpush1.msra.mxu0 0.0
        %1181 = vmatprep.subr.mxu0 0.0
        %1182 = vmatpush1.msra.mxu0 0.0
        %1183 = vmatprep.subr.mxu0 0.0
        %1184 = vmatpush1.msra.mxu0 0.0
        %1185 = vmatprep.subr.mxu0 0.0
        %1186 = vmatpush1.msra.mxu0 0.0
        %1187 = vmatprep.subr.mxu0 0.0
        %1188 = vmatpush1.msra.mxu0 0.0
        %1189 = vmatprep.subr.mxu0 0.0
        %1190 = vmatpush1.msra.mxu0 0.0
        %1191 = vmatprep.subr.mxu0 0.0
        %1192 = vmatpush1.msra.mxu0 0.0
        %1193 = vmatprep.subr.mxu0 0.0
        %1194 = vmatpush1.msra.mxu0 0.0
        %1195 = vmatprep.subr.mxu0 0.0
        %1196 = vmatpush1.msra.mxu0 0.0
        %1197 = vmatprep.subr.mxu0 0.0
        %1198 = vmatpush1.msra.mxu0 %v1165
        %1199 = vmatprep.subr.mxu0 0.0
        %1200 = vmatpush2.msra.mxu0 0.0
        %1201 = vmatprep.subr.mxu0 0.0
        %1202 = vmatpush2.msra.mxu0 0.0
        %1203 = vmatprep.subr.mxu0 0.0
        %1204 = vmatpush2.msra.mxu0 0.0
        %1205 = vmatprep.subr.mxu0 0.0
        %1206 = vmatpush2.msra.mxu0 0.0
        %1207 = vmatprep.subr.mxu0 0.0
        %1208 = vmatpush2.msra.mxu0 0.0
        %1209 = vmatprep.subr.mxu0 0.0
        %1210 = vmatpush2.msra.mxu0 0.0
        %1211 = vmatprep.subr.mxu0 0.0
        %1212 = vmatpush2.msra.mxu0 0.0
        %1213 = vmatprep.subr.mxu0 0.0
        %1214 = vmatpush2.msra.mxu0 0.0
        %1215 = vmatprep.subr.mxu0 0.0
        %1216 = vmatpush2.msra.mxu0 0.0
        %1217 = vmatprep.subr.mxu0 0.0
        %1218 = vmatpush2.msra.mxu0 0.0
        %1219 = vmatprep.subr.mxu0 0.0
        %1220 = vmatpush2.msra.mxu0 0.0
        %1221 = vmatprep.subr.mxu0 0.0
        %1222 = vmatpush2.msra.mxu0 0.0
        %1223 = vmatprep.subr.mxu0 0.0
        %1224 = vmatpush2.msra.mxu0 0.0
        %1225 = vmatprep.subr.mxu0 0.0
        %1226 = vmatpush2.msra.mxu0 0.0
        %1227 = vmatprep.subr.mxu0 0.0
        %1228 = vmatpush2.msra.mxu0 0.0
        %1229 = vmatprep.subr.mxu0 0.0
        %1230 = vmatpush2.msra.mxu0 0.0
        %1231 = vmatprep.mubr.f32.mxu0 0.0
        %1232 = vmatmul.mubr.f32.gmra.mxu0 %v1068
        %v1233 = vpop.f32.mrf.mxu0
        %v1234 = vadd.f32 0.0, %v1233
        %v1235 = vpop.f32.mrf.mxu0
        %1236 = vmatprep.mubr.f32.mxu0 0.0
        %1237 = vmatmul.mubr.f32.gmra.mxu0 %v1071
        %v1238 = vpop.f32.mrf.mxu0
        %v1239 = vadd.f32 0.0, %v1238
        %v1240 = vpop.f32.mrf.mxu0
        %1241 = vmatprep.mubr.f32.mxu0 0.0
        %1242 = vmatmul.mubr.f32.gmra.mxu0 %v1074
        %v1243 = vpop.f32.mrf.mxu0
        %v1244 = vadd.f32 0.0, %v1243
        %v1245 = vpop.f32.mrf.mxu0
        %1246 = vmatprep.mubr.f32.mxu0 0.0
        %1247 = vmatmul.mubr.f32.gmra.mxu0 %v1077
        %v1248 = vpop.f32.mrf.mxu0
        %v1249 = vadd.f32 0.0, %v1248
        %v1250 = vpop.f32.mrf.mxu0
        %1251 = vmatprep.mubr.f32.mxu0 0.0
        %1252 = vmatmul.mubr.f32.gmra.mxu0 %v1080
        %v1253 = vpop.f32.mrf.mxu0
        %v1254 = vadd.f32 0.0, %v1253
        %v1255 = vpop.f32.mrf.mxu0
        %1256 = vmatprep.mubr.f32.mxu0 0.0
        %1257 = vmatmul.mubr.f32.gmra.mxu0 %v1083
        %v1258 = vpop.f32.mrf.mxu0
        %v1259 = vadd.f32 0.0, %v1258
        %v1260 = vpop.f32.mrf.mxu0
        %1261 = vmatprep.mubr.f32.mxu0 0.0
        %1262 = vmatmul.mubr.f32.gmra.mxu0 %v1086
        %v1263 = vpop.f32.mrf.mxu0
        %v1264 = vadd.f32 0.0, %v1263
        %v1265 = vpop.f32.mrf.mxu0
        %1266 = vmatprep.mubr.f32.mxu0 0.0
        %1267 = vmatmul.mubr.f32.gmra.mxu0 %v1089
        %v1268 = vpop.f32.mrf.mxu0
        %v1269 = vadd.f32 0.0, %v1268
        %v1270 = vpop.f32.mrf.mxu0
        %1271 = vmatprep.mubr.f32.mxu0 0.0
        %1272 = vmatmul.mubr.f32.gmra.mxu0 %v1092
        %v1273 = vpop.f32.mrf.mxu0
        %v1274 = vadd.f32 0.0, %v1273
        %v1275 = vpop.f32.mrf.mxu0
        %1276 = vmatprep.mubr.f32.mxu0 0.0
        %1277 = vmatmul.mubr.f32.gmra.mxu0 %v1095
        %v1278 = vpop.f32.mrf.mxu0
        %v1279 = vadd.f32 0.0, %v1278
        %v1280 = vpop.f32.mrf.mxu0
        %1281 = vmatprep.mubr.f32.mxu0 0.0
        %1282 = vmatmul.mubr.f32.gmra.mxu0 %v1098
        %v1283 = vpop.f32.mrf.mxu0
        %v1284 = vadd.f32 0.0, %v1283
        %v1285 = vpop.f32.mrf.mxu0
        %1286 = vmatprep.mubr.f32.mxu0 0.0
        %1287 = vmatmul.mubr.f32.gmra.mxu0 %v1101
        %v1288 = vpop.f32.mrf.mxu0
        %v1289 = vadd.f32 0.0, %v1288
        %v1290 = vpop.f32.mrf.mxu0
        %1291 = vmatprep.mubr.f32.mxu0 0.0
        %1292 = vmatmul.mubr.f32.gmra.mxu0 %v1104
        %v1293 = vpop.f32.mrf.mxu0
        %v1294 = vadd.f32 0.0, %v1293
        %v1295 = vpop.f32.mrf.mxu0
        %1296 = vmatprep.mubr.f32.mxu0 0.0
        %1297 = vmatmul.mubr.f32.gmra.mxu0 %v1107
        %v1298 = vpop.f32.mrf.mxu0
        %v1299 = vadd.f32 0.0, %v1298
        %v1300 = vpop.f32.mrf.mxu0
        %1301 = vmatprep.mubr.f32.mxu0 0.0
        %1302 = vmatmul.mubr.f32.gmra.mxu0 %v1110
        %v1303 = vpop.f32.mrf.mxu0
        %v1304 = vadd.f32 0.0, %v1303
        %v1305 = vpop.f32.mrf.mxu0
        %1306 = vmatprep.mubr.f32.mxu0 0.0
        %1307 = vmatmul.mubr.f32.gmra.mxu0 %v1113
        %v1308 = vpop.f32.mrf.mxu0
        %v1309 = vadd.f32 0.0, %v1308
        %v1310 = vpop.f32.mrf.mxu0
        %1311 = vmatprep.mubr.f32.mxu0 0.0
        %1312 = vmatmul.mubr.f32.gmra.mxu0 %v1116
        %v1313 = vpop.f32.mrf.mxu0
        %v1314 = vadd.f32 0.0, %v1313
        %v1315 = vpop.f32.mrf.mxu0
        %1316 = vmatprep.mubr.f32.mxu0 0.0
        %1317 = vmatmul.mubr.f32.gmra.mxu0 %v1119
        %v1318 = vpop.f32.mrf.mxu0
        %v1319 = vadd.f32 0.0, %v1318
        %v1320 = vpop.f32.mrf.mxu0
        %1321 = vmatprep.mubr.f32.mxu0 0.0
        %1322 = vmatmul.mubr.f32.gmra.mxu0 %v1122
        %v1323 = vpop.f32.mrf.mxu0
        %v1324 = vadd.f32 0.0, %v1323
        %v1325 = vpop.f32.mrf.mxu0
        %1326 = vmatprep.mubr.f32.mxu0 0.0
        %1327 = vmatmul.mubr.f32.gmra.mxu0 %v1125
        %v1328 = vpop.f32.mrf.mxu0
        %v1329 = vadd.f32 0.0, %v1328
        %v1330 = vpop.f32.mrf.mxu0
        %1331 = vmatprep.mubr.f32.mxu0 0.0
        %1332 = vmatmul.mubr.f32.gmra.mxu0 %v1128
        %v1333 = vpop.f32.mrf.mxu0
        %v1334 = vadd.f32 0.0, %v1333
        %v1335 = vpop.f32.mrf.mxu0
        %1336 = vmatprep.mubr.f32.mxu0 0.0
        %1337 = vmatmul.mubr.f32.gmra.mxu0 %v1131
        %v1338 = vpop.f32.mrf.mxu0
        %v1339 = vadd.f32 0.0, %v1338
        %v1340 = vpop.f32.mrf.mxu0
        %1341 = vmatprep.mubr.f32.mxu0 0.0
        %1342 = vmatmul.mubr.f32.gmra.mxu0 %v1134
        %v1343 = vpop.f32.mrf.mxu0
        %v1344 = vadd.f32 0.0, %v1343
        %v1345 = vpop.f32.mrf.mxu0
        %1346 = vmatprep.mubr.f32.mxu0 0.0
        %1347 = vmatmul.mubr.f32.gmra.mxu0 %v1137
        %v1348 = vpop.f32.mrf.mxu0
        %v1349 = vadd.f32 0.0, %v1348
        %v1350 = vpop.f32.mrf.mxu0
        %1351 = vmatprep.mubr.f32.mxu0 0.0
        %1352 = vmatmul.mubr.f32.gmra.mxu0 %v1140
        %v1353 = vpop.f32.mrf.mxu0
        %v1354 = vadd.f32 0.0, %v1353
        %v1355 = vpop.f32.mrf.mxu0
        %1356 = vmatprep.mubr.f32.mxu0 0.0
        %1357 = vmatmul.mubr.f32.gmra.mxu0 %v1143
        %v1358 = vpop.f32.mrf.mxu0
        %v1359 = vadd.f32 0.0, %v1358
        %v1360 = vpop.f32.mrf.mxu0
        %1361 = vmatprep.mubr.f32.mxu0 0.0
        %1362 = vmatmul.mubr.f32.gmra.mxu0 %v1146
        %v1363 = vpop.f32.mrf.mxu0
        %v1364 = vadd.f32 0.0, %v1363
        %v1365 = vpop.f32.mrf.mxu0
        %1366 = vmatprep.mubr.f32.mxu0 0.0
        %1367 = vmatmul.mubr.f32.gmra.mxu0 %v1149
        %v1368 = vpop.f32.mrf.mxu0
        %v1369 = vadd.f32 0.0, %v1368
        %v1370 = vpop.f32.mrf.mxu0
        %1371 = vmatprep.mubr.f32.mxu0 0.0
        %1372 = vmatmul.mubr.f32.gmra.mxu0 %v1152
        %v1373 = vpop.f32.mrf.mxu0
        %v1374 = vadd.f32 0.0, %v1373
        %v1375 = vpop.f32.mrf.mxu0
        %1376 = vmatprep.mubr.f32.mxu0 0.0
        %1377 = vmatmul.mubr.f32.gmra.mxu0 %v1155
        %v1378 = vpop.f32.mrf.mxu0
        %v1379 = vadd.f32 0.0, %v1378
        %v1380 = vpop.f32.mrf.mxu0
        %1381 = vmatprep.mubr.f32.mxu0 0.0
        %1382 = vmatmul.mubr.f32.gmra.mxu0 %v1158
        %v1383 = vpop.f32.mrf.mxu0
        %v1384 = vadd.f32 0.0, %v1383
        %v1385 = vpop.f32.mrf.mxu0
        %1386 = vmatprep.mubr.f32.mxu0 0.0
        %1387 = vmatmul.mubr.f32.gmra.mxu0 %v1161
        %v1388 = vpop.f32.mrf.mxu0
        %v1389 = vadd.f32 0.0, %v1388
        %v1390 = vpop.f32.mrf.mxu0
        %1391 = vdwg.mxu0
        %v1393 = vsel %vm748, %v1000, 0
        %v1396 = vsel %vm748, %v1001, 0
        %v1399 = vsel %vm748, %v1002, 0
        %v1402 = vsel %vm748, %v1003, 0
        %v1405 = vsel %vm748, %v1004, 0
        %v1408 = vsel %vm748, %v1005, 0
        %v1411 = vsel %vm748, %v1006, 0
        %v1414 = vsel %vm748, %v1007, 0
        %v1417 = vsel %vm748, %v1008, 0
        %v1420 = vsel %vm748, %v1009, 0
        %v1423 = vsel %vm748, %v1010, 0
        %v1426 = vsel %vm748, %v1011, 0
        %v1429 = vsel %vm748, %v1012, 0
        %v1432 = vsel %vm748, %v1013, 0
        %v1435 = vsel %vm748, %v1014, 0
        %v1438 = vsel %vm748, %v1015, 0
        %v1441 = vsel %vm748, %v1016, 0
        %v1444 = vsel %vm748, %v1017, 0
        %v1447 = vsel %vm748, %v1018, 0
        %v1450 = vsel %vm748, %v1019, 0
        %v1453 = vsel %vm748, %v1020, 0
        %v1456 = vsel %vm748, %v1021, 0
        %v1459 = vsel %vm748, %v1022, 0
        %v1462 = vsel %vm748, %v1023, 0
        %v1465 = vsel %vm748, %v1024, 0
        %v1468 = vsel %vm748, %v1025, 0
        %v1471 = vsel %vm748, %v1026, 0
        %v1474 = vsel %vm748, %v1027, 0
        %v1477 = vsel %vm748, %v1028, 0
        %v1480 = vsel %vm748, %v1029, 0
        %v1483 = vsel %vm748, %v1030, 0
        %v1486 = vsel %vm748, %v1031, 0
        %v1489 = vsel %vm1163, %v1032, 0
        %1491 = vmatprep.subr.mxu0 0.0
        %1492 = vmatpush1.msra.mxu0 0.0
        %1493 = vmatprep.subr.mxu0 0.0
        %1494 = vmatpush1.msra.mxu0 0.0
        %1495 = vmatprep.subr.mxu0 0.0
        %1496 = vmatpush1.msra.mxu0 0.0
        %1497 = vmatprep.subr.mxu0 0.0
        %1498 = vmatpush1.msra.mxu0 0.0
        %1499 = vmatprep.subr.mxu0 0.0
        %1500 = vmatpush1.msra.mxu0 0.0
        %1501 = vmatprep.subr.mxu0 0.0
        %1502 = vmatpush1.msra.mxu0 0.0
        %1503 = vmatprep.subr.mxu0 0.0
        %1504 = vmatpush1.msra.mxu0 0.0
        %1505 = vmatprep.subr.mxu0 0.0
        %1506 = vmatpush1.msra.mxu0 0.0
        %1507 = vmatprep.subr.mxu0 0.0
        %1508 = vmatpush1.msra.mxu0 0.0
        %1509 = vmatprep.subr.mxu0 0.0
        %1510 = vmatpush1.msra.mxu0 0.0
        %1511 = vmatprep.subr.mxu0 0.0
        %1512 = vmatpush1.msra.mxu0 0.0
        %1513 = vmatprep.subr.mxu0 0.0
        %1514 = vmatpush1.msra.mxu0 0.0
        %1515 = vmatprep.subr.mxu0 0.0
        %1516 = vmatpush1.msra.mxu0 0.0
        %1517 = vmatprep.subr.mxu0 0.0
        %1518 = vmatpush1.msra.mxu0 0.0
        %1519 = vmatprep.subr.mxu0 0.0
        %1520 = vmatpush1.msra.mxu0 0.0
        %1521 = vmatprep.subr.mxu0 0.0
        %1522 = vmatpush1.msra.mxu0 %v1489
        %1523 = vmatprep.subr.mxu0 0.0
        %1524 = vmatpush2.msra.mxu0 0.0
        %1525 = vmatprep.subr.mxu0 0.0
        %1526 = vmatpush2.msra.mxu0 0.0
        %1527 = vmatprep.subr.mxu0 0.0
        %1528 = vmatpush2.msra.mxu0 0.0
        %1529 = vmatprep.subr.mxu0 0.0
        %1530 = vmatpush2.msra.mxu0 0.0
        %1531 = vmatprep.subr.mxu0 0.0
        %1532 = vmatpush2.msra.mxu0 0.0
        %1533 = vmatprep.subr.mxu0 0.0
        %1534 = vmatpush2.msra.mxu0 0.0
        %1535 = vmatprep.subr.mxu0 0.0
        %1536 = vmatpush2.msra.mxu0 0.0
        %1537 = vmatprep.subr.mxu0 0.0
        %1538 = vmatpush2.msra.mxu0 0.0
        %1539 = vmatprep.subr.mxu0 0.0
        %1540 = vmatpush2.msra.mxu0 0.0
        %1541 = vmatprep.subr.mxu0 0.0
        %1542 = vmatpush2.msra.mxu0 0.0
        %1543 = vmatprep.subr.mxu0 0.0
        %1544 = vmatpush2.msra.mxu0 0.0
        %1545 = vmatprep.subr.mxu0 0.0
        %1546 = vmatpush2.msra.mxu0 0.0
        %1547 = vmatprep.subr.mxu0 0.0
        %1548 = vmatpush2.msra.mxu0 0.0
        %1549 = vmatprep.subr.mxu0 0.0
        %1550 = vmatpush2.msra.mxu0 0.0
        %1551 = vmatprep.subr.mxu0 0.0
        %1552 = vmatpush2.msra.mxu0 0.0
        %1553 = vmatprep.subr.mxu0 0.0
        %1554 = vmatpush2.msra.mxu0 0.0
        %1555 = vmatprep.mubr.f32.mxu0 0.0
        %1556 = vmatmul.mubr.f32.gmra.mxu0 %v1393
        %v1557 = vpop.f32.mrf.mxu0
        %v1558 = vadd.f32 %v1234, %v1557
        %v1559 = vpop.f32.mrf.mxu0
        %1560 = vmatprep.mubr.f32.mxu0 0.0
        %1561 = vmatmul.mubr.f32.gmra.mxu0 %v1396
        %v1562 = vpop.f32.mrf.mxu0
        %v1563 = vadd.f32 %v1239, %v1562
        %v1564 = vpop.f32.mrf.mxu0
        %1565 = vmatprep.mubr.f32.mxu0 0.0
        %1566 = vmatmul.mubr.f32.gmra.mxu0 %v1399
        %v1567 = vpop.f32.mrf.mxu0
        %v1568 = vadd.f32 %v1244, %v1567
        %v1569 = vpop.f32.mrf.mxu0
        %1570 = vmatprep.mubr.f32.mxu0 0.0
        %1571 = vmatmul.mubr.f32.gmra.mxu0 %v1402
        %v1572 = vpop.f32.mrf.mxu0
        %v1573 = vadd.f32 %v1249, %v1572
        %v1574 = vpop.f32.mrf.mxu0
        %1575 = vmatprep.mubr.f32.mxu0 0.0
        %1576 = vmatmul.mubr.f32.gmra.mxu0 %v1405
        %v1577 = vpop.f32.mrf.mxu0
        %v1578 = vadd.f32 %v1254, %v1577
        %v1579 = vpop.f32.mrf.mxu0
        %1580 = vmatprep.mubr.f32.mxu0 0.0
        %1581 = vmatmul.mubr.f32.gmra.mxu0 %v1408
        %v1582 = vpop.f32.mrf.mxu0
        %v1583 = vadd.f32 %v1259, %v1582
        %v1584 = vpop.f32.mrf.mxu0
        %1585 = vmatprep.mubr.f32.mxu0 0.0
        %1586 = vmatmul.mubr.f32.gmra.mxu0 %v1411
        %v1587 = vpop.f32.mrf.mxu0
        %v1588 = vadd.f32 %v1264, %v1587
        %v1589 = vpop.f32.mrf.mxu0
        %1590 = vmatprep.mubr.f32.mxu0 0.0
        %1591 = vmatmul.mubr.f32.gmra.mxu0 %v1414
        %v1592 = vpop.f32.mrf.mxu0
        %v1593 = vadd.f32 %v1269, %v1592
        %v1594 = vpop.f32.mrf.mxu0
        %1595 = vmatprep.mubr.f32.mxu0 0.0
        %1596 = vmatmul.mubr.f32.gmra.mxu0 %v1417
        %v1597 = vpop.f32.mrf.mxu0
        %v1598 = vadd.f32 %v1274, %v1597
        %v1599 = vpop.f32.mrf.mxu0
        %1600 = vmatprep.mubr.f32.mxu0 0.0
        %1601 = vmatmul.mubr.f32.gmra.mxu0 %v1420
        %v1602 = vpop.f32.mrf.mxu0
        %v1603 = vadd.f32 %v1279, %v1602
        %v1604 = vpop.f32.mrf.mxu0
        %1605 = vmatprep.mubr.f32.mxu0 0.0
        %1606 = vmatmul.mubr.f32.gmra.mxu0 %v1423
        %v1607 = vpop.f32.mrf.mxu0
        %v1608 = vadd.f32 %v1284, %v1607
        %v1609 = vpop.f32.mrf.mxu0
        %1610 = vmatprep.mubr.f32.mxu0 0.0
        %1611 = vmatmul.mubr.f32.gmra.mxu0 %v1426
        %v1612 = vpop.f32.mrf.mxu0
        %v1613 = vadd.f32 %v1289, %v1612
        %v1614 = vpop.f32.mrf.mxu0
        %1615 = vmatprep.mubr.f32.mxu0 0.0
        %1616 = vmatmul.mubr.f32.gmra.mxu0 %v1429
        %v1617 = vpop.f32.mrf.mxu0
        %v1618 = vadd.f32 %v1294, %v1617
        %v1619 = vpop.f32.mrf.mxu0
        %1620 = vmatprep.mubr.f32.mxu0 0.0
        %1621 = vmatmul.mubr.f32.gmra.mxu0 %v1432
        %v1622 = vpop.f32.mrf.mxu0
        %v1623 = vadd.f32 %v1299, %v1622
        %v1624 = vpop.f32.mrf.mxu0
        %1625 = vmatprep.mubr.f32.mxu0 0.0
        %1626 = vmatmul.mubr.f32.gmra.mxu0 %v1435
        %v1627 = vpop.f32.mrf.mxu0
        %v1628 = vadd.f32 %v1304, %v1627
        %v1629 = vpop.f32.mrf.mxu0
        %1630 = vmatprep.mubr.f32.mxu0 0.0
        %1631 = vmatmul.mubr.f32.gmra.mxu0 %v1438
        %v1632 = vpop.f32.mrf.mxu0
        %v1633 = vadd.f32 %v1309, %v1632
        %v1634 = vpop.f32.mrf.mxu0
        %1635 = vmatprep.mubr.f32.mxu0 0.0
        %1636 = vmatmul.mubr.f32.gmra.mxu0 %v1441
        %v1637 = vpop.f32.mrf.mxu0
        %v1638 = vadd.f32 %v1314, %v1637
        %v1639 = vpop.f32.mrf.mxu0
        %1640 = vmatprep.mubr.f32.mxu0 0.0
        %1641 = vmatmul.mubr.f32.gmra.mxu0 %v1444
        %v1642 = vpop.f32.mrf.mxu0
        %v1643 = vadd.f32 %v1319, %v1642
        %v1644 = vpop.f32.mrf.mxu0
        %1645 = vmatprep.mubr.f32.mxu0 0.0
        %1646 = vmatmul.mubr.f32.gmra.mxu0 %v1447
        %v1647 = vpop.f32.mrf.mxu0
        %v1648 = vadd.f32 %v1324, %v1647
        %v1649 = vpop.f32.mrf.mxu0
        %1650 = vmatprep.mubr.f32.mxu0 0.0
        %1651 = vmatmul.mubr.f32.gmra.mxu0 %v1450
        %v1652 = vpop.f32.mrf.mxu0
        %v1653 = vadd.f32 %v1329, %v1652
        %v1654 = vpop.f32.mrf.mxu0
        %1655 = vmatprep.mubr.f32.mxu0 0.0
        %1656 = vmatmul.mubr.f32.gmra.mxu0 %v1453
        %v1657 = vpop.f32.mrf.mxu0
        %v1658 = vadd.f32 %v1334, %v1657
        %v1659 = vpop.f32.mrf.mxu0
        %1660 = vmatprep.mubr.f32.mxu0 0.0
        %1661 = vmatmul.mubr.f32.gmra.mxu0 %v1456
        %v1662 = vpop.f32.mrf.mxu0
        %v1663 = vadd.f32 %v1339, %v1662
        %v1664 = vpop.f32.mrf.mxu0
        %1665 = vmatprep.mubr.f32.mxu0 0.0
        %1666 = vmatmul.mubr.f32.gmra.mxu0 %v1459
        %v1667 = vpop.f32.mrf.mxu0
        %v1668 = vadd.f32 %v1344, %v1667
        %v1669 = vpop.f32.mrf.mxu0
        %1670 = vmatprep.mubr.f32.mxu0 0.0
        %1671 = vmatmul.mubr.f32.gmra.mxu0 %v1462
        %v1672 = vpop.f32.mrf.mxu0
        %v1673 = vadd.f32 %v1349, %v1672
        %v1674 = vpop.f32.mrf.mxu0
        %1675 = vmatprep.mubr.f32.mxu0 0.0
        %1676 = vmatmul.mubr.f32.gmra.mxu0 %v1465
        %v1677 = vpop.f32.mrf.mxu0
        %v1678 = vadd.f32 %v1354, %v1677
        %v1679 = vpop.f32.mrf.mxu0
        %1680 = vmatprep.mubr.f32.mxu0 0.0
        %1681 = vmatmul.mubr.f32.gmra.mxu0 %v1468
        %v1682 = vpop.f32.mrf.mxu0
        %v1683 = vadd.f32 %v1359, %v1682
        %v1684 = vpop.f32.mrf.mxu0
        %1685 = vmatprep.mubr.f32.mxu0 0.0
        %1686 = vmatmul.mubr.f32.gmra.mxu0 %v1471
        %v1687 = vpop.f32.mrf.mxu0
        %v1688 = vadd.f32 %v1364, %v1687
        %v1689 = vpop.f32.mrf.mxu0
        %1690 = vmatprep.mubr.f32.mxu0 0.0
        %1691 = vmatmul.mubr.f32.gmra.mxu0 %v1474
        %v1692 = vpop.f32.mrf.mxu0
        %v1693 = vadd.f32 %v1369, %v1692
        %v1694 = vpop.f32.mrf.mxu0
        %1695 = vmatprep.mubr.f32.mxu0 0.0
        %1696 = vmatmul.mubr.f32.gmra.mxu0 %v1477
        %v1697 = vpop.f32.mrf.mxu0
        %v1698 = vadd.f32 %v1374, %v1697
        %v1699 = vpop.f32.mrf.mxu0
        %1700 = vmatprep.mubr.f32.mxu0 0.0
        %1701 = vmatmul.mubr.f32.gmra.mxu0 %v1480
        %v1702 = vpop.f32.mrf.mxu0
        %v1703 = vadd.f32 %v1379, %v1702
        %v1704 = vpop.f32.mrf.mxu0
        %1705 = vmatprep.mubr.f32.mxu0 0.0
        %1706 = vmatmul.mubr.f32.gmra.mxu0 %v1483
        %v1707 = vpop.f32.mrf.mxu0
        %v1708 = vadd.f32 %v1384, %v1707
        %v1709 = vpop.f32.mrf.mxu0
        %1710 = vmatprep.mubr.f32.mxu0 0.0
        %1711 = vmatmul.mubr.f32.gmra.mxu0 %v1486
        %v1712 = vpop.f32.mrf.mxu0
        %v1713 = vadd.f32 %v1389, %v1712
        %v1714 = vpop.f32.mrf.mxu0
        %1715 = vdwg.mxu0
        %v1716 = vld [vmem:[#allocation2 + $0x2] sm:$0xff]
        %v1717 = vld [vmem:[#allocation2 + $0xa] sm:$0xff]
        %v1718 = vld [vmem:[#allocation2 + $0x1a] sm:$0xff]
        %v1719 = vld [vmem:[#allocation2 + $0x22] sm:$0xff]
        %v1720 = vld [vmem:[#allocation2 + $0x32] sm:$0xff]
        %v1721 = vld [vmem:[#allocation2 + $0x3a] sm:$0xff]
        %v1722 = vld [vmem:[#allocation2 + $0x4a] sm:$0xff]
        %v1723 = vld [vmem:[#allocation2 + $0x52] sm:$0xff]
        %v1724 = vld [vmem:[#allocation2 + $0x62] sm:$0xff]
        %v1725 = vld [vmem:[#allocation2 + $0x6a] sm:$0xff]
        %v1726 = vld [vmem:[#allocation2 + $0x7a] sm:$0xff]
        %v1727 = vld [vmem:[#allocation2 + $0x82] sm:$0xff]
        %v1728 = vld [vmem:[#allocation2 + $0x92] sm:$0xff]
        %v1729 = vld [vmem:[#allocation2 + $0x9a] sm:$0xff]
        %v1730 = vld [vmem:[#allocation2 + $0xaa] sm:$0xff]
        %v1731 = vld [vmem:[#allocation2 + $0xb2] sm:$0xff]
        %v1732 = vld [vmem:[#allocation2 + $0xc2] sm:$0xff]
        %v1733 = vld [vmem:[#allocation2 + $0xca] sm:$0xff]
        %v1734 = vld [vmem:[#allocation2 + $0xda] sm:$0xff]
        %v1735 = vld [vmem:[#allocation2 + $0xe2] sm:$0xff]
        %v1736 = vld [vmem:[#allocation2 + $0xf2] sm:$0xff]
        %v1737 = vld [vmem:[#allocation2 + $0xfa] sm:$0xff]
        %v1738 = vld [vmem:[#allocation2 + $0x10a] sm:$0xff]
        %v1739 = vld [vmem:[#allocation2 + $0x112] sm:$0xff]
        %v1740 = vld [vmem:[#allocation2 + $0x122] sm:$0xff]
        %v1741 = vld [vmem:[#allocation2 + $0x12a] sm:$0xff]
        %v1742 = vld [vmem:[#allocation2 + $0x13a] sm:$0xff]
        %v1743 = vld [vmem:[#allocation2 + $0x142] sm:$0xff]
        %v1744 = vld [vmem:[#allocation2 + $0x152] sm:$0xff]
        %v1745 = vld [vmem:[#allocation2 + $0x15a] sm:$0xff]
        %v1746 = vld [vmem:[#allocation2 + $0x16a] sm:$0xff]
        %v1747 = vld [vmem:[#allocation2 + $0x172] sm:$0xff]
        %s1748 = scalar_lea.vmem %s2, 8
        %v1749 = vld [vmem:[%s1748] sm:$0xf]
        %v1751 = vsel %vm748, %v1716, 0
        %v1754 = vsel %vm748, %v1717, 0
        %v1757 = vsel %vm748, %v1718, 0
        %v1760 = vsel %vm748, %v1719, 0
        %v1763 = vsel %vm748, %v1720, 0
        %v1766 = vsel %vm748, %v1721, 0
        %v1769 = vsel %vm748, %v1722, 0
        %v1772 = vsel %vm748, %v1723, 0
        %v1775 = vsel %vm748, %v1724, 0
        %v1778 = vsel %vm748, %v1725, 0
        %v1781 = vsel %vm748, %v1726, 0
        %v1784 = vsel %vm748, %v1727, 0
        %v1787 = vsel %vm748, %v1728, 0
        %v1790 = vsel %vm748, %v1729, 0
        %v1793 = vsel %vm748, %v1730, 0
        %v1796 = vsel %vm748, %v1731, 0
        %v1799 = vsel %vm748, %v1732, 0
        %v1802 = vsel %vm748, %v1733, 0
        %v1805 = vsel %vm748, %v1734, 0
        %v1808 = vsel %vm748, %v1735, 0
        %v1811 = vsel %vm748, %v1736, 0
        %v1814 = vsel %vm748, %v1737, 0
        %v1817 = vsel %vm748, %v1738, 0
        %v1820 = vsel %vm748, %v1739, 0
        %v1823 = vsel %vm748, %v1740, 0
        %v1826 = vsel %vm748, %v1741, 0
        %v1829 = vsel %vm748, %v1742, 0
        %v1832 = vsel %vm748, %v1743, 0
        %v1835 = vsel %vm748, %v1744, 0
        %v1838 = vsel %vm748, %v1745, 0
        %v1841 = vsel %vm748, %v1746, 0
        %v1844 = vsel %vm748, %v1747, 0
        %v1847 = vsel %vm1163, %v1749, 0
        %1849 = vmatprep.subr.mxu0 0.0
        %1850 = vmatpush1.msra.mxu0 0.0
        %1851 = vmatprep.subr.mxu0 0.0
        %1852 = vmatpush1.msra.mxu0 0.0
        %1853 = vmatprep.subr.mxu0 0.0
        %1854 = vmatpush1.msra.mxu0 0.0
        %1855 = vmatprep.subr.mxu0 0.0
        %1856 = vmatpush1.msra.mxu0 0.0
        %1857 = vmatprep.subr.mxu0 0.0
        %1858 = vmatpush1.msra.mxu0 0.0
        %1859 = vmatprep.subr.mxu0 0.0
        %1860 = vmatpush1.msra.mxu0 0.0
        %1861 = vmatprep.subr.mxu0 0.0
        %1862 = vmatpush1.msra.mxu0 0.0
        %1863 = vmatprep.subr.mxu0 0.0
        %1864 = vmatpush1.msra.mxu0 0.0
        %1865 = vmatprep.subr.mxu0 0.0
        %1866 = vmatpush1.msra.mxu0 0.0
        %1867 = vmatprep.subr.mxu0 0.0
        %1868 = vmatpush1.msra.mxu0 0.0
        %1869 = vmatprep.subr.mxu0 0.0
        %1870 = vmatpush1.msra.mxu0 0.0
        %1871 = vmatprep.subr.mxu0 0.0
        %1872 = vmatpush1.msra.mxu0 0.0
        %1873 = vmatprep.subr.mxu0 0.0
        %1874 = vmatpush1.msra.mxu0 0.0
        %1875 = vmatprep.subr.mxu0 0.0
        %1876 = vmatpush1.msra.mxu0 0.0
        %1877 = vmatprep.subr.mxu0 0.0
        %1878 = vmatpush1.msra.mxu0 0.0
        %1879 = vmatprep.subr.mxu0 0.0
        %1880 = vmatpush1.msra.mxu0 %v1847
        %1881 = vmatprep.subr.mxu0 0.0
        %1882 = vmatpush2.msra.mxu0 0.0
        %1883 = vmatprep.subr.mxu0 0.0
        %1884 = vmatpush2.msra.mxu0 0.0
        %1885 = vmatprep.subr.mxu0 0.0
        %1886 = vmatpush2.msra.mxu0 0.0
        %1887 = vmatprep.subr.mxu0 0.0
        %1888 = vmatpush2.msra.mxu0 0.0
        %1889 = vmatprep.subr.mxu0 0.0
        %1890 = vmatpush2.msra.mxu0 0.0
        %1891 = vmatprep.subr.mxu0 0.0
        %1892 = vmatpush2.msra.mxu0 0.0
        %1893 = vmatprep.subr.mxu0 0.0
        %1894 = vmatpush2.msra.mxu0 0.0
        %1895 = vmatprep.subr.mxu0 0.0
        %1896 = vmatpush2.msra.mxu0 0.0
        %1897 = vmatprep.subr.mxu0 0.0
        %1898 = vmatpush2.msra.mxu0 0.0
        %1899 = vmatprep.subr.mxu0 0.0
        %1900 = vmatpush2.msra.mxu0 0.0
        %1901 = vmatprep.subr.mxu0 0.0
        %1902 = vmatpush2.msra.mxu0 0.0
        %1903 = vmatprep.subr.mxu0 0.0
        %1904 = vmatpush2.msra.mxu0 0.0
        %1905 = vmatprep.subr.mxu0 0.0
        %1906 = vmatpush2.msra.mxu0 0.0
        %1907 = vmatprep.subr.mxu0 0.0
        %1908 = vmatpush2.msra.mxu0 0.0
        %1909 = vmatprep.subr.mxu0 0.0
        %1910 = vmatpush2.msra.mxu0 0.0
        %1911 = vmatprep.subr.mxu0 0.0
        %1912 = vmatpush2.msra.mxu0 0.0
        %1913 = vmatprep.mubr.f32.mxu0 0.0
        %1914 = vmatmul.mubr.f32.gmra.mxu0 %v1751
        %v1915 = vpop.f32.mrf.mxu0
        %v1916 = vadd.f32 0.0, %v1915
        %v1917 = vpop.f32.mrf.mxu0
        %1918 = vmatprep.mubr.f32.mxu0 0.0
        %1919 = vmatmul.mubr.f32.gmra.mxu0 %v1754
        %v1920 = vpop.f32.mrf.mxu0
        %v1921 = vadd.f32 0.0, %v1920
        %v1922 = vpop.f32.mrf.mxu0
        %1923 = vmatprep.mubr.f32.mxu0 0.0
        %1924 = vmatmul.mubr.f32.gmra.mxu0 %v1757
        %v1925 = vpop.f32.mrf.mxu0
        %v1926 = vadd.f32 0.0, %v1925
        %v1927 = vpop.f32.mrf.mxu0
        %1928 = vmatprep.mubr.f32.mxu0 0.0
        %1929 = vmatmul.mubr.f32.gmra.mxu0 %v1760
        %v1930 = vpop.f32.mrf.mxu0
        %v1931 = vadd.f32 0.0, %v1930
        %v1932 = vpop.f32.mrf.mxu0
        %1933 = vmatprep.mubr.f32.mxu0 0.0
        %1934 = vmatmul.mubr.f32.gmra.mxu0 %v1763
        %v1935 = vpop.f32.mrf.mxu0
        %v1936 = vadd.f32 0.0, %v1935
        %v1937 = vpop.f32.mrf.mxu0
        %1938 = vmatprep.mubr.f32.mxu0 0.0
        %1939 = vmatmul.mubr.f32.gmra.mxu0 %v1766
        %v1940 = vpop.f32.mrf.mxu0
        %v1941 = vadd.f32 0.0, %v1940
        %v1942 = vpop.f32.mrf.mxu0
        %1943 = vmatprep.mubr.f32.mxu0 0.0
        %1944 = vmatmul.mubr.f32.gmra.mxu0 %v1769
        %v1945 = vpop.f32.mrf.mxu0
        %v1946 = vadd.f32 0.0, %v1945
        %v1947 = vpop.f32.mrf.mxu0
        %1948 = vmatprep.mubr.f32.mxu0 0.0
        %1949 = vmatmul.mubr.f32.gmra.mxu0 %v1772
        %v1950 = vpop.f32.mrf.mxu0
        %v1951 = vadd.f32 0.0, %v1950
        %v1952 = vpop.f32.mrf.mxu0
        %1953 = vmatprep.mubr.f32.mxu0 0.0
        %1954 = vmatmul.mubr.f32.gmra.mxu0 %v1775
        %v1955 = vpop.f32.mrf.mxu0
        %v1956 = vadd.f32 0.0, %v1955
        %v1957 = vpop.f32.mrf.mxu0
        %1958 = vmatprep.mubr.f32.mxu0 0.0
        %1959 = vmatmul.mubr.f32.gmra.mxu0 %v1778
        %v1960 = vpop.f32.mrf.mxu0
        %v1961 = vadd.f32 0.0, %v1960
        %v1962 = vpop.f32.mrf.mxu0
        %1963 = vmatprep.mubr.f32.mxu0 0.0
        %1964 = vmatmul.mubr.f32.gmra.mxu0 %v1781
        %v1965 = vpop.f32.mrf.mxu0
        %v1966 = vadd.f32 0.0, %v1965
        %v1967 = vpop.f32.mrf.mxu0
        %1968 = vmatprep.mubr.f32.mxu0 0.0
        %1969 = vmatmul.mubr.f32.gmra.mxu0 %v1784
        %v1970 = vpop.f32.mrf.mxu0
        %v1971 = vadd.f32 0.0, %v1970
        %v1972 = vpop.f32.mrf.mxu0
        %1973 = vmatprep.mubr.f32.mxu0 0.0
        %1974 = vmatmul.mubr.f32.gmra.mxu0 %v1787
        %v1975 = vpop.f32.mrf.mxu0
        %v1976 = vadd.f32 0.0, %v1975
        %v1977 = vpop.f32.mrf.mxu0
        %1978 = vmatprep.mubr.f32.mxu0 0.0
        %1979 = vmatmul.mubr.f32.gmra.mxu0 %v1790
        %v1980 = vpop.f32.mrf.mxu0
        %v1981 = vadd.f32 0.0, %v1980
        %v1982 = vpop.f32.mrf.mxu0
        %1983 = vmatprep.mubr.f32.mxu0 0.0
        %1984 = vmatmul.mubr.f32.gmra.mxu0 %v1793
        %v1985 = vpop.f32.mrf.mxu0
        %v1986 = vadd.f32 0.0, %v1985
        %v1987 = vpop.f32.mrf.mxu0
        %1988 = vmatprep.mubr.f32.mxu0 0.0
        %1989 = vmatmul.mubr.f32.gmra.mxu0 %v1796
        %v1990 = vpop.f32.mrf.mxu0
        %v1991 = vadd.f32 0.0, %v1990
        %v1992 = vpop.f32.mrf.mxu0
        %1993 = vmatprep.mubr.f32.mxu0 0.0
        %1994 = vmatmul.mubr.f32.gmra.mxu0 %v1799
        %v1995 = vpop.f32.mrf.mxu0
        %v1996 = vadd.f32 0.0, %v1995
        %v1997 = vpop.f32.mrf.mxu0
        %1998 = vmatprep.mubr.f32.mxu0 0.0
        %1999 = vmatmul.mubr.f32.gmra.mxu0 %v1802
        %v2000 = vpop.f32.mrf.mxu0
        %v2001 = vadd.f32 0.0, %v2000
        %v2002 = vpop.f32.mrf.mxu0
        %2003 = vmatprep.mubr.f32.mxu0 0.0
        %2004 = vmatmul.mubr.f32.gmra.mxu0 %v1805
        %v2005 = vpop.f32.mrf.mxu0
        %v2006 = vadd.f32 0.0, %v2005
        %v2007 = vpop.f32.mrf.mxu0
        %2008 = vmatprep.mubr.f32.mxu0 0.0
        %2009 = vmatmul.mubr.f32.gmra.mxu0 %v1808
        %v2010 = vpop.f32.mrf.mxu0
        %v2011 = vadd.f32 0.0, %v2010
        %v2012 = vpop.f32.mrf.mxu0
        %2013 = vmatprep.mubr.f32.mxu0 0.0
        %2014 = vmatmul.mubr.f32.gmra.mxu0 %v1811
        %v2015 = vpop.f32.mrf.mxu0
        %v2016 = vadd.f32 0.0, %v2015
        %v2017 = vpop.f32.mrf.mxu0
        %2018 = vmatprep.mubr.f32.mxu0 0.0
        %2019 = vmatmul.mubr.f32.gmra.mxu0 %v1814
        %v2020 = vpop.f32.mrf.mxu0
        %v2021 = vadd.f32 0.0, %v2020
        %v2022 = vpop.f32.mrf.mxu0
        %2023 = vmatprep.mubr.f32.mxu0 0.0
        %2024 = vmatmul.mubr.f32.gmra.mxu0 %v1817
        %v2025 = vpop.f32.mrf.mxu0
        %v2026 = vadd.f32 0.0, %v2025
        %v2027 = vpop.f32.mrf.mxu0
        %2028 = vmatprep.mubr.f32.mxu0 0.0
        %2029 = vmatmul.mubr.f32.gmra.mxu0 %v1820
        %v2030 = vpop.f32.mrf.mxu0
        %v2031 = vadd.f32 0.0, %v2030
        %v2032 = vpop.f32.mrf.mxu0
        %2033 = vmatprep.mubr.f32.mxu0 0.0
        %2034 = vmatmul.mubr.f32.gmra.mxu0 %v1823
        %v2035 = vpop.f32.mrf.mxu0
        %v2036 = vadd.f32 0.0, %v2035
        %v2037 = vpop.f32.mrf.mxu0
        %2038 = vmatprep.mubr.f32.mxu0 0.0
        %2039 = vmatmul.mubr.f32.gmra.mxu0 %v1826
        %v2040 = vpop.f32.mrf.mxu0
        %v2041 = vadd.f32 0.0, %v2040
        %v2042 = vpop.f32.mrf.mxu0
        %2043 = vmatprep.mubr.f32.mxu0 0.0
        %2044 = vmatmul.mubr.f32.gmra.mxu0 %v1829
        %v2045 = vpop.f32.mrf.mxu0
        %v2046 = vadd.f32 0.0, %v2045
        %v2047 = vpop.f32.mrf.mxu0
        %2048 = vmatprep.mubr.f32.mxu0 0.0
        %2049 = vmatmul.mubr.f32.gmra.mxu0 %v1832
        %v2050 = vpop.f32.mrf.mxu0
        %v2051 = vadd.f32 0.0, %v2050
        %v2052 = vpop.f32.mrf.mxu0
        %2053 = vmatprep.mubr.f32.mxu0 0.0
        %2054 = vmatmul.mubr.f32.gmra.mxu0 %v1835
        %v2055 = vpop.f32.mrf.mxu0
        %v2056 = vadd.f32 0.0, %v2055
        %v2057 = vpop.f32.mrf.mxu0
        %2058 = vmatprep.mubr.f32.mxu0 0.0
        %2059 = vmatmul.mubr.f32.gmra.mxu0 %v1838
        %v2060 = vpop.f32.mrf.mxu0
        %v2061 = vadd.f32 0.0, %v2060
        %v2062 = vpop.f32.mrf.mxu0
        %2063 = vmatprep.mubr.f32.mxu0 0.0
        %2064 = vmatmul.mubr.f32.gmra.mxu0 %v1841
        %v2065 = vpop.f32.mrf.mxu0
        %v2066 = vadd.f32 0.0, %v2065
        %v2067 = vpop.f32.mrf.mxu0
        %2068 = vmatprep.mubr.f32.mxu0 0.0
        %2069 = vmatmul.mubr.f32.gmra.mxu0 %v1844
        %v2070 = vpop.f32.mrf.mxu0
        %v2071 = vadd.f32 0.0, %v2070
        %v2072 = vpop.f32.mrf.mxu0
        %2073 = vdwg.mxu0
        %v2074 = vadd.f32 %v1558, %v1916
        %v2075 = vadd.f32 %v1563, %v1921
        %v2076 = vadd.f32 %v1568, %v1926
        %v2077 = vadd.f32 %v1573, %v1931
        %v2078 = vadd.f32 %v1578, %v1936
        %v2079 = vadd.f32 %v1583, %v1941
        %v2080 = vadd.f32 %v1588, %v1946
        %v2081 = vadd.f32 %v1593, %v1951
        %v2082 = vadd.f32 %v1598, %v1956
        %v2083 = vadd.f32 %v1603, %v1961
        %v2084 = vadd.f32 %v1608, %v1966
        %v2085 = vadd.f32 %v1613, %v1971
        %v2086 = vadd.f32 %v1618, %v1976
        %v2087 = vadd.f32 %v1623, %v1981
        %v2088 = vadd.f32 %v1628, %v1986
        %v2089 = vadd.f32 %v1633, %v1991
        %v2090 = vadd.f32 %v1638, %v1996
        %v2091 = vadd.f32 %v1643, %v2001
        %v2092 = vadd.f32 %v1648, %v2006
        %v2093 = vadd.f32 %v1653, %v2011
        %v2094 = vadd.f32 %v1658, %v2016
        %v2095 = vadd.f32 %v1663, %v2021
        %v2096 = vadd.f32 %v1668, %v2026
        %v2097 = vadd.f32 %v1673, %v2031
        %v2098 = vadd.f32 %v1678, %v2036
        %v2099 = vadd.f32 %v1683, %v2041
        %v2100 = vadd.f32 %v1688, %v2046
        %v2101 = vadd.f32 %v1693, %v2051
        %v2102 = vadd.f32 %v1698, %v2056
        %v2103 = vadd.f32 %v1703, %v2061
        %v2104 = vadd.f32 %v1708, %v2066
        %v2105 = vadd.f32 %v1713, %v2071
        %v2106 = vld [vmem:[%s747] sm:$0xff]
        %v2107 = vld [vmem:[%s747 + $0x8] sm:$0xff]
        %v2108 = vld [vmem:[%s747 + $0x18] sm:$0xff]
        %v2109 = vld [vmem:[%s747 + $0x20] sm:$0xff]
        %v2110 = vld [vmem:[%s747 + $0x30] sm:$0xff]
        %v2111 = vld [vmem:[%s747 + $0x38] sm:$0xff]
        %v2112 = vld [vmem:[%s747 + $0x48] sm:$0xff]
        %v2113 = vld [vmem:[%s747 + $0x50] sm:$0xff]
        %v2114 = vld [vmem:[%s747 + $0x60] sm:$0xff]
        %v2115 = vld [vmem:[%s747 + $0x68] sm:$0xff]
        %v2116 = vld [vmem:[%s747 + $0x78] sm:$0xff]
        %v2117 = vld [vmem:[%s747 + $0x80] sm:$0xff]
        %v2118 = vld [vmem:[%s747 + $0x90] sm:$0xff]
        %v2119 = vld [vmem:[%s747 + $0x98] sm:$0xff]
        %v2120 = vld [vmem:[%s747 + $0xa8] sm:$0xff]
        %v2121 = vld [vmem:[%s747 + $0xb0] sm:$0xff]
        %v2122 = vld [vmem:[%s747 + $0xc0] sm:$0xff]
        %v2123 = vld [vmem:[%s747 + $0xc8] sm:$0xff]
        %v2124 = vld [vmem:[%s747 + $0xd8] sm:$0xff]
        %v2125 = vld [vmem:[%s747 + $0xe0] sm:$0xff]
        %v2126 = vld [vmem:[%s747 + $0xf0] sm:$0xff]
        %v2127 = vld [vmem:[%s747 + $0xf8] sm:$0xff]
        %v2128 = vld [vmem:[%s747 + $0x108] sm:$0xff]
        %v2129 = vld [vmem:[%s747 + $0x110] sm:$0xff]
        %v2130 = vld [vmem:[%s747 + $0x120] sm:$0xff]
        %v2131 = vld [vmem:[%s747 + $0x128] sm:$0xff]
        %v2132 = vld [vmem:[%s747 + $0x138] sm:$0xff]
        %v2133 = vld [vmem:[%s747 + $0x140] sm:$0xff]
        %v2134 = vld [vmem:[%s747 + $0x150] sm:$0xff]
        %v2135 = vld [vmem:[%s747 + $0x158] sm:$0xff]
        %v2136 = vld [vmem:[%s747 + $0x168] sm:$0xff]
        %v2137 = vld [vmem:[%s747 + $0x170] sm:$0xff]
        %s2138 = scalar_lea.vmem %s2, 12
        %v2139 = vld [vmem:[%s2138] sm:$0xf]
        %v2141 = vsel %vm748, %v2106, 0
        %v2144 = vsel %vm748, %v2107, 0
        %v2147 = vsel %vm748, %v2108, 0
        %v2150 = vsel %vm748, %v2109, 0
        %v2153 = vsel %vm748, %v2110, 0
        %v2156 = vsel %vm748, %v2111, 0
        %v2159 = vsel %vm748, %v2112, 0
        %v2162 = vsel %vm748, %v2113, 0
        %v2165 = vsel %vm748, %v2114, 0
        %v2168 = vsel %vm748, %v2115, 0
        %v2171 = vsel %vm748, %v2116, 0
        %v2174 = vsel %vm748, %v2117, 0
        %v2177 = vsel %vm748, %v2118, 0
        %v2180 = vsel %vm748, %v2119, 0
        %v2183 = vsel %vm748, %v2120, 0
        %v2186 = vsel %vm748, %v2121, 0
        %v2189 = vsel %vm748, %v2122, 0
        %v2192 = vsel %vm748, %v2123, 0
        %v2195 = vsel %vm748, %v2124, 0
        %v2198 = vsel %vm748, %v2125, 0
        %v2201 = vsel %vm748, %v2126, 0
        %v2204 = vsel %vm748, %v2127, 0
        %v2207 = vsel %vm748, %v2128, 0
        %v2210 = vsel %vm748, %v2129, 0
        %v2213 = vsel %vm748, %v2130, 0
        %v2216 = vsel %vm748, %v2131, 0
        %v2219 = vsel %vm748, %v2132, 0
        %v2222 = vsel %vm748, %v2133, 0
        %v2225 = vsel %vm748, %v2134, 0
        %v2228 = vsel %vm748, %v2135, 0
        %v2231 = vsel %vm748, %v2136, 0
        %v2234 = vsel %vm748, %v2137, 0
        %v2237 = vsel %vm1163, %v2139, 0
        %2239 = vmatprep.subr.mxu0 0.0
        %2240 = vmatpush1.msra.mxu0 0.0
        %2241 = vmatprep.subr.mxu0 0.0
        %2242 = vmatpush1.msra.mxu0 0.0
        %2243 = vmatprep.subr.mxu0 0.0
        %2244 = vmatpush1.msra.mxu0 0.0
        %2245 = vmatprep.subr.mxu0 0.0
        %2246 = vmatpush1.msra.mxu0 0.0
        %2247 = vmatprep.subr.mxu0 0.0
        %2248 = vmatpush1.msra.mxu0 0.0
        %2249 = vmatprep.subr.mxu0 0.0
        %2250 = vmatpush1.msra.mxu0 0.0
        %2251 = vmatprep.subr.mxu0 0.0
        %2252 = vmatpush1.msra.mxu0 0.0
        %2253 = vmatprep.subr.mxu0 0.0
        %2254 = vmatpush1.msra.mxu0 0.0
        %2255 = vmatprep.subr.mxu0 0.0
        %2256 = vmatpush1.msra.mxu0 0.0
        %2257 = vmatprep.subr.mxu0 0.0
        %2258 = vmatpush1.msra.mxu0 0.0
        %2259 = vmatprep.subr.mxu0 0.0
        %2260 = vmatpush1.msra.mxu0 0.0
        %2261 = vmatprep.subr.mxu0 0.0
        %2262 = vmatpush1.msra.mxu0 0.0
        %2263 = vmatprep.subr.mxu0 0.0
        %2264 = vmatpush1.msra.mxu0 0.0
        %2265 = vmatprep.subr.mxu0 0.0
        %2266 = vmatpush1.msra.mxu0 0.0
        %2267 = vmatprep.subr.mxu0 0.0
        %2268 = vmatpush1.msra.mxu0 0.0
        %2269 = vmatprep.subr.mxu0 0.0
        %2270 = vmatpush1.msra.mxu0 %v2237
        %2271 = vmatprep.subr.mxu0 0.0
        %2272 = vmatpush2.msra.mxu0 0.0
        %2273 = vmatprep.subr.mxu0 0.0
        %2274 = vmatpush2.msra.mxu0 0.0
        %2275 = vmatprep.subr.mxu0 0.0
        %2276 = vmatpush2.msra.mxu0 0.0
        %2277 = vmatprep.subr.mxu0 0.0
        %2278 = vmatpush2.msra.mxu0 0.0
        %2279 = vmatprep.subr.mxu0 0.0
        %2280 = vmatpush2.msra.mxu0 0.0
        %2281 = vmatprep.subr.mxu0 0.0
        %2282 = vmatpush2.msra.mxu0 0.0
        %2283 = vmatprep.subr.mxu0 0.0
        %2284 = vmatpush2.msra.mxu0 0.0
        %2285 = vmatprep.subr.mxu0 0.0
        %2286 = vmatpush2.msra.mxu0 0.0
        %2287 = vmatprep.subr.mxu0 0.0
        %2288 = vmatpush2.msra.mxu0 0.0
        %2289 = vmatprep.subr.mxu0 0.0
        %2290 = vmatpush2.msra.mxu0 0.0
        %2291 = vmatprep.subr.mxu0 0.0
        %2292 = vmatpush2.msra.mxu0 0.0
        %2293 = vmatprep.subr.mxu0 0.0
        %2294 = vmatpush2.msra.mxu0 0.0
        %2295 = vmatprep.subr.mxu0 0.0
        %2296 = vmatpush2.msra.mxu0 0.0
        %2297 = vmatprep.subr.mxu0 0.0
        %2298 = vmatpush2.msra.mxu0 0.0
        %2299 = vmatprep.subr.mxu0 0.0
        %2300 = vmatpush2.msra.mxu0 0.0
        %2301 = vmatprep.subr.mxu0 0.0
        %2302 = vmatpush2.msra.mxu0 0.0
        %2303 = vmatprep.mubr.f32.mxu0 0.0
        %2304 = vmatmul.mubr.f32.gmra.mxu0 %v2141
        %v2305 = vpop.f32.mrf.mxu0
        %v2306 = vadd.f32 0.0, %v2305
        %v2307 = vpop.f32.mrf.mxu0
        %2308 = vmatprep.mubr.f32.mxu0 0.0
        %2309 = vmatmul.mubr.f32.gmra.mxu0 %v2144
        %v2310 = vpop.f32.mrf.mxu0
        %v2311 = vadd.f32 0.0, %v2310
        %v2312 = vpop.f32.mrf.mxu0
        %2313 = vmatprep.mubr.f32.mxu0 0.0
        %2314 = vmatmul.mubr.f32.gmra.mxu0 %v2147
        %v2315 = vpop.f32.mrf.mxu0
        %v2316 = vadd.f32 0.0, %v2315
        %v2317 = vpop.f32.mrf.mxu0
        %2318 = vmatprep.mubr.f32.mxu0 0.0
        %2319 = vmatmul.mubr.f32.gmra.mxu0 %v2150
        %v2320 = vpop.f32.mrf.mxu0
        %v2321 = vadd.f32 0.0, %v2320
        %v2322 = vpop.f32.mrf.mxu0
        %2323 = vmatprep.mubr.f32.mxu0 0.0
        %2324 = vmatmul.mubr.f32.gmra.mxu0 %v2153
        %v2325 = vpop.f32.mrf.mxu0
        %v2326 = vadd.f32 0.0, %v2325
        %v2327 = vpop.f32.mrf.mxu0
        %2328 = vmatprep.mubr.f32.mxu0 0.0
        %2329 = vmatmul.mubr.f32.gmra.mxu0 %v2156
        %v2330 = vpop.f32.mrf.mxu0
        %v2331 = vadd.f32 0.0, %v2330
        %v2332 = vpop.f32.mrf.mxu0
        %2333 = vmatprep.mubr.f32.mxu0 0.0
        %2334 = vmatmul.mubr.f32.gmra.mxu0 %v2159
        %v2335 = vpop.f32.mrf.mxu0
        %v2336 = vadd.f32 0.0, %v2335
        %v2337 = vpop.f32.mrf.mxu0
        %2338 = vmatprep.mubr.f32.mxu0 0.0
        %2339 = vmatmul.mubr.f32.gmra.mxu0 %v2162
        %v2340 = vpop.f32.mrf.mxu0
        %v2341 = vadd.f32 0.0, %v2340
        %v2342 = vpop.f32.mrf.mxu0
        %2343 = vmatprep.mubr.f32.mxu0 0.0
        %2344 = vmatmul.mubr.f32.gmra.mxu0 %v2165
        %v2345 = vpop.f32.mrf.mxu0
        %v2346 = vadd.f32 0.0, %v2345
        %v2347 = vpop.f32.mrf.mxu0
        %2348 = vmatprep.mubr.f32.mxu0 0.0
        %2349 = vmatmul.mubr.f32.gmra.mxu0 %v2168
        %v2350 = vpop.f32.mrf.mxu0
        %v2351 = vadd.f32 0.0, %v2350
        %v2352 = vpop.f32.mrf.mxu0
        %2353 = vmatprep.mubr.f32.mxu0 0.0
        %2354 = vmatmul.mubr.f32.gmra.mxu0 %v2171
        %v2355 = vpop.f32.mrf.mxu0
        %v2356 = vadd.f32 0.0, %v2355
        %v2357 = vpop.f32.mrf.mxu0
        %2358 = vmatprep.mubr.f32.mxu0 0.0
        %2359 = vmatmul.mubr.f32.gmra.mxu0 %v2174
        %v2360 = vpop.f32.mrf.mxu0
        %v2361 = vadd.f32 0.0, %v2360
        %v2362 = vpop.f32.mrf.mxu0
        %2363 = vmatprep.mubr.f32.mxu0 0.0
        %2364 = vmatmul.mubr.f32.gmra.mxu0 %v2177
        %v2365 = vpop.f32.mrf.mxu0
        %v2366 = vadd.f32 0.0, %v2365
        %v2367 = vpop.f32.mrf.mxu0
        %2368 = vmatprep.mubr.f32.mxu0 0.0
        %2369 = vmatmul.mubr.f32.gmra.mxu0 %v2180
        %v2370 = vpop.f32.mrf.mxu0
        %v2371 = vadd.f32 0.0, %v2370
        %v2372 = vpop.f32.mrf.mxu0
        %2373 = vmatprep.mubr.f32.mxu0 0.0
        %2374 = vmatmul.mubr.f32.gmra.mxu0 %v2183
        %v2375 = vpop.f32.mrf.mxu0
        %v2376 = vadd.f32 0.0, %v2375
        %v2377 = vpop.f32.mrf.mxu0
        %2378 = vmatprep.mubr.f32.mxu0 0.0
        %2379 = vmatmul.mubr.f32.gmra.mxu0 %v2186
        %v2380 = vpop.f32.mrf.mxu0
        %v2381 = vadd.f32 0.0, %v2380
        %v2382 = vpop.f32.mrf.mxu0
        %2383 = vmatprep.mubr.f32.mxu0 0.0
        %2384 = vmatmul.mubr.f32.gmra.mxu0 %v2189
        %v2385 = vpop.f32.mrf.mxu0
        %v2386 = vadd.f32 0.0, %v2385
        %v2387 = vpop.f32.mrf.mxu0
        %2388 = vmatprep.mubr.f32.mxu0 0.0
        %2389 = vmatmul.mubr.f32.gmra.mxu0 %v2192
        %v2390 = vpop.f32.mrf.mxu0
        %v2391 = vadd.f32 0.0, %v2390
        %v2392 = vpop.f32.mrf.mxu0
        %2393 = vmatprep.mubr.f32.mxu0 0.0
        %2394 = vmatmul.mubr.f32.gmra.mxu0 %v2195
        %v2395 = vpop.f32.mrf.mxu0
        %v2396 = vadd.f32 0.0, %v2395
        %v2397 = vpop.f32.mrf.mxu0
        %2398 = vmatprep.mubr.f32.mxu0 0.0
        %2399 = vmatmul.mubr.f32.gmra.mxu0 %v2198
        %v2400 = vpop.f32.mrf.mxu0
        %v2401 = vadd.f32 0.0, %v2400
        %v2402 = vpop.f32.mrf.mxu0
        %2403 = vmatprep.mubr.f32.mxu0 0.0
        %2404 = vmatmul.mubr.f32.gmra.mxu0 %v2201
        %v2405 = vpop.f32.mrf.mxu0
        %v2406 = vadd.f32 0.0, %v2405
        %v2407 = vpop.f32.mrf.mxu0
        %2408 = vmatprep.mubr.f32.mxu0 0.0
        %2409 = vmatmul.mubr.f32.gmra.mxu0 %v2204
        %v2410 = vpop.f32.mrf.mxu0
        %v2411 = vadd.f32 0.0, %v2410
        %v2412 = vpop.f32.mrf.mxu0
        %2413 = vmatprep.mubr.f32.mxu0 0.0
        %2414 = vmatmul.mubr.f32.gmra.mxu0 %v2207
        %v2415 = vpop.f32.mrf.mxu0
        %v2416 = vadd.f32 0.0, %v2415
        %v2417 = vpop.f32.mrf.mxu0
        %2418 = vmatprep.mubr.f32.mxu0 0.0
        %2419 = vmatmul.mubr.f32.gmra.mxu0 %v2210
        %v2420 = vpop.f32.mrf.mxu0
        %v2421 = vadd.f32 0.0, %v2420
        %v2422 = vpop.f32.mrf.mxu0
        %2423 = vmatprep.mubr.f32.mxu0 0.0
        %2424 = vmatmul.mubr.f32.gmra.mxu0 %v2213
        %v2425 = vpop.f32.mrf.mxu0
        %v2426 = vadd.f32 0.0, %v2425
        %v2427 = vpop.f32.mrf.mxu0
        %2428 = vmatprep.mubr.f32.mxu0 0.0
        %2429 = vmatmul.mubr.f32.gmra.mxu0 %v2216
        %v2430 = vpop.f32.mrf.mxu0
        %v2431 = vadd.f32 0.0, %v2430
        %v2432 = vpop.f32.mrf.mxu0
        %2433 = vmatprep.mubr.f32.mxu0 0.0
        %2434 = vmatmul.mubr.f32.gmra.mxu0 %v2219
        %v2435 = vpop.f32.mrf.mxu0
        %v2436 = vadd.f32 0.0, %v2435
        %v2437 = vpop.f32.mrf.mxu0
        %2438 = vmatprep.mubr.f32.mxu0 0.0
        %2439 = vmatmul.mubr.f32.gmra.mxu0 %v2222
        %v2440 = vpop.f32.mrf.mxu0
        %v2441 = vadd.f32 0.0, %v2440
        %v2442 = vpop.f32.mrf.mxu0
        %2443 = vmatprep.mubr.f32.mxu0 0.0
        %2444 = vmatmul.mubr.f32.gmra.mxu0 %v2225
        %v2445 = vpop.f32.mrf.mxu0
        %v2446 = vadd.f32 0.0, %v2445
        %v2447 = vpop.f32.mrf.mxu0
        %2448 = vmatprep.mubr.f32.mxu0 0.0
        %2449 = vmatmul.mubr.f32.gmra.mxu0 %v2228
        %v2450 = vpop.f32.mrf.mxu0
        %v2451 = vadd.f32 0.0, %v2450
        %v2452 = vpop.f32.mrf.mxu0
        %2453 = vmatprep.mubr.f32.mxu0 0.0
        %2454 = vmatmul.mubr.f32.gmra.mxu0 %v2231
        %v2455 = vpop.f32.mrf.mxu0
        %v2456 = vadd.f32 0.0, %v2455
        %v2457 = vpop.f32.mrf.mxu0
        %2458 = vmatprep.mubr.f32.mxu0 0.0
        %2459 = vmatmul.mubr.f32.gmra.mxu0 %v2234
        %v2460 = vpop.f32.mrf.mxu0
        %v2461 = vadd.f32 0.0, %v2460
        %v2462 = vpop.f32.mrf.mxu0
        %2463 = vdwg.mxu0
        %v2464 = vadd.f32 %v2074, %v2306
        %v2465 = vadd.f32 %v2075, %v2311
        %v2466 = vadd.f32 %v2076, %v2316
        %v2467 = vadd.f32 %v2077, %v2321
        %v2468 = vadd.f32 %v2078, %v2326
        %v2469 = vadd.f32 %v2079, %v2331
        %v2470 = vadd.f32 %v2080, %v2336
        %v2471 = vadd.f32 %v2081, %v2341
        %v2472 = vadd.f32 %v2082, %v2346
        %v2473 = vadd.f32 %v2083, %v2351
        %v2474 = vadd.f32 %v2084, %v2356
        %v2475 = vadd.f32 %v2085, %v2361
        %v2476 = vadd.f32 %v2086, %v2366
        %v2477 = vadd.f32 %v2087, %v2371
        %v2478 = vadd.f32 %v2088, %v2376
        %v2479 = vadd.f32 %v2089, %v2381
        %v2480 = vadd.f32 %v2090, %v2386
        %v2481 = vadd.f32 %v2091, %v2391
        %v2482 = vadd.f32 %v2092, %v2396
        %v2483 = vadd.f32 %v2093, %v2401
        %v2484 = vadd.f32 %v2094, %v2406
        %v2485 = vadd.f32 %v2095, %v2411
        %v2486 = vadd.f32 %v2096, %v2416
        %v2487 = vadd.f32 %v2097, %v2421
        %v2488 = vadd.f32 %v2098, %v2426
        %v2489 = vadd.f32 %v2099, %v2431
        %v2490 = vadd.f32 %v2100, %v2436
        %v2491 = vadd.f32 %v2101, %v2441
        %v2492 = vadd.f32 %v2102, %v2446
        %v2493 = vadd.f32 %v2103, %v2451
        %v2494 = vadd.f32 %v2104, %v2456
        %v2495 = vadd.f32 %v2105, %v2461
        %v2496 = vld [vmem:[%s747 + $0x1] sm:$0xff]
        %v2497 = vld [vmem:[%s747 + $0x9] sm:$0xff]
        %v2498 = vld [vmem:[%s747 + $0x19] sm:$0xff]
        %v2499 = vld [vmem:[%s747 + $0x21] sm:$0xff]
        %v2500 = vld [vmem:[%s747 + $0x31] sm:$0xff]
        %v2501 = vld [vmem:[%s747 + $0x39] sm:$0xff]
        %v2502 = vld [vmem:[%s747 + $0x49] sm:$0xff]
        %v2503 = vld [vmem:[%s747 + $0x51] sm:$0xff]
        %v2504 = vld [vmem:[%s747 + $0x61] sm:$0xff]
        %v2505 = vld [vmem:[%s747 + $0x69] sm:$0xff]
        %v2506 = vld [vmem:[%s747 + $0x79] sm:$0xff]
        %v2507 = vld [vmem:[%s747 + $0x81] sm:$0xff]
        %v2508 = vld [vmem:[%s747 + $0x91] sm:$0xff]
        %v2509 = vld [vmem:[%s747 + $0x99] sm:$0xff]
        %v2510 = vld [vmem:[%s747 + $0xa9] sm:$0xff]
        %v2511 = vld [vmem:[%s747 + $0xb1] sm:$0xff]
        %v2512 = vld [vmem:[%s747 + $0xc1] sm:$0xff]
        %v2513 = vld [vmem:[%s747 + $0xc9] sm:$0xff]
        %v2514 = vld [vmem:[%s747 + $0xd9] sm:$0xff]
        %v2515 = vld [vmem:[%s747 + $0xe1] sm:$0xff]
        %v2516 = vld [vmem:[%s747 + $0xf1] sm:$0xff]
        %v2517 = vld [vmem:[%s747 + $0xf9] sm:$0xff]
        %v2518 = vld [vmem:[%s747 + $0x109] sm:$0xff]
        %v2519 = vld [vmem:[%s747 + $0x111] sm:$0xff]
        %v2520 = vld [vmem:[%s747 + $0x121] sm:$0xff]
        %v2521 = vld [vmem:[%s747 + $0x129] sm:$0xff]
        %v2522 = vld [vmem:[%s747 + $0x139] sm:$0xff]
        %v2523 = vld [vmem:[%s747 + $0x141] sm:$0xff]
        %v2524 = vld [vmem:[%s747 + $0x151] sm:$0xff]
        %v2525 = vld [vmem:[%s747 + $0x159] sm:$0xff]
        %v2526 = vld [vmem:[%s747 + $0x169] sm:$0xff]
        %v2527 = vld [vmem:[%s747 + $0x171] sm:$0xff]
        %s2528 = scalar_lea.vmem %s2, 16
        %v2529 = vld [vmem:[%s2528] sm:$0xf]
        %v2531 = vsel %vm748, %v2496, 0
        %v2534 = vsel %vm748, %v2497, 0
        %v2537 = vsel %vm748, %v2498, 0
        %v2540 = vsel %vm748, %v2499, 0
        %v2543 = vsel %vm748, %v2500, 0
        %v2546 = vsel %vm748, %v2501, 0
        %v2549 = vsel %vm748, %v2502, 0
        %v2552 = vsel %vm748, %v2503, 0
        %v2555 = vsel %vm748, %v2504, 0
        %v2558 = vsel %vm748, %v2505, 0
        %v2561 = vsel %vm748, %v2506, 0
        %v2564 = vsel %vm748, %v2507, 0
        %v2567 = vsel %vm748, %v2508, 0
        %v2570 = vsel %vm748, %v2509, 0
        %v2573 = vsel %vm748, %v2510, 0
        %v2576 = vsel %vm748, %v2511, 0
        %v2579 = vsel %vm748, %v2512, 0
        %v2582 = vsel %vm748, %v2513, 0
        %v2585 = vsel %vm748, %v2514, 0
        %v2588 = vsel %vm748, %v2515, 0
        %v2591 = vsel %vm748, %v2516, 0
        %v2594 = vsel %vm748, %v2517, 0
        %v2597 = vsel %vm748, %v2518, 0
        %v2600 = vsel %vm748, %v2519, 0
        %v2603 = vsel %vm748, %v2520, 0
        %v2606 = vsel %vm748, %v2521, 0
        %v2609 = vsel %vm748, %v2522, 0
        %v2612 = vsel %vm748, %v2523, 0
        %v2615 = vsel %vm748, %v2524, 0
        %v2618 = vsel %vm748, %v2525, 0
        %v2621 = vsel %vm748, %v2526, 0
        %v2624 = vsel %vm748, %v2527, 0
        %v2627 = vsel %vm1163, %v2529, 0
        %2629 = vmatprep.subr.mxu0 0.0
        %2630 = vmatpush1.msra.mxu0 0.0
        %2631 = vmatprep.subr.mxu0 0.0
        %2632 = vmatpush1.msra.mxu0 0.0
        %2633 = vmatprep.subr.mxu0 0.0
        %2634 = vmatpush1.msra.mxu0 0.0
        %2635 = vmatprep.subr.mxu0 0.0
        %2636 = vmatpush1.msra.mxu0 0.0
        %2637 = vmatprep.subr.mxu0 0.0
        %2638 = vmatpush1.msra.mxu0 0.0
        %2639 = vmatprep.subr.mxu0 0.0
        %2640 = vmatpush1.msra.mxu0 0.0
        %2641 = vmatprep.subr.mxu0 0.0
        %2642 = vmatpush1.msra.mxu0 0.0
        %2643 = vmatprep.subr.mxu0 0.0
        %2644 = vmatpush1.msra.mxu0 0.0
        %2645 = vmatprep.subr.mxu0 0.0
        %2646 = vmatpush1.msra.mxu0 0.0
        %2647 = vmatprep.subr.mxu0 0.0
        %2648 = vmatpush1.msra.mxu0 0.0
        %2649 = vmatprep.subr.mxu0 0.0
        %2650 = vmatpush1.msra.mxu0 0.0
        %2651 = vmatprep.subr.mxu0 0.0
        %2652 = vmatpush1.msra.mxu0 0.0
        %2653 = vmatprep.subr.mxu0 0.0
        %2654 = vmatpush1.msra.mxu0 0.0
        %2655 = vmatprep.subr.mxu0 0.0
        %2656 = vmatpush1.msra.mxu0 0.0
        %2657 = vmatprep.subr.mxu0 0.0
        %2658 = vmatpush1.msra.mxu0 0.0
        %2659 = vmatprep.subr.mxu0 0.0
        %2660 = vmatpush1.msra.mxu0 %v2627
        %2661 = vmatprep.subr.mxu0 0.0
        %2662 = vmatpush2.msra.mxu0 0.0
        %2663 = vmatprep.subr.mxu0 0.0
        %2664 = vmatpush2.msra.mxu0 0.0
        %2665 = vmatprep.subr.mxu0 0.0
        %2666 = vmatpush2.msra.mxu0 0.0
        %2667 = vmatprep.subr.mxu0 0.0
        %2668 = vmatpush2.msra.mxu0 0.0
        %2669 = vmatprep.subr.mxu0 0.0
        %2670 = vmatpush2.msra.mxu0 0.0
        %2671 = vmatprep.subr.mxu0 0.0
        %2672 = vmatpush2.msra.mxu0 0.0
        %2673 = vmatprep.subr.mxu0 0.0
        %2674 = vmatpush2.msra.mxu0 0.0
        %2675 = vmatprep.subr.mxu0 0.0
        %2676 = vmatpush2.msra.mxu0 0.0
        %2677 = vmatprep.subr.mxu0 0.0
        %2678 = vmatpush2.msra.mxu0 0.0
        %2679 = vmatprep.subr.mxu0 0.0
        %2680 = vmatpush2.msra.mxu0 0.0
        %2681 = vmatprep.subr.mxu0 0.0
        %2682 = vmatpush2.msra.mxu0 0.0
        %2683 = vmatprep.subr.mxu0 0.0
        %2684 = vmatpush2.msra.mxu0 0.0
        %2685 = vmatprep.subr.mxu0 0.0
        %2686 = vmatpush2.msra.mxu0 0.0
        %2687 = vmatprep.subr.mxu0 0.0
        %2688 = vmatpush2.msra.mxu0 0.0
        %2689 = vmatprep.subr.mxu0 0.0
        %2690 = vmatpush2.msra.mxu0 0.0
        %2691 = vmatprep.subr.mxu0 0.0
        %2692 = vmatpush2.msra.mxu0 0.0
        %2693 = vmatprep.mubr.f32.mxu0 0.0
        %2694 = vmatmul.mubr.f32.gmra.mxu0 %v2531
        %v2695 = vpop.f32.mrf.mxu0
        %v2696 = vadd.f32 0.0, %v2695
        %v2697 = vpop.f32.mrf.mxu0
        %2698 = vmatprep.mubr.f32.mxu0 0.0
        %2699 = vmatmul.mubr.f32.gmra.mxu0 %v2534
        %v2700 = vpop.f32.mrf.mxu0
        %v2701 = vadd.f32 0.0, %v2700
        %v2702 = vpop.f32.mrf.mxu0
        %2703 = vmatprep.mubr.f32.mxu0 0.0
        %2704 = vmatmul.mubr.f32.gmra.mxu0 %v2537
        %v2705 = vpop.f32.mrf.mxu0
        %v2706 = vadd.f32 0.0, %v2705
        %v2707 = vpop.f32.mrf.mxu0
        %2708 = vmatprep.mubr.f32.mxu0 0.0
        %2709 = vmatmul.mubr.f32.gmra.mxu0 %v2540
        %v2710 = vpop.f32.mrf.mxu0
        %v2711 = vadd.f32 0.0, %v2710
        %v2712 = vpop.f32.mrf.mxu0
        %2713 = vmatprep.mubr.f32.mxu0 0.0
        %2714 = vmatmul.mubr.f32.gmra.mxu0 %v2543
        %v2715 = vpop.f32.mrf.mxu0
        %v2716 = vadd.f32 0.0, %v2715
        %v2717 = vpop.f32.mrf.mxu0
        %2718 = vmatprep.mubr.f32.mxu0 0.0
        %2719 = vmatmul.mubr.f32.gmra.mxu0 %v2546
        %v2720 = vpop.f32.mrf.mxu0
        %v2721 = vadd.f32 0.0, %v2720
        %v2722 = vpop.f32.mrf.mxu0
        %2723 = vmatprep.mubr.f32.mxu0 0.0
        %2724 = vmatmul.mubr.f32.gmra.mxu0 %v2549
        %v2725 = vpop.f32.mrf.mxu0
        %v2726 = vadd.f32 0.0, %v2725
        %v2727 = vpop.f32.mrf.mxu0
        %2728 = vmatprep.mubr.f32.mxu0 0.0
        %2729 = vmatmul.mubr.f32.gmra.mxu0 %v2552
        %v2730 = vpop.f32.mrf.mxu0
        %v2731 = vadd.f32 0.0, %v2730
        %v2732 = vpop.f32.mrf.mxu0
        %2733 = vmatprep.mubr.f32.mxu0 0.0
        %2734 = vmatmul.mubr.f32.gmra.mxu0 %v2555
        %v2735 = vpop.f32.mrf.mxu0
        %v2736 = vadd.f32 0.0, %v2735
        %v2737 = vpop.f32.mrf.mxu0
        %2738 = vmatprep.mubr.f32.mxu0 0.0
        %2739 = vmatmul.mubr.f32.gmra.mxu0 %v2558
        %v2740 = vpop.f32.mrf.mxu0
        %v2741 = vadd.f32 0.0, %v2740
        %v2742 = vpop.f32.mrf.mxu0
        %2743 = vmatprep.mubr.f32.mxu0 0.0
        %2744 = vmatmul.mubr.f32.gmra.mxu0 %v2561
        %v2745 = vpop.f32.mrf.mxu0
        %v2746 = vadd.f32 0.0, %v2745
        %v2747 = vpop.f32.mrf.mxu0
        %2748 = vmatprep.mubr.f32.mxu0 0.0
        %2749 = vmatmul.mubr.f32.gmra.mxu0 %v2564
        %v2750 = vpop.f32.mrf.mxu0
        %v2751 = vadd.f32 0.0, %v2750
        %v2752 = vpop.f32.mrf.mxu0
        %2753 = vmatprep.mubr.f32.mxu0 0.0
        %2754 = vmatmul.mubr.f32.gmra.mxu0 %v2567
        %v2755 = vpop.f32.mrf.mxu0
        %v2756 = vadd.f32 0.0, %v2755
        %v2757 = vpop.f32.mrf.mxu0
        %2758 = vmatprep.mubr.f32.mxu0 0.0
        %2759 = vmatmul.mubr.f32.gmra.mxu0 %v2570
        %v2760 = vpop.f32.mrf.mxu0
        %v2761 = vadd.f32 0.0, %v2760
        %v2762 = vpop.f32.mrf.mxu0
        %2763 = vmatprep.mubr.f32.mxu0 0.0
        %2764 = vmatmul.mubr.f32.gmra.mxu0 %v2573
        %v2765 = vpop.f32.mrf.mxu0
        %v2766 = vadd.f32 0.0, %v2765
        %v2767 = vpop.f32.mrf.mxu0
        %2768 = vmatprep.mubr.f32.mxu0 0.0
        %2769 = vmatmul.mubr.f32.gmra.mxu0 %v2576
        %v2770 = vpop.f32.mrf.mxu0
        %v2771 = vadd.f32 0.0, %v2770
        %v2772 = vpop.f32.mrf.mxu0
        %2773 = vmatprep.mubr.f32.mxu0 0.0
        %2774 = vmatmul.mubr.f32.gmra.mxu0 %v2579
        %v2775 = vpop.f32.mrf.mxu0
        %v2776 = vadd.f32 0.0, %v2775
        %v2777 = vpop.f32.mrf.mxu0
        %2778 = vmatprep.mubr.f32.mxu0 0.0
        %2779 = vmatmul.mubr.f32.gmra.mxu0 %v2582
        %v2780 = vpop.f32.mrf.mxu0
        %v2781 = vadd.f32 0.0, %v2780
        %v2782 = vpop.f32.mrf.mxu0
        %2783 = vmatprep.mubr.f32.mxu0 0.0
        %2784 = vmatmul.mubr.f32.gmra.mxu0 %v2585
        %v2785 = vpop.f32.mrf.mxu0
        %v2786 = vadd.f32 0.0, %v2785
        %v2787 = vpop.f32.mrf.mxu0
        %2788 = vmatprep.mubr.f32.mxu0 0.0
        %2789 = vmatmul.mubr.f32.gmra.mxu0 %v2588
        %v2790 = vpop.f32.mrf.mxu0
        %v2791 = vadd.f32 0.0, %v2790
        %v2792 = vpop.f32.mrf.mxu0
        %2793 = vmatprep.mubr.f32.mxu0 0.0
        %2794 = vmatmul.mubr.f32.gmra.mxu0 %v2591
        %v2795 = vpop.f32.mrf.mxu0
        %v2796 = vadd.f32 0.0, %v2795
        %v2797 = vpop.f32.mrf.mxu0
        %2798 = vmatprep.mubr.f32.mxu0 0.0
        %2799 = vmatmul.mubr.f32.gmra.mxu0 %v2594
        %v2800 = vpop.f32.mrf.mxu0
        %v2801 = vadd.f32 0.0, %v2800
        %v2802 = vpop.f32.mrf.mxu0
        %2803 = vmatprep.mubr.f32.mxu0 0.0
        %2804 = vmatmul.mubr.f32.gmra.mxu0 %v2597
        %v2805 = vpop.f32.mrf.mxu0
        %v2806 = vadd.f32 0.0, %v2805
        %v2807 = vpop.f32.mrf.mxu0
        %2808 = vmatprep.mubr.f32.mxu0 0.0
        %2809 = vmatmul.mubr.f32.gmra.mxu0 %v2600
        %v2810 = vpop.f32.mrf.mxu0
        %v2811 = vadd.f32 0.0, %v2810
        %v2812 = vpop.f32.mrf.mxu0
        %2813 = vmatprep.mubr.f32.mxu0 0.0
        %2814 = vmatmul.mubr.f32.gmra.mxu0 %v2603
        %v2815 = vpop.f32.mrf.mxu0
        %v2816 = vadd.f32 0.0, %v2815
        %v2817 = vpop.f32.mrf.mxu0
        %2818 = vmatprep.mubr.f32.mxu0 0.0
        %2819 = vmatmul.mubr.f32.gmra.mxu0 %v2606
        %v2820 = vpop.f32.mrf.mxu0
        %v2821 = vadd.f32 0.0, %v2820
        %v2822 = vpop.f32.mrf.mxu0
        %2823 = vmatprep.mubr.f32.mxu0 0.0
        %2824 = vmatmul.mubr.f32.gmra.mxu0 %v2609
        %v2825 = vpop.f32.mrf.mxu0
        %v2826 = vadd.f32 0.0, %v2825
        %v2827 = vpop.f32.mrf.mxu0
        %2828 = vmatprep.mubr.f32.mxu0 0.0
        %2829 = vmatmul.mubr.f32.gmra.mxu0 %v2612
        %v2830 = vpop.f32.mrf.mxu0
        %v2831 = vadd.f32 0.0, %v2830
        %v2832 = vpop.f32.mrf.mxu0
        %2833 = vmatprep.mubr.f32.mxu0 0.0
        %2834 = vmatmul.mubr.f32.gmra.mxu0 %v2615
        %v2835 = vpop.f32.mrf.mxu0
        %v2836 = vadd.f32 0.0, %v2835
        %v2837 = vpop.f32.mrf.mxu0
        %2838 = vmatprep.mubr.f32.mxu0 0.0
        %2839 = vmatmul.mubr.f32.gmra.mxu0 %v2618
        %v2840 = vpop.f32.mrf.mxu0
        %v2841 = vadd.f32 0.0, %v2840
        %v2842 = vpop.f32.mrf.mxu0
        %2843 = vmatprep.mubr.f32.mxu0 0.0
        %2844 = vmatmul.mubr.f32.gmra.mxu0 %v2621
        %v2845 = vpop.f32.mrf.mxu0
        %v2846 = vadd.f32 0.0, %v2845
        %v2847 = vpop.f32.mrf.mxu0
        %2848 = vmatprep.mubr.f32.mxu0 0.0
        %2849 = vmatmul.mubr.f32.gmra.mxu0 %v2624
        %v2850 = vpop.f32.mrf.mxu0
        %v2851 = vadd.f32 0.0, %v2850
        %v2852 = vpop.f32.mrf.mxu0
        %2853 = vdwg.mxu0
        %v2854 = vadd.f32 %v2464, %v2696
        %v2855 = vadd.f32 %v2465, %v2701
        %v2856 = vadd.f32 %v2466, %v2706
        %v2857 = vadd.f32 %v2467, %v2711
        %v2858 = vadd.f32 %v2468, %v2716
        %v2859 = vadd.f32 %v2469, %v2721
        %v2860 = vadd.f32 %v2470, %v2726
        %v2861 = vadd.f32 %v2471, %v2731
        %v2862 = vadd.f32 %v2472, %v2736
        %v2863 = vadd.f32 %v2473, %v2741
        %v2864 = vadd.f32 %v2474, %v2746
        %v2865 = vadd.f32 %v2475, %v2751
        %v2866 = vadd.f32 %v2476, %v2756
        %v2867 = vadd.f32 %v2477, %v2761
        %v2868 = vadd.f32 %v2478, %v2766
        %v2869 = vadd.f32 %v2479, %v2771
        %v2870 = vadd.f32 %v2480, %v2776
        %v2871 = vadd.f32 %v2481, %v2781
        %v2872 = vadd.f32 %v2482, %v2786
        %v2873 = vadd.f32 %v2483, %v2791
        %v2874 = vadd.f32 %v2484, %v2796
        %v2875 = vadd.f32 %v2485, %v2801
        %v2876 = vadd.f32 %v2486, %v2806
        %v2877 = vadd.f32 %v2487, %v2811
        %v2878 = vadd.f32 %v2488, %v2816
        %v2879 = vadd.f32 %v2489, %v2821
        %v2880 = vadd.f32 %v2490, %v2826
        %v2881 = vadd.f32 %v2491, %v2831
        %v2882 = vadd.f32 %v2492, %v2836
        %v2883 = vadd.f32 %v2493, %v2841
        %v2884 = vadd.f32 %v2494, %v2846
        %v2885 = vadd.f32 %v2495, %v2851
        %v2886 = vld [vmem:[%s747 + $0x2] sm:$0xff]
        %v2887 = vld [vmem:[%s747 + $0xa] sm:$0xff]
        %v2888 = vld [vmem:[%s747 + $0x1a] sm:$0xff]
        %v2889 = vld [vmem:[%s747 + $0x22] sm:$0xff]
        %v2890 = vld [vmem:[%s747 + $0x32] sm:$0xff]
        %v2891 = vld [vmem:[%s747 + $0x3a] sm:$0xff]
        %v2892 = vld [vmem:[%s747 + $0x4a] sm:$0xff]
        %v2893 = vld [vmem:[%s747 + $0x52] sm:$0xff]
        %v2894 = vld [vmem:[%s747 + $0x62] sm:$0xff]
        %v2895 = vld [vmem:[%s747 + $0x6a] sm:$0xff]
        %v2896 = vld [vmem:[%s747 + $0x7a] sm:$0xff]
        %v2897 = vld [vmem:[%s747 + $0x82] sm:$0xff]
        %v2898 = vld [vmem:[%s747 + $0x92] sm:$0xff]
        %v2899 = vld [vmem:[%s747 + $0x9a] sm:$0xff]
        %v2900 = vld [vmem:[%s747 + $0xaa] sm:$0xff]
        %v2901 = vld [vmem:[%s747 + $0xb2] sm:$0xff]
        %v2902 = vld [vmem:[%s747 + $0xc2] sm:$0xff]
        %v2903 = vld [vmem:[%s747 + $0xca] sm:$0xff]
        %v2904 = vld [vmem:[%s747 + $0xda] sm:$0xff]
        %v2905 = vld [vmem:[%s747 + $0xe2] sm:$0xff]
        %v2906 = vld [vmem:[%s747 + $0xf2] sm:$0xff]
        %v2907 = vld [vmem:[%s747 + $0xfa] sm:$0xff]
        %v2908 = vld [vmem:[%s747 + $0x10a] sm:$0xff]
        %v2909 = vld [vmem:[%s747 + $0x112] sm:$0xff]
        %v2910 = vld [vmem:[%s747 + $0x122] sm:$0xff]
        %v2911 = vld [vmem:[%s747 + $0x12a] sm:$0xff]
        %v2912 = vld [vmem:[%s747 + $0x13a] sm:$0xff]
        %v2913 = vld [vmem:[%s747 + $0x142] sm:$0xff]
        %v2914 = vld [vmem:[%s747 + $0x152] sm:$0xff]
        %v2915 = vld [vmem:[%s747 + $0x15a] sm:$0xff]
        %v2916 = vld [vmem:[%s747 + $0x16a] sm:$0xff]
        %v2917 = vld [vmem:[%s747 + $0x172] sm:$0xff]
        %s2918 = scalar_lea.vmem %s2, 20
        %v2919 = vld [vmem:[%s2918] sm:$0xf]
        %v2921 = vsel %vm748, %v2886, 0
        %v2924 = vsel %vm748, %v2887, 0
        %v2927 = vsel %vm748, %v2888, 0
        %v2930 = vsel %vm748, %v2889, 0
        %v2933 = vsel %vm748, %v2890, 0
        %v2936 = vsel %vm748, %v2891, 0
        %v2939 = vsel %vm748, %v2892, 0
        %v2942 = vsel %vm748, %v2893, 0
        %v2945 = vsel %vm748, %v2894, 0
        %v2948 = vsel %vm748, %v2895, 0
        %v2951 = vsel %vm748, %v2896, 0
        %v2954 = vsel %vm748, %v2897, 0
        %v2957 = vsel %vm748, %v2898, 0
        %v2960 = vsel %vm748, %v2899, 0
        %v2963 = vsel %vm748, %v2900, 0
        %v2966 = vsel %vm748, %v2901, 0
        %v2969 = vsel %vm748, %v2902, 0
        %v2972 = vsel %vm748, %v2903, 0
        %v2975 = vsel %vm748, %v2904, 0
        %v2978 = vsel %vm748, %v2905, 0
        %v2981 = vsel %vm748, %v2906, 0
        %v2984 = vsel %vm748, %v2907, 0
        %v2987 = vsel %vm748, %v2908, 0
        %v2990 = vsel %vm748, %v2909, 0
        %v2993 = vsel %vm748, %v2910, 0
        %v2996 = vsel %vm748, %v2911, 0
        %v2999 = vsel %vm748, %v2912, 0
        %v3002 = vsel %vm748, %v2913, 0
        %v3005 = vsel %vm748, %v2914, 0
        %v3008 = vsel %vm748, %v2915, 0
        %v3011 = vsel %vm748, %v2916, 0
        %v3014 = vsel %vm748, %v2917, 0
        %v3017 = vsel %vm1163, %v2919, 0
        %3019 = vmatprep.subr.mxu0 0.0
        %3020 = vmatpush1.msra.mxu0 0.0
        %3021 = vmatprep.subr.mxu0 0.0
        %3022 = vmatpush1.msra.mxu0 0.0
        %3023 = vmatprep.subr.mxu0 0.0
        %3024 = vmatpush1.msra.mxu0 0.0
        %3025 = vmatprep.subr.mxu0 0.0
        %3026 = vmatpush1.msra.mxu0 0.0
        %3027 = vmatprep.subr.mxu0 0.0
        %3028 = vmatpush1.msra.mxu0 0.0
        %3029 = vmatprep.subr.mxu0 0.0
        %3030 = vmatpush1.msra.mxu0 0.0
        %3031 = vmatprep.subr.mxu0 0.0
        %3032 = vmatpush1.msra.mxu0 0.0
        %3033 = vmatprep.subr.mxu0 0.0
        %3034 = vmatpush1.msra.mxu0 0.0
        %3035 = vmatprep.subr.mxu0 0.0
        %3036 = vmatpush1.msra.mxu0 0.0
        %3037 = vmatprep.subr.mxu0 0.0
        %3038 = vmatpush1.msra.mxu0 0.0
        %3039 = vmatprep.subr.mxu0 0.0
        %3040 = vmatpush1.msra.mxu0 0.0
        %3041 = vmatprep.subr.mxu0 0.0
        %3042 = vmatpush1.msra.mxu0 0.0
        %3043 = vmatprep.subr.mxu0 0.0
        %3044 = vmatpush1.msra.mxu0 0.0
        %3045 = vmatprep.subr.mxu0 0.0
        %3046 = vmatpush1.msra.mxu0 0.0
        %3047 = vmatprep.subr.mxu0 0.0
        %3048 = vmatpush1.msra.mxu0 0.0
        %3049 = vmatprep.subr.mxu0 0.0
        %3050 = vmatpush1.msra.mxu0 %v3017
        %3051 = vmatprep.subr.mxu0 0.0
        %3052 = vmatpush2.msra.mxu0 0.0
        %3053 = vmatprep.subr.mxu0 0.0
        %3054 = vmatpush2.msra.mxu0 0.0
        %3055 = vmatprep.subr.mxu0 0.0
        %3056 = vmatpush2.msra.mxu0 0.0
        %3057 = vmatprep.subr.mxu0 0.0
        %3058 = vmatpush2.msra.mxu0 0.0
        %3059 = vmatprep.subr.mxu0 0.0
        %3060 = vmatpush2.msra.mxu0 0.0
        %3061 = vmatprep.subr.mxu0 0.0
        %3062 = vmatpush2.msra.mxu0 0.0
        %3063 = vmatprep.subr.mxu0 0.0
        %3064 = vmatpush2.msra.mxu0 0.0
        %3065 = vmatprep.subr.mxu0 0.0
        %3066 = vmatpush2.msra.mxu0 0.0
        %3067 = vmatprep.subr.mxu0 0.0
        %3068 = vmatpush2.msra.mxu0 0.0
        %3069 = vmatprep.subr.mxu0 0.0
        %3070 = vmatpush2.msra.mxu0 0.0
        %3071 = vmatprep.subr.mxu0 0.0
        %3072 = vmatpush2.msra.mxu0 0.0
        %3073 = vmatprep.subr.mxu0 0.0
        %3074 = vmatpush2.msra.mxu0 0.0
        %3075 = vmatprep.subr.mxu0 0.0
        %3076 = vmatpush2.msra.mxu0 0.0
        %3077 = vmatprep.subr.mxu0 0.0
        %3078 = vmatpush2.msra.mxu0 0.0
        %3079 = vmatprep.subr.mxu0 0.0
        %3080 = vmatpush2.msra.mxu0 0.0
        %3081 = vmatprep.subr.mxu0 0.0
        %3082 = vmatpush2.msra.mxu0 0.0
        %3083 = vmatprep.mubr.f32.mxu0 0.0
        %3084 = vmatmul.mubr.f32.gmra.mxu0 %v2921
        %v3085 = vpop.f32.mrf.mxu0
        %v3086 = vadd.f32 0.0, %v3085
        %v3087 = vpop.f32.mrf.mxu0
        %3088 = vmatprep.mubr.f32.mxu0 0.0
        %3089 = vmatmul.mubr.f32.gmra.mxu0 %v2924
        %v3090 = vpop.f32.mrf.mxu0
        %v3091 = vadd.f32 0.0, %v3090
        %v3092 = vpop.f32.mrf.mxu0
        %3093 = vmatprep.mubr.f32.mxu0 0.0
        %3094 = vmatmul.mubr.f32.gmra.mxu0 %v2927
        %v3095 = vpop.f32.mrf.mxu0
        %v3096 = vadd.f32 0.0, %v3095
        %v3097 = vpop.f32.mrf.mxu0
        %3098 = vmatprep.mubr.f32.mxu0 0.0
        %3099 = vmatmul.mubr.f32.gmra.mxu0 %v2930
        %v3100 = vpop.f32.mrf.mxu0
        %v3101 = vadd.f32 0.0, %v3100
        %v3102 = vpop.f32.mrf.mxu0
        %3103 = vmatprep.mubr.f32.mxu0 0.0
        %3104 = vmatmul.mubr.f32.gmra.mxu0 %v2933
        %v3105 = vpop.f32.mrf.mxu0
        %v3106 = vadd.f32 0.0, %v3105
        %v3107 = vpop.f32.mrf.mxu0
        %3108 = vmatprep.mubr.f32.mxu0 0.0
        %3109 = vmatmul.mubr.f32.gmra.mxu0 %v2936
        %v3110 = vpop.f32.mrf.mxu0
        %v3111 = vadd.f32 0.0, %v3110
        %v3112 = vpop.f32.mrf.mxu0
        %3113 = vmatprep.mubr.f32.mxu0 0.0
        %3114 = vmatmul.mubr.f32.gmra.mxu0 %v2939
        %v3115 = vpop.f32.mrf.mxu0
        %v3116 = vadd.f32 0.0, %v3115
        %v3117 = vpop.f32.mrf.mxu0
        %3118 = vmatprep.mubr.f32.mxu0 0.0
        %3119 = vmatmul.mubr.f32.gmra.mxu0 %v2942
        %v3120 = vpop.f32.mrf.mxu0
        %v3121 = vadd.f32 0.0, %v3120
        %v3122 = vpop.f32.mrf.mxu0
        %3123 = vmatprep.mubr.f32.mxu0 0.0
        %3124 = vmatmul.mubr.f32.gmra.mxu0 %v2945
        %v3125 = vpop.f32.mrf.mxu0
        %v3126 = vadd.f32 0.0, %v3125
        %v3127 = vpop.f32.mrf.mxu0
        %3128 = vmatprep.mubr.f32.mxu0 0.0
        %3129 = vmatmul.mubr.f32.gmra.mxu0 %v2948
        %v3130 = vpop.f32.mrf.mxu0
        %v3131 = vadd.f32 0.0, %v3130
        %v3132 = vpop.f32.mrf.mxu0
        %3133 = vmatprep.mubr.f32.mxu0 0.0
        %3134 = vmatmul.mubr.f32.gmra.mxu0 %v2951
        %v3135 = vpop.f32.mrf.mxu0
        %v3136 = vadd.f32 0.0, %v3135
        %v3137 = vpop.f32.mrf.mxu0
        %3138 = vmatprep.mubr.f32.mxu0 0.0
        %3139 = vmatmul.mubr.f32.gmra.mxu0 %v2954
        %v3140 = vpop.f32.mrf.mxu0
        %v3141 = vadd.f32 0.0, %v3140
        %v3142 = vpop.f32.mrf.mxu0
        %3143 = vmatprep.mubr.f32.mxu0 0.0
        %3144 = vmatmul.mubr.f32.gmra.mxu0 %v2957
        %v3145 = vpop.f32.mrf.mxu0
        %v3146 = vadd.f32 0.0, %v3145
        %v3147 = vpop.f32.mrf.mxu0
        %3148 = vmatprep.mubr.f32.mxu0 0.0
        %3149 = vmatmul.mubr.f32.gmra.mxu0 %v2960
        %v3150 = vpop.f32.mrf.mxu0
        %v3151 = vadd.f32 0.0, %v3150
        %v3152 = vpop.f32.mrf.mxu0
        %3153 = vmatprep.mubr.f32.mxu0 0.0
        %3154 = vmatmul.mubr.f32.gmra.mxu0 %v2963
        %v3155 = vpop.f32.mrf.mxu0
        %v3156 = vadd.f32 0.0, %v3155
        %v3157 = vpop.f32.mrf.mxu0
        %3158 = vmatprep.mubr.f32.mxu0 0.0
        %3159 = vmatmul.mubr.f32.gmra.mxu0 %v2966
        %v3160 = vpop.f32.mrf.mxu0
        %v3161 = vadd.f32 0.0, %v3160
        %v3162 = vpop.f32.mrf.mxu0
        %3163 = vmatprep.mubr.f32.mxu0 0.0
        %3164 = vmatmul.mubr.f32.gmra.mxu0 %v2969
        %v3165 = vpop.f32.mrf.mxu0
        %v3166 = vadd.f32 0.0, %v3165
        %v3167 = vpop.f32.mrf.mxu0
        %3168 = vmatprep.mubr.f32.mxu0 0.0
        %3169 = vmatmul.mubr.f32.gmra.mxu0 %v2972
        %v3170 = vpop.f32.mrf.mxu0
        %v3171 = vadd.f32 0.0, %v3170
        %v3172 = vpop.f32.mrf.mxu0
        %3173 = vmatprep.mubr.f32.mxu0 0.0
        %3174 = vmatmul.mubr.f32.gmra.mxu0 %v2975
        %v3175 = vpop.f32.mrf.mxu0
        %v3176 = vadd.f32 0.0, %v3175
        %v3177 = vpop.f32.mrf.mxu0
        %3178 = vmatprep.mubr.f32.mxu0 0.0
        %3179 = vmatmul.mubr.f32.gmra.mxu0 %v2978
        %v3180 = vpop.f32.mrf.mxu0
        %v3181 = vadd.f32 0.0, %v3180
        %v3182 = vpop.f32.mrf.mxu0
        %3183 = vmatprep.mubr.f32.mxu0 0.0
        %3184 = vmatmul.mubr.f32.gmra.mxu0 %v2981
        %v3185 = vpop.f32.mrf.mxu0
        %v3186 = vadd.f32 0.0, %v3185
        %v3187 = vpop.f32.mrf.mxu0
        %3188 = vmatprep.mubr.f32.mxu0 0.0
        %3189 = vmatmul.mubr.f32.gmra.mxu0 %v2984
        %v3190 = vpop.f32.mrf.mxu0
        %v3191 = vadd.f32 0.0, %v3190
        %v3192 = vpop.f32.mrf.mxu0
        %3193 = vmatprep.mubr.f32.mxu0 0.0
        %3194 = vmatmul.mubr.f32.gmra.mxu0 %v2987
        %v3195 = vpop.f32.mrf.mxu0
        %v3196 = vadd.f32 0.0, %v3195
        %v3197 = vpop.f32.mrf.mxu0
        %3198 = vmatprep.mubr.f32.mxu0 0.0
        %3199 = vmatmul.mubr.f32.gmra.mxu0 %v2990
        %v3200 = vpop.f32.mrf.mxu0
        %v3201 = vadd.f32 0.0, %v3200
        %v3202 = vpop.f32.mrf.mxu0
        %3203 = vmatprep.mubr.f32.mxu0 0.0
        %3204 = vmatmul.mubr.f32.gmra.mxu0 %v2993
        %v3205 = vpop.f32.mrf.mxu0
        %v3206 = vadd.f32 0.0, %v3205
        %v3207 = vpop.f32.mrf.mxu0
        %3208 = vmatprep.mubr.f32.mxu0 0.0
        %3209 = vmatmul.mubr.f32.gmra.mxu0 %v2996
        %v3210 = vpop.f32.mrf.mxu0
        %v3211 = vadd.f32 0.0, %v3210
        %v3212 = vpop.f32.mrf.mxu0
        %3213 = vmatprep.mubr.f32.mxu0 0.0
        %3214 = vmatmul.mubr.f32.gmra.mxu0 %v2999
        %v3215 = vpop.f32.mrf.mxu0
        %v3216 = vadd.f32 0.0, %v3215
        %v3217 = vpop.f32.mrf.mxu0
        %3218 = vmatprep.mubr.f32.mxu0 0.0
        %3219 = vmatmul.mubr.f32.gmra.mxu0 %v3002
        %v3220 = vpop.f32.mrf.mxu0
        %v3221 = vadd.f32 0.0, %v3220
        %v3222 = vpop.f32.mrf.mxu0
        %3223 = vmatprep.mubr.f32.mxu0 0.0
        %3224 = vmatmul.mubr.f32.gmra.mxu0 %v3005
        %v3225 = vpop.f32.mrf.mxu0
        %v3226 = vadd.f32 0.0, %v3225
        %v3227 = vpop.f32.mrf.mxu0
        %3228 = vmatprep.mubr.f32.mxu0 0.0
        %3229 = vmatmul.mubr.f32.gmra.mxu0 %v3008
        %v3230 = vpop.f32.mrf.mxu0
        %v3231 = vadd.f32 0.0, %v3230
        %v3232 = vpop.f32.mrf.mxu0
        %3233 = vmatprep.mubr.f32.mxu0 0.0
        %3234 = vmatmul.mubr.f32.gmra.mxu0 %v3011
        %v3235 = vpop.f32.mrf.mxu0
        %v3236 = vadd.f32 0.0, %v3235
        %v3237 = vpop.f32.mrf.mxu0
        %3238 = vmatprep.mubr.f32.mxu0 0.0
        %3239 = vmatmul.mubr.f32.gmra.mxu0 %v3014
        %v3240 = vpop.f32.mrf.mxu0
        %v3241 = vadd.f32 0.0, %v3240
        %v3242 = vpop.f32.mrf.mxu0
        %3243 = vdwg.mxu0
        %v3244 = vadd.f32 %v2854, %v3086
        %v3245 = vadd.f32 %v2855, %v3091
        %v3246 = vadd.f32 %v2856, %v3096
        %v3247 = vadd.f32 %v2857, %v3101
        %v3248 = vadd.f32 %v2858, %v3106
        %v3249 = vadd.f32 %v2859, %v3111
        %v3250 = vadd.f32 %v2860, %v3116
        %v3251 = vadd.f32 %v2861, %v3121
        %v3252 = vadd.f32 %v2862, %v3126
        %v3253 = vadd.f32 %v2863, %v3131
        %v3254 = vadd.f32 %v2864, %v3136
        %v3255 = vadd.f32 %v2865, %v3141
        %v3256 = vadd.f32 %v2866, %v3146
        %v3257 = vadd.f32 %v2867, %v3151
        %v3258 = vadd.f32 %v2868, %v3156
        %v3259 = vadd.f32 %v2869, %v3161
        %v3260 = vadd.f32 %v2870, %v3166
        %v3261 = vadd.f32 %v2871, %v3171
        %v3262 = vadd.f32 %v2872, %v3176
        %v3263 = vadd.f32 %v2873, %v3181
        %v3264 = vadd.f32 %v2874, %v3186
        %v3265 = vadd.f32 %v2875, %v3191
        %v3266 = vadd.f32 %v2876, %v3196
        %v3267 = vadd.f32 %v2877, %v3201
        %v3268 = vadd.f32 %v2878, %v3206
        %v3269 = vadd.f32 %v2879, %v3211
        %v3270 = vadd.f32 %v2880, %v3216
        %v3271 = vadd.f32 %v2881, %v3221
        %v3272 = vadd.f32 %v2882, %v3226
        %v3273 = vadd.f32 %v2883, %v3231
        %v3274 = vadd.f32 %v2884, %v3236
        %v3275 = vadd.f32 %v2885, %v3241
        %s3276 = scalar_lea.vmem [#allocation2], 48
        %v3277 = vld [vmem:[%s3276] sm:$0xff]
        %v3278 = vld [vmem:[%s3276 + $0x8] sm:$0xff]
        %v3279 = vld [vmem:[%s3276 + $0x18] sm:$0xff]
        %v3280 = vld [vmem:[%s3276 + $0x20] sm:$0xff]
        %v3281 = vld [vmem:[%s3276 + $0x30] sm:$0xff]
        %v3282 = vld [vmem:[%s3276 + $0x38] sm:$0xff]
        %v3283 = vld [vmem:[%s3276 + $0x48] sm:$0xff]
        %v3284 = vld [vmem:[%s3276 + $0x50] sm:$0xff]
        %v3285 = vld [vmem:[%s3276 + $0x60] sm:$0xff]
        %v3286 = vld [vmem:[%s3276 + $0x68] sm:$0xff]
        %v3287 = vld [vmem:[%s3276 + $0x78] sm:$0xff]
        %v3288 = vld [vmem:[%s3276 + $0x80] sm:$0xff]
        %v3289 = vld [vmem:[%s3276 + $0x90] sm:$0xff]
        %v3290 = vld [vmem:[%s3276 + $0x98] sm:$0xff]
        %v3291 = vld [vmem:[%s3276 + $0xa8] sm:$0xff]
        %v3292 = vld [vmem:[%s3276 + $0xb0] sm:$0xff]
        %v3293 = vld [vmem:[%s3276 + $0xc0] sm:$0xff]
        %v3294 = vld [vmem:[%s3276 + $0xc8] sm:$0xff]
        %v3295 = vld [vmem:[%s3276 + $0xd8] sm:$0xff]
        %v3296 = vld [vmem:[%s3276 + $0xe0] sm:$0xff]
        %v3297 = vld [vmem:[%s3276 + $0xf0] sm:$0xff]
        %v3298 = vld [vmem:[%s3276 + $0xf8] sm:$0xff]
        %v3299 = vld [vmem:[%s3276 + $0x108] sm:$0xff]
        %v3300 = vld [vmem:[%s3276 + $0x110] sm:$0xff]
        %v3301 = vld [vmem:[%s3276 + $0x120] sm:$0xff]
        %v3302 = vld [vmem:[%s3276 + $0x128] sm:$0xff]
        %v3303 = vld [vmem:[%s3276 + $0x138] sm:$0xff]
        %v3304 = vld [vmem:[%s3276 + $0x140] sm:$0xff]
        %v3305 = vld [vmem:[%s3276 + $0x150] sm:$0xff]
        %v3306 = vld [vmem:[%s3276 + $0x158] sm:$0xff]
        %v3307 = vld [vmem:[%s3276 + $0x168] sm:$0xff]
        %v3308 = vld [vmem:[%s3276 + $0x170] sm:$0xff]
        %s3309 = scalar_lea.vmem %s2, 24
        %v3310 = vld [vmem:[%s3309] sm:$0xf]
        %v3312 = vsel %vm748, %v3277, 0
        %v3315 = vsel %vm748, %v3278, 0
        %v3318 = vsel %vm748, %v3279, 0
        %v3321 = vsel %vm748, %v3280, 0
        %v3324 = vsel %vm748, %v3281, 0
        %v3327 = vsel %vm748, %v3282, 0
        %v3330 = vsel %vm748, %v3283, 0
        %v3333 = vsel %vm748, %v3284, 0
        %v3336 = vsel %vm748, %v3285, 0
        %v3339 = vsel %vm748, %v3286, 0
        %v3342 = vsel %vm748, %v3287, 0
        %v3345 = vsel %vm748, %v3288, 0
        %v3348 = vsel %vm748, %v3289, 0
        %v3351 = vsel %vm748, %v3290, 0
        %v3354 = vsel %vm748, %v3291, 0
        %v3357 = vsel %vm748, %v3292, 0
        %v3360 = vsel %vm748, %v3293, 0
        %v3363 = vsel %vm748, %v3294, 0
        %v3366 = vsel %vm748, %v3295, 0
        %v3369 = vsel %vm748, %v3296, 0
        %v3372 = vsel %vm748, %v3297, 0
        %v3375 = vsel %vm748, %v3298, 0
        %v3378 = vsel %vm748, %v3299, 0
        %v3381 = vsel %vm748, %v3300, 0
        %v3384 = vsel %vm748, %v3301, 0
        %v3387 = vsel %vm748, %v3302, 0
        %v3390 = vsel %vm748, %v3303, 0
        %v3393 = vsel %vm748, %v3304, 0
        %v3396 = vsel %vm748, %v3305, 0
        %v3399 = vsel %vm748, %v3306, 0
        %v3402 = vsel %vm748, %v3307, 0
        %v3405 = vsel %vm748, %v3308, 0
        %v3408 = vsel %vm1163, %v3310, 0
        %3410 = vmatprep.subr.mxu0 0.0
        %3411 = vmatpush1.msra.mxu0 0.0
        %3412 = vmatprep.subr.mxu0 0.0
        %3413 = vmatpush1.msra.mxu0 0.0
        %3414 = vmatprep.subr.mxu0 0.0
        %3415 = vmatpush1.msra.mxu0 0.0
        %3416 = vmatprep.subr.mxu0 0.0
        %3417 = vmatpush1.msra.mxu0 0.0
        %3418 = vmatprep.subr.mxu0 0.0
        %3419 = vmatpush1.msra.mxu0 0.0
        %3420 = vmatprep.subr.mxu0 0.0
        %3421 = vmatpush1.msra.mxu0 0.0
        %3422 = vmatprep.subr.mxu0 0.0
        %3423 = vmatpush1.msra.mxu0 0.0
        %3424 = vmatprep.subr.mxu0 0.0
        %3425 = vmatpush1.msra.mxu0 0.0
        %3426 = vmatprep.subr.mxu0 0.0
        %3427 = vmatpush1.msra.mxu0 0.0
        %3428 = vmatprep.subr.mxu0 0.0
        %3429 = vmatpush1.msra.mxu0 0.0
        %3430 = vmatprep.subr.mxu0 0.0
        %3431 = vmatpush1.msra.mxu0 0.0
        %3432 = vmatprep.subr.mxu0 0.0
        %3433 = vmatpush1.msra.mxu0 0.0
        %3434 = vmatprep.subr.mxu0 0.0
        %3435 = vmatpush1.msra.mxu0 0.0
        %3436 = vmatprep.subr.mxu0 0.0
        %3437 = vmatpush1.msra.mxu0 0.0
        %3438 = vmatprep.subr.mxu0 0.0
        %3439 = vmatpush1.msra.mxu0 0.0
        %3440 = vmatprep.subr.mxu0 0.0
        %3441 = vmatpush1.msra.mxu0 %v3408
        %3442 = vmatprep.subr.mxu0 0.0
        %3443 = vmatpush2.msra.mxu0 0.0
        %3444 = vmatprep.subr.mxu0 0.0
        %3445 = vmatpush2.msra.mxu0 0.0
        %3446 = vmatprep.subr.mxu0 0.0
        %3447 = vmatpush2.msra.mxu0 0.0
        %3448 = vmatprep.subr.mxu0 0.0
        %3449 = vmatpush2.msra.mxu0 0.0
        %3450 = vmatprep.subr.mxu0 0.0
        %3451 = vmatpush2.msra.mxu0 0.0
        %3452 = vmatprep.subr.mxu0 0.0
        %3453 = vmatpush2.msra.mxu0 0.0
        %3454 = vmatprep.subr.mxu0 0.0
        %3455 = vmatpush2.msra.mxu0 0.0
        %3456 = vmatprep.subr.mxu0 0.0
        %3457 = vmatpush2.msra.mxu0 0.0
        %3458 = vmatprep.subr.mxu0 0.0
        %3459 = vmatpush2.msra.mxu0 0.0
        %3460 = vmatprep.subr.mxu0 0.0
        %3461 = vmatpush2.msra.mxu0 0.0
        %3462 = vmatprep.subr.mxu0 0.0
        %3463 = vmatpush2.msra.mxu0 0.0
        %3464 = vmatprep.subr.mxu0 0.0
        %3465 = vmatpush2.msra.mxu0 0.0
        %3466 = vmatprep.subr.mxu0 0.0
        %3467 = vmatpush2.msra.mxu0 0.0
        %3468 = vmatprep.subr.mxu0 0.0
        %3469 = vmatpush2.msra.mxu0 0.0
        %3470 = vmatprep.subr.mxu0 0.0
        %3471 = vmatpush2.msra.mxu0 0.0
        %3472 = vmatprep.subr.mxu0 0.0
        %3473 = vmatpush2.msra.mxu0 0.0
        %3474 = vmatprep.mubr.f32.mxu0 0.0
        %3475 = vmatmul.mubr.f32.gmra.mxu0 %v3312
        %v3476 = vpop.f32.mrf.mxu0
        %v3477 = vadd.f32 0.0, %v3476
        %v3478 = vpop.f32.mrf.mxu0
        %3479 = vmatprep.mubr.f32.mxu0 0.0
        %3480 = vmatmul.mubr.f32.gmra.mxu0 %v3315
        %v3481 = vpop.f32.mrf.mxu0
        %v3482 = vadd.f32 0.0, %v3481
        %v3483 = vpop.f32.mrf.mxu0
        %3484 = vmatprep.mubr.f32.mxu0 0.0
        %3485 = vmatmul.mubr.f32.gmra.mxu0 %v3318
        %v3486 = vpop.f32.mrf.mxu0
        %v3487 = vadd.f32 0.0, %v3486
        %v3488 = vpop.f32.mrf.mxu0
        %3489 = vmatprep.mubr.f32.mxu0 0.0
        %3490 = vmatmul.mubr.f32.gmra.mxu0 %v3321
        %v3491 = vpop.f32.mrf.mxu0
        %v3492 = vadd.f32 0.0, %v3491
        %v3493 = vpop.f32.mrf.mxu0
        %3494 = vmatprep.mubr.f32.mxu0 0.0
        %3495 = vmatmul.mubr.f32.gmra.mxu0 %v3324
        %v3496 = vpop.f32.mrf.mxu0
        %v3497 = vadd.f32 0.0, %v3496
        %v3498 = vpop.f32.mrf.mxu0
        %3499 = vmatprep.mubr.f32.mxu0 0.0
        %3500 = vmatmul.mubr.f32.gmra.mxu0 %v3327
        %v3501 = vpop.f32.mrf.mxu0
        %v3502 = vadd.f32 0.0, %v3501
        %v3503 = vpop.f32.mrf.mxu0
        %3504 = vmatprep.mubr.f32.mxu0 0.0
        %3505 = vmatmul.mubr.f32.gmra.mxu0 %v3330
        %v3506 = vpop.f32.mrf.mxu0
        %v3507 = vadd.f32 0.0, %v3506
        %v3508 = vpop.f32.mrf.mxu0
        %3509 = vmatprep.mubr.f32.mxu0 0.0
        %3510 = vmatmul.mubr.f32.gmra.mxu0 %v3333
        %v3511 = vpop.f32.mrf.mxu0
        %v3512 = vadd.f32 0.0, %v3511
        %v3513 = vpop.f32.mrf.mxu0
        %3514 = vmatprep.mubr.f32.mxu0 0.0
        %3515 = vmatmul.mubr.f32.gmra.mxu0 %v3336
        %v3516 = vpop.f32.mrf.mxu0
        %v3517 = vadd.f32 0.0, %v3516
        %v3518 = vpop.f32.mrf.mxu0
        %3519 = vmatprep.mubr.f32.mxu0 0.0
        %3520 = vmatmul.mubr.f32.gmra.mxu0 %v3339
        %v3521 = vpop.f32.mrf.mxu0
        %v3522 = vadd.f32 0.0, %v3521
        %v3523 = vpop.f32.mrf.mxu0
        %3524 = vmatprep.mubr.f32.mxu0 0.0
        %3525 = vmatmul.mubr.f32.gmra.mxu0 %v3342
        %v3526 = vpop.f32.mrf.mxu0
        %v3527 = vadd.f32 0.0, %v3526
        %v3528 = vpop.f32.mrf.mxu0
        %3529 = vmatprep.mubr.f32.mxu0 0.0
        %3530 = vmatmul.mubr.f32.gmra.mxu0 %v3345
        %v3531 = vpop.f32.mrf.mxu0
        %v3532 = vadd.f32 0.0, %v3531
        %v3533 = vpop.f32.mrf.mxu0
        %3534 = vmatprep.mubr.f32.mxu0 0.0
        %3535 = vmatmul.mubr.f32.gmra.mxu0 %v3348
        %v3536 = vpop.f32.mrf.mxu0
        %v3537 = vadd.f32 0.0, %v3536
        %v3538 = vpop.f32.mrf.mxu0
        %3539 = vmatprep.mubr.f32.mxu0 0.0
        %3540 = vmatmul.mubr.f32.gmra.mxu0 %v3351
        %v3541 = vpop.f32.mrf.mxu0
        %v3542 = vadd.f32 0.0, %v3541
        %v3543 = vpop.f32.mrf.mxu0
        %3544 = vmatprep.mubr.f32.mxu0 0.0
        %3545 = vmatmul.mubr.f32.gmra.mxu0 %v3354
        %v3546 = vpop.f32.mrf.mxu0
        %v3547 = vadd.f32 0.0, %v3546
        %v3548 = vpop.f32.mrf.mxu0
        %3549 = vmatprep.mubr.f32.mxu0 0.0
        %3550 = vmatmul.mubr.f32.gmra.mxu0 %v3357
        %v3551 = vpop.f32.mrf.mxu0
        %v3552 = vadd.f32 0.0, %v3551
        %v3553 = vpop.f32.mrf.mxu0
        %3554 = vmatprep.mubr.f32.mxu0 0.0
        %3555 = vmatmul.mubr.f32.gmra.mxu0 %v3360
        %v3556 = vpop.f32.mrf.mxu0
        %v3557 = vadd.f32 0.0, %v3556
        %v3558 = vpop.f32.mrf.mxu0
        %3559 = vmatprep.mubr.f32.mxu0 0.0
        %3560 = vmatmul.mubr.f32.gmra.mxu0 %v3363
        %v3561 = vpop.f32.mrf.mxu0
        %v3562 = vadd.f32 0.0, %v3561
        %v3563 = vpop.f32.mrf.mxu0
        %3564 = vmatprep.mubr.f32.mxu0 0.0
        %3565 = vmatmul.mubr.f32.gmra.mxu0 %v3366
        %v3566 = vpop.f32.mrf.mxu0
        %v3567 = vadd.f32 0.0, %v3566
        %v3568 = vpop.f32.mrf.mxu0
        %3569 = vmatprep.mubr.f32.mxu0 0.0
        %3570 = vmatmul.mubr.f32.gmra.mxu0 %v3369
        %v3571 = vpop.f32.mrf.mxu0
        %v3572 = vadd.f32 0.0, %v3571
        %v3573 = vpop.f32.mrf.mxu0
        %3574 = vmatprep.mubr.f32.mxu0 0.0
        %3575 = vmatmul.mubr.f32.gmra.mxu0 %v3372
        %v3576 = vpop.f32.mrf.mxu0
        %v3577 = vadd.f32 0.0, %v3576
        %v3578 = vpop.f32.mrf.mxu0
        %3579 = vmatprep.mubr.f32.mxu0 0.0
        %3580 = vmatmul.mubr.f32.gmra.mxu0 %v3375
        %v3581 = vpop.f32.mrf.mxu0
        %v3582 = vadd.f32 0.0, %v3581
        %v3583 = vpop.f32.mrf.mxu0
        %3584 = vmatprep.mubr.f32.mxu0 0.0
        %3585 = vmatmul.mubr.f32.gmra.mxu0 %v3378
        %v3586 = vpop.f32.mrf.mxu0
        %v3587 = vadd.f32 0.0, %v3586
        %v3588 = vpop.f32.mrf.mxu0
        %3589 = vmatprep.mubr.f32.mxu0 0.0
        %3590 = vmatmul.mubr.f32.gmra.mxu0 %v3381
        %v3591 = vpop.f32.mrf.mxu0
        %v3592 = vadd.f32 0.0, %v3591
        %v3593 = vpop.f32.mrf.mxu0
        %3594 = vmatprep.mubr.f32.mxu0 0.0
        %3595 = vmatmul.mubr.f32.gmra.mxu0 %v3384
        %v3596 = vpop.f32.mrf.mxu0
        %v3597 = vadd.f32 0.0, %v3596
        %v3598 = vpop.f32.mrf.mxu0
        %3599 = vmatprep.mubr.f32.mxu0 0.0
        %3600 = vmatmul.mubr.f32.gmra.mxu0 %v3387
        %v3601 = vpop.f32.mrf.mxu0
        %v3602 = vadd.f32 0.0, %v3601
        %v3603 = vpop.f32.mrf.mxu0
        %3604 = vmatprep.mubr.f32.mxu0 0.0
        %3605 = vmatmul.mubr.f32.gmra.mxu0 %v3390
        %v3606 = vpop.f32.mrf.mxu0
        %v3607 = vadd.f32 0.0, %v3606
        %v3608 = vpop.f32.mrf.mxu0
        %3609 = vmatprep.mubr.f32.mxu0 0.0
        %3610 = vmatmul.mubr.f32.gmra.mxu0 %v3393
        %v3611 = vpop.f32.mrf.mxu0
        %v3612 = vadd.f32 0.0, %v3611
        %v3613 = vpop.f32.mrf.mxu0
        %3614 = vmatprep.mubr.f32.mxu0 0.0
        %3615 = vmatmul.mubr.f32.gmra.mxu0 %v3396
        %v3616 = vpop.f32.mrf.mxu0
        %v3617 = vadd.f32 0.0, %v3616
        %v3618 = vpop.f32.mrf.mxu0
        %3619 = vmatprep.mubr.f32.mxu0 0.0
        %3620 = vmatmul.mubr.f32.gmra.mxu0 %v3399
        %v3621 = vpop.f32.mrf.mxu0
        %v3622 = vadd.f32 0.0, %v3621
        %v3623 = vpop.f32.mrf.mxu0
        %3624 = vmatprep.mubr.f32.mxu0 0.0
        %3625 = vmatmul.mubr.f32.gmra.mxu0 %v3402
        %v3626 = vpop.f32.mrf.mxu0
        %v3627 = vadd.f32 0.0, %v3626
        %v3628 = vpop.f32.mrf.mxu0
        %3629 = vmatprep.mubr.f32.mxu0 0.0
        %3630 = vmatmul.mubr.f32.gmra.mxu0 %v3405
        %v3631 = vpop.f32.mrf.mxu0
        %v3632 = vadd.f32 0.0, %v3631
        %v3633 = vpop.f32.mrf.mxu0
        %3634 = vdwg.mxu0
        %v3635 = vadd.f32 %v3244, %v3477
        %v3636 = vadd.f32 %v3245, %v3482
        %v3637 = vadd.f32 %v3246, %v3487
        %v3638 = vadd.f32 %v3247, %v3492
        %v3639 = vadd.f32 %v3248, %v3497
        %v3640 = vadd.f32 %v3249, %v3502
        %v3641 = vadd.f32 %v3250, %v3507
        %v3642 = vadd.f32 %v3251, %v3512
        %v3643 = vadd.f32 %v3252, %v3517
        %v3644 = vadd.f32 %v3253, %v3522
        %v3645 = vadd.f32 %v3254, %v3527
        %v3646 = vadd.f32 %v3255, %v3532
        %v3647 = vadd.f32 %v3256, %v3537
        %v3648 = vadd.f32 %v3257, %v3542
        %v3649 = vadd.f32 %v3258, %v3547
        %v3650 = vadd.f32 %v3259, %v3552
        %v3651 = vadd.f32 %v3260, %v3557
        %v3652 = vadd.f32 %v3261, %v3562
        %v3653 = vadd.f32 %v3262, %v3567
        %v3654 = vadd.f32 %v3263, %v3572
        %v3655 = vadd.f32 %v3264, %v3577
        %v3656 = vadd.f32 %v3265, %v3582
        %v3657 = vadd.f32 %v3266, %v3587
        %v3658 = vadd.f32 %v3267, %v3592
        %v3659 = vadd.f32 %v3268, %v3597
        %v3660 = vadd.f32 %v3269, %v3602
        %v3661 = vadd.f32 %v3270, %v3607
        %v3662 = vadd.f32 %v3271, %v3612
        %v3663 = vadd.f32 %v3272, %v3617
        %v3664 = vadd.f32 %v3273, %v3622
        %v3665 = vadd.f32 %v3274, %v3627
        %v3666 = vadd.f32 %v3275, %v3632
        %v3667 = vld [vmem:[%s3276 + $0x1] sm:$0xff]
        %v3668 = vld [vmem:[%s3276 + $0x9] sm:$0xff]
        %v3669 = vld [vmem:[%s3276 + $0x19] sm:$0xff]
        %v3670 = vld [vmem:[%s3276 + $0x21] sm:$0xff]
        %v3671 = vld [vmem:[%s3276 + $0x31] sm:$0xff]
        %v3672 = vld [vmem:[%s3276 + $0x39] sm:$0xff]
        %v3673 = vld [vmem:[%s3276 + $0x49] sm:$0xff]
        %v3674 = vld [vmem:[%s3276 + $0x51] sm:$0xff]
        %v3675 = vld [vmem:[%s3276 + $0x61] sm:$0xff]
        %v3676 = vld [vmem:[%s3276 + $0x69] sm:$0xff]
        %v3677 = vld [vmem:[%s3276 + $0x79] sm:$0xff]
        %v3678 = vld [vmem:[%s3276 + $0x81] sm:$0xff]
        %v3679 = vld [vmem:[%s3276 + $0x91] sm:$0xff]
        %v3680 = vld [vmem:[%s3276 + $0x99] sm:$0xff]
        %v3681 = vld [vmem:[%s3276 + $0xa9] sm:$0xff]
        %v3682 = vld [vmem:[%s3276 + $0xb1] sm:$0xff]
        %v3683 = vld [vmem:[%s3276 + $0xc1] sm:$0xff]
        %v3684 = vld [vmem:[%s3276 + $0xc9] sm:$0xff]
        %v3685 = vld [vmem:[%s3276 + $0xd9] sm:$0xff]
        %v3686 = vld [vmem:[%s3276 + $0xe1] sm:$0xff]
        %v3687 = vld [vmem:[%s3276 + $0xf1] sm:$0xff]
        %v3688 = vld [vmem:[%s3276 + $0xf9] sm:$0xff]
        %v3689 = vld [vmem:[%s3276 + $0x109] sm:$0xff]
        %v3690 = vld [vmem:[%s3276 + $0x111] sm:$0xff]
        %v3691 = vld [vmem:[%s3276 + $0x121] sm:$0xff]
        %v3692 = vld [vmem:[%s3276 + $0x129] sm:$0xff]
        %v3693 = vld [vmem:[%s3276 + $0x139] sm:$0xff]
        %v3694 = vld [vmem:[%s3276 + $0x141] sm:$0xff]
        %v3695 = vld [vmem:[%s3276 + $0x151] sm:$0xff]
        %v3696 = vld [vmem:[%s3276 + $0x159] sm:$0xff]
        %v3697 = vld [vmem:[%s3276 + $0x169] sm:$0xff]
        %v3698 = vld [vmem:[%s3276 + $0x171] sm:$0xff]
        %s3699 = scalar_lea.vmem %s2, 28
        %v3700 = vld [vmem:[%s3699] sm:$0xf]
        %v3702 = vsel %vm748, %v3667, 0
        %v3705 = vsel %vm748, %v3668, 0
        %v3708 = vsel %vm748, %v3669, 0
        %v3711 = vsel %vm748, %v3670, 0
        %v3714 = vsel %vm748, %v3671, 0
        %v3717 = vsel %vm748, %v3672, 0
        %v3720 = vsel %vm748, %v3673, 0
        %v3723 = vsel %vm748, %v3674, 0
        %v3726 = vsel %vm748, %v3675, 0
        %v3729 = vsel %vm748, %v3676, 0
        %v3732 = vsel %vm748, %v3677, 0
        %v3735 = vsel %vm748, %v3678, 0
        %v3738 = vsel %vm748, %v3679, 0
        %v3741 = vsel %vm748, %v3680, 0
        %v3744 = vsel %vm748, %v3681, 0
        %v3747 = vsel %vm748, %v3682, 0
        %v3750 = vsel %vm748, %v3683, 0
        %v3753 = vsel %vm748, %v3684, 0
        %v3756 = vsel %vm748, %v3685, 0
        %v3759 = vsel %vm748, %v3686, 0
        %v3762 = vsel %vm748, %v3687, 0
        %v3765 = vsel %vm748, %v3688, 0
        %v3768 = vsel %vm748, %v3689, 0
        %v3771 = vsel %vm748, %v3690, 0
        %v3774 = vsel %vm748, %v3691, 0
        %v3777 = vsel %vm748, %v3692, 0
        %v3780 = vsel %vm748, %v3693, 0
        %v3783 = vsel %vm748, %v3694, 0
        %v3786 = vsel %vm748, %v3695, 0
        %v3789 = vsel %vm748, %v3696, 0
        %v3792 = vsel %vm748, %v3697, 0
        %v3795 = vsel %vm748, %v3698, 0
        %v3798 = vsel %vm1163, %v3700, 0
        %3800 = vmatprep.subr.mxu0 0.0
        %3801 = vmatpush1.msra.mxu0 0.0
        %3802 = vmatprep.subr.mxu0 0.0
        %3803 = vmatpush1.msra.mxu0 0.0
        %3804 = vmatprep.subr.mxu0 0.0
        %3805 = vmatpush1.msra.mxu0 0.0
        %3806 = vmatprep.subr.mxu0 0.0
        %3807 = vmatpush1.msra.mxu0 0.0
        %3808 = vmatprep.subr.mxu0 0.0
        %3809 = vmatpush1.msra.mxu0 0.0
        %3810 = vmatprep.subr.mxu0 0.0
        %3811 = vmatpush1.msra.mxu0 0.0
        %3812 = vmatprep.subr.mxu0 0.0
        %3813 = vmatpush1.msra.mxu0 0.0
        %3814 = vmatprep.subr.mxu0 0.0
        %3815 = vmatpush1.msra.mxu0 0.0
        %3816 = vmatprep.subr.mxu0 0.0
        %3817 = vmatpush1.msra.mxu0 0.0
        %3818 = vmatprep.subr.mxu0 0.0
        %3819 = vmatpush1.msra.mxu0 0.0
        %3820 = vmatprep.subr.mxu0 0.0
        %3821 = vmatpush1.msra.mxu0 0.0
        %3822 = vmatprep.subr.mxu0 0.0
        %3823 = vmatpush1.msra.mxu0 0.0
        %3824 = vmatprep.subr.mxu0 0.0
        %3825 = vmatpush1.msra.mxu0 0.0
        %3826 = vmatprep.subr.mxu0 0.0
        %3827 = vmatpush1.msra.mxu0 0.0
        %3828 = vmatprep.subr.mxu0 0.0
        %3829 = vmatpush1.msra.mxu0 0.0
        %3830 = vmatprep.subr.mxu0 0.0
        %3831 = vmatpush1.msra.mxu0 %v3798
        %3832 = vmatprep.subr.mxu0 0.0
        %3833 = vmatpush2.msra.mxu0 0.0
        %3834 = vmatprep.subr.mxu0 0.0
        %3835 = vmatpush2.msra.mxu0 0.0
        %3836 = vmatprep.subr.mxu0 0.0
        %3837 = vmatpush2.msra.mxu0 0.0
        %3838 = vmatprep.subr.mxu0 0.0
        %3839 = vmatpush2.msra.mxu0 0.0
        %3840 = vmatprep.subr.mxu0 0.0
        %3841 = vmatpush2.msra.mxu0 0.0
        %3842 = vmatprep.subr.mxu0 0.0
        %3843 = vmatpush2.msra.mxu0 0.0
        %3844 = vmatprep.subr.mxu0 0.0
        %3845 = vmatpush2.msra.mxu0 0.0
        %3846 = vmatprep.subr.mxu0 0.0
        %3847 = vmatpush2.msra.mxu0 0.0
        %3848 = vmatprep.subr.mxu0 0.0
        %3849 = vmatpush2.msra.mxu0 0.0
        %3850 = vmatprep.subr.mxu0 0.0
        %3851 = vmatpush2.msra.mxu0 0.0
        %3852 = vmatprep.subr.mxu0 0.0
        %3853 = vmatpush2.msra.mxu0 0.0
        %3854 = vmatprep.subr.mxu0 0.0
        %3855 = vmatpush2.msra.mxu0 0.0
        %3856 = vmatprep.subr.mxu0 0.0
        %3857 = vmatpush2.msra.mxu0 0.0
        %3858 = vmatprep.subr.mxu0 0.0
        %3859 = vmatpush2.msra.mxu0 0.0
        %3860 = vmatprep.subr.mxu0 0.0
        %3861 = vmatpush2.msra.mxu0 0.0
        %3862 = vmatprep.subr.mxu0 0.0
        %3863 = vmatpush2.msra.mxu0 0.0
        %3864 = vmatprep.mubr.f32.mxu0 0.0
        %3865 = vmatmul.mubr.f32.gmra.mxu0 %v3702
        %v3866 = vpop.f32.mrf.mxu0
        %v3867 = vadd.f32 0.0, %v3866
        %v3868 = vpop.f32.mrf.mxu0
        %3869 = vmatprep.mubr.f32.mxu0 0.0
        %3870 = vmatmul.mubr.f32.gmra.mxu0 %v3705
        %v3871 = vpop.f32.mrf.mxu0
        %v3872 = vadd.f32 0.0, %v3871
        %v3873 = vpop.f32.mrf.mxu0
        %3874 = vmatprep.mubr.f32.mxu0 0.0
        %3875 = vmatmul.mubr.f32.gmra.mxu0 %v3708
        %v3876 = vpop.f32.mrf.mxu0
        %v3877 = vadd.f32 0.0, %v3876
        %v3878 = vpop.f32.mrf.mxu0
        %3879 = vmatprep.mubr.f32.mxu0 0.0
        %3880 = vmatmul.mubr.f32.gmra.mxu0 %v3711
        %v3881 = vpop.f32.mrf.mxu0
        %v3882 = vadd.f32 0.0, %v3881
        %v3883 = vpop.f32.mrf.mxu0
        %3884 = vmatprep.mubr.f32.mxu0 0.0
        %3885 = vmatmul.mubr.f32.gmra.mxu0 %v3714
        %v3886 = vpop.f32.mrf.mxu0
        %v3887 = vadd.f32 0.0, %v3886
        %v3888 = vpop.f32.mrf.mxu0
        %3889 = vmatprep.mubr.f32.mxu0 0.0
        %3890 = vmatmul.mubr.f32.gmra.mxu0 %v3717
        %v3891 = vpop.f32.mrf.mxu0
        %v3892 = vadd.f32 0.0, %v3891
        %v3893 = vpop.f32.mrf.mxu0
        %3894 = vmatprep.mubr.f32.mxu0 0.0
        %3895 = vmatmul.mubr.f32.gmra.mxu0 %v3720
        %v3896 = vpop.f32.mrf.mxu0
        %v3897 = vadd.f32 0.0, %v3896
        %v3898 = vpop.f32.mrf.mxu0
        %3899 = vmatprep.mubr.f32.mxu0 0.0
        %3900 = vmatmul.mubr.f32.gmra.mxu0 %v3723
        %v3901 = vpop.f32.mrf.mxu0
        %v3902 = vadd.f32 0.0, %v3901
        %v3903 = vpop.f32.mrf.mxu0
        %3904 = vmatprep.mubr.f32.mxu0 0.0
        %3905 = vmatmul.mubr.f32.gmra.mxu0 %v3726
        %v3906 = vpop.f32.mrf.mxu0
        %v3907 = vadd.f32 0.0, %v3906
        %v3908 = vpop.f32.mrf.mxu0
        %3909 = vmatprep.mubr.f32.mxu0 0.0
        %3910 = vmatmul.mubr.f32.gmra.mxu0 %v3729
        %v3911 = vpop.f32.mrf.mxu0
        %v3912 = vadd.f32 0.0, %v3911
        %v3913 = vpop.f32.mrf.mxu0
        %3914 = vmatprep.mubr.f32.mxu0 0.0
        %3915 = vmatmul.mubr.f32.gmra.mxu0 %v3732
        %v3916 = vpop.f32.mrf.mxu0
        %v3917 = vadd.f32 0.0, %v3916
        %v3918 = vpop.f32.mrf.mxu0
        %3919 = vmatprep.mubr.f32.mxu0 0.0
        %3920 = vmatmul.mubr.f32.gmra.mxu0 %v3735
        %v3921 = vpop.f32.mrf.mxu0
        %v3922 = vadd.f32 0.0, %v3921
        %v3923 = vpop.f32.mrf.mxu0
        %3924 = vmatprep.mubr.f32.mxu0 0.0
        %3925 = vmatmul.mubr.f32.gmra.mxu0 %v3738
        %v3926 = vpop.f32.mrf.mxu0
        %v3927 = vadd.f32 0.0, %v3926
        %v3928 = vpop.f32.mrf.mxu0
        %3929 = vmatprep.mubr.f32.mxu0 0.0
        %3930 = vmatmul.mubr.f32.gmra.mxu0 %v3741
        %v3931 = vpop.f32.mrf.mxu0
        %v3932 = vadd.f32 0.0, %v3931
        %v3933 = vpop.f32.mrf.mxu0
        %3934 = vmatprep.mubr.f32.mxu0 0.0
        %3935 = vmatmul.mubr.f32.gmra.mxu0 %v3744
        %v3936 = vpop.f32.mrf.mxu0
        %v3937 = vadd.f32 0.0, %v3936
        %v3938 = vpop.f32.mrf.mxu0
        %3939 = vmatprep.mubr.f32.mxu0 0.0
        %3940 = vmatmul.mubr.f32.gmra.mxu0 %v3747
        %v3941 = vpop.f32.mrf.mxu0
        %v3942 = vadd.f32 0.0, %v3941
        %v3943 = vpop.f32.mrf.mxu0
        %3944 = vmatprep.mubr.f32.mxu0 0.0
        %3945 = vmatmul.mubr.f32.gmra.mxu0 %v3750
        %v3946 = vpop.f32.mrf.mxu0
        %v3947 = vadd.f32 0.0, %v3946
        %v3948 = vpop.f32.mrf.mxu0
        %3949 = vmatprep.mubr.f32.mxu0 0.0
        %3950 = vmatmul.mubr.f32.gmra.mxu0 %v3753
        %v3951 = vpop.f32.mrf.mxu0
        %v3952 = vadd.f32 0.0, %v3951
        %v3953 = vpop.f32.mrf.mxu0
        %3954 = vmatprep.mubr.f32.mxu0 0.0
        %3955 = vmatmul.mubr.f32.gmra.mxu0 %v3756
        %v3956 = vpop.f32.mrf.mxu0
        %v3957 = vadd.f32 0.0, %v3956
        %v3958 = vpop.f32.mrf.mxu0
        %3959 = vmatprep.mubr.f32.mxu0 0.0
        %3960 = vmatmul.mubr.f32.gmra.mxu0 %v3759
        %v3961 = vpop.f32.mrf.mxu0
        %v3962 = vadd.f32 0.0, %v3961
        %v3963 = vpop.f32.mrf.mxu0
        %3964 = vmatprep.mubr.f32.mxu0 0.0
        %3965 = vmatmul.mubr.f32.gmra.mxu0 %v3762
        %v3966 = vpop.f32.mrf.mxu0
        %v3967 = vadd.f32 0.0, %v3966
        %v3968 = vpop.f32.mrf.mxu0
        %3969 = vmatprep.mubr.f32.mxu0 0.0
        %3970 = vmatmul.mubr.f32.gmra.mxu0 %v3765
        %v3971 = vpop.f32.mrf.mxu0
        %v3972 = vadd.f32 0.0, %v3971
        %v3973 = vpop.f32.mrf.mxu0
        %3974 = vmatprep.mubr.f32.mxu0 0.0
        %3975 = vmatmul.mubr.f32.gmra.mxu0 %v3768
        %v3976 = vpop.f32.mrf.mxu0
        %v3977 = vadd.f32 0.0, %v3976
        %v3978 = vpop.f32.mrf.mxu0
        %3979 = vmatprep.mubr.f32.mxu0 0.0
        %3980 = vmatmul.mubr.f32.gmra.mxu0 %v3771
        %v3981 = vpop.f32.mrf.mxu0
        %v3982 = vadd.f32 0.0, %v3981
        %v3983 = vpop.f32.mrf.mxu0
        %3984 = vmatprep.mubr.f32.mxu0 0.0
        %3985 = vmatmul.mubr.f32.gmra.mxu0 %v3774
        %v3986 = vpop.f32.mrf.mxu0
        %v3987 = vadd.f32 0.0, %v3986
        %v3988 = vpop.f32.mrf.mxu0
        %3989 = vmatprep.mubr.f32.mxu0 0.0
        %3990 = vmatmul.mubr.f32.gmra.mxu0 %v3777
        %v3991 = vpop.f32.mrf.mxu0
        %v3992 = vadd.f32 0.0, %v3991
        %v3993 = vpop.f32.mrf.mxu0
        %3994 = vmatprep.mubr.f32.mxu0 0.0
        %3995 = vmatmul.mubr.f32.gmra.mxu0 %v3780
        %v3996 = vpop.f32.mrf.mxu0
        %v3997 = vadd.f32 0.0, %v3996
        %v3998 = vpop.f32.mrf.mxu0
        %3999 = vmatprep.mubr.f32.mxu0 0.0
        %4000 = vmatmul.mubr.f32.gmra.mxu0 %v3783
        %v4001 = vpop.f32.mrf.mxu0
        %v4002 = vadd.f32 0.0, %v4001
        %v4003 = vpop.f32.mrf.mxu0
        %4004 = vmatprep.mubr.f32.mxu0 0.0
        %4005 = vmatmul.mubr.f32.gmra.mxu0 %v3786
        %v4006 = vpop.f32.mrf.mxu0
        %v4007 = vadd.f32 0.0, %v4006
        %v4008 = vpop.f32.mrf.mxu0
        %4009 = vmatprep.mubr.f32.mxu0 0.0
        %4010 = vmatmul.mubr.f32.gmra.mxu0 %v3789
        %v4011 = vpop.f32.mrf.mxu0
        %v4012 = vadd.f32 0.0, %v4011
        %v4013 = vpop.f32.mrf.mxu0
        %4014 = vmatprep.mubr.f32.mxu0 0.0
        %4015 = vmatmul.mubr.f32.gmra.mxu0 %v3792
        %v4016 = vpop.f32.mrf.mxu0
        %v4017 = vadd.f32 0.0, %v4016
        %v4018 = vpop.f32.mrf.mxu0
        %4019 = vmatprep.mubr.f32.mxu0 0.0
        %4020 = vmatmul.mubr.f32.gmra.mxu0 %v3795
        %v4021 = vpop.f32.mrf.mxu0
        %v4022 = vadd.f32 0.0, %v4021
        %v4023 = vpop.f32.mrf.mxu0
        %4024 = vdwg.mxu0
        %v4025 = vadd.f32 %v3635, %v3867
        %v4026 = vadd.f32 %v3636, %v3872
        %v4027 = vadd.f32 %v3637, %v3877
        %v4028 = vadd.f32 %v3638, %v3882
        %v4029 = vadd.f32 %v3639, %v3887
        %v4030 = vadd.f32 %v3640, %v3892
        %v4031 = vadd.f32 %v3641, %v3897
        %v4032 = vadd.f32 %v3642, %v3902
        %v4033 = vadd.f32 %v3643, %v3907
        %v4034 = vadd.f32 %v3644, %v3912
        %v4035 = vadd.f32 %v3645, %v3917
        %v4036 = vadd.f32 %v3646, %v3922
        %v4037 = vadd.f32 %v3647, %v3927
        %v4038 = vadd.f32 %v3648, %v3932
        %v4039 = vadd.f32 %v3649, %v3937
        %v4040 = vadd.f32 %v3650, %v3942
        %v4041 = vadd.f32 %v3651, %v3947
        %v4042 = vadd.f32 %v3652, %v3952
        %v4043 = vadd.f32 %v3653, %v3957
        %v4044 = vadd.f32 %v3654, %v3962
        %v4045 = vadd.f32 %v3655, %v3967
        %v4046 = vadd.f32 %v3656, %v3972
        %v4047 = vadd.f32 %v3657, %v3977
        %v4048 = vadd.f32 %v3658, %v3982
        %v4049 = vadd.f32 %v3659, %v3987
        %v4050 = vadd.f32 %v3660, %v3992
        %v4051 = vadd.f32 %v3661, %v3997
        %v4052 = vadd.f32 %v3662, %v4002
        %v4053 = vadd.f32 %v3663, %v4007
        %v4054 = vadd.f32 %v3664, %v4012
        %v4055 = vadd.f32 %v3665, %v4017
        %v4056 = vadd.f32 %v3666, %v4022
        %v4057 = vld [vmem:[%s3276 + $0x2] sm:$0xff]
        %v4058 = vld [vmem:[%s3276 + $0xa] sm:$0xff]
        %v4059 = vld [vmem:[%s3276 + $0x1a] sm:$0xff]
        %v4060 = vld [vmem:[%s3276 + $0x22] sm:$0xff]
        %v4061 = vld [vmem:[%s3276 + $0x32] sm:$0xff]
        %v4062 = vld [vmem:[%s3276 + $0x3a] sm:$0xff]
        %v4063 = vld [vmem:[%s3276 + $0x4a] sm:$0xff]
        %v4064 = vld [vmem:[%s3276 + $0x52] sm:$0xff]
        %v4065 = vld [vmem:[%s3276 + $0x62] sm:$0xff]
        %v4066 = vld [vmem:[%s3276 + $0x6a] sm:$0xff]
        %v4067 = vld [vmem:[%s3276 + $0x7a] sm:$0xff]
        %v4068 = vld [vmem:[%s3276 + $0x82] sm:$0xff]
        %v4069 = vld [vmem:[%s3276 + $0x92] sm:$0xff]
        %v4070 = vld [vmem:[%s3276 + $0x9a] sm:$0xff]
        %v4071 = vld [vmem:[%s3276 + $0xaa] sm:$0xff]
        %v4072 = vld [vmem:[%s3276 + $0xb2] sm:$0xff]
        %v4073 = vld [vmem:[%s3276 + $0xc2] sm:$0xff]
        %v4074 = vld [vmem:[%s3276 + $0xca] sm:$0xff]
        %v4075 = vld [vmem:[%s3276 + $0xda] sm:$0xff]
        %v4076 = vld [vmem:[%s3276 + $0xe2] sm:$0xff]
        %v4077 = vld [vmem:[%s3276 + $0xf2] sm:$0xff]
        %v4078 = vld [vmem:[%s3276 + $0xfa] sm:$0xff]
        %v4079 = vld [vmem:[%s3276 + $0x10a] sm:$0xff]
        %v4080 = vld [vmem:[%s3276 + $0x112] sm:$0xff]
        %v4081 = vld [vmem:[%s3276 + $0x122] sm:$0xff]
        %v4082 = vld [vmem:[%s3276 + $0x12a] sm:$0xff]
        %v4083 = vld [vmem:[%s3276 + $0x13a] sm:$0xff]
        %v4084 = vld [vmem:[%s3276 + $0x142] sm:$0xff]
        %v4085 = vld [vmem:[%s3276 + $0x152] sm:$0xff]
        %v4086 = vld [vmem:[%s3276 + $0x15a] sm:$0xff]
        %v4087 = vld [vmem:[%s3276 + $0x16a] sm:$0xff]
        %v4088 = vld [vmem:[%s3276 + $0x172] sm:$0xff]
        %s4089 = scalar_lea.vmem %s2, 32
        %v4090 = vld [vmem:[%s4089] sm:$0xf]
        %v4092 = vsel %vm748, %v4057, 0
        %v4095 = vsel %vm748, %v4058, 0
        %v4098 = vsel %vm748, %v4059, 0
        %v4101 = vsel %vm748, %v4060, 0
        %v4104 = vsel %vm748, %v4061, 0
        %v4107 = vsel %vm748, %v4062, 0
        %v4110 = vsel %vm748, %v4063, 0
        %v4113 = vsel %vm748, %v4064, 0
        %v4116 = vsel %vm748, %v4065, 0
        %v4119 = vsel %vm748, %v4066, 0
        %v4122 = vsel %vm748, %v4067, 0
        %v4125 = vsel %vm748, %v4068, 0
        %v4128 = vsel %vm748, %v4069, 0
        %v4131 = vsel %vm748, %v4070, 0
        %v4134 = vsel %vm748, %v4071, 0
        %v4137 = vsel %vm748, %v4072, 0
        %v4140 = vsel %vm748, %v4073, 0
        %v4143 = vsel %vm748, %v4074, 0
        %v4146 = vsel %vm748, %v4075, 0
        %v4149 = vsel %vm748, %v4076, 0
        %v4152 = vsel %vm748, %v4077, 0
        %v4155 = vsel %vm748, %v4078, 0
        %v4158 = vsel %vm748, %v4079, 0
        %v4161 = vsel %vm748, %v4080, 0
        %v4164 = vsel %vm748, %v4081, 0
        %v4167 = vsel %vm748, %v4082, 0
        %v4170 = vsel %vm748, %v4083, 0
        %v4173 = vsel %vm748, %v4084, 0
        %v4176 = vsel %vm748, %v4085, 0
        %v4179 = vsel %vm748, %v4086, 0
        %v4182 = vsel %vm748, %v4087, 0
        %v4185 = vsel %vm748, %v4088, 0
        %v4188 = vsel %vm1163, %v4090, 0
        %4190 = vmatprep.subr.mxu0 0.0
        %4191 = vmatpush1.msra.mxu0 0.0
        %4192 = vmatprep.subr.mxu0 0.0
        %4193 = vmatpush1.msra.mxu0 0.0
        %4194 = vmatprep.subr.mxu0 0.0
        %4195 = vmatpush1.msra.mxu0 0.0
        %4196 = vmatprep.subr.mxu0 0.0
        %4197 = vmatpush1.msra.mxu0 0.0
        %4198 = vmatprep.subr.mxu0 0.0
        %4199 = vmatpush1.msra.mxu0 0.0
        %4200 = vmatprep.subr.mxu0 0.0
        %4201 = vmatpush1.msra.mxu0 0.0
        %4202 = vmatprep.subr.mxu0 0.0
        %4203 = vmatpush1.msra.mxu0 0.0
        %4204 = vmatprep.subr.mxu0 0.0
        %4205 = vmatpush1.msra.mxu0 0.0
        %4206 = vmatprep.subr.mxu0 0.0
        %4207 = vmatpush1.msra.mxu0 0.0
        %4208 = vmatprep.subr.mxu0 0.0
        %4209 = vmatpush1.msra.mxu0 0.0
        %4210 = vmatprep.subr.mxu0 0.0
        %4211 = vmatpush1.msra.mxu0 0.0
        %4212 = vmatprep.subr.mxu0 0.0
        %4213 = vmatpush1.msra.mxu0 0.0
        %4214 = vmatprep.subr.mxu0 0.0
        %4215 = vmatpush1.msra.mxu0 0.0
        %4216 = vmatprep.subr.mxu0 0.0
        %4217 = vmatpush1.msra.mxu0 0.0
        %4218 = vmatprep.subr.mxu0 0.0
        %4219 = vmatpush1.msra.mxu0 0.0
        %4220 = vmatprep.subr.mxu0 0.0
        %4221 = vmatpush1.msra.mxu0 %v4188
        %4222 = vmatprep.subr.mxu0 0.0
        %4223 = vmatpush2.msra.mxu0 0.0
        %4224 = vmatprep.subr.mxu0 0.0
        %4225 = vmatpush2.msra.mxu0 0.0
        %4226 = vmatprep.subr.mxu0 0.0
        %4227 = vmatpush2.msra.mxu0 0.0
        %4228 = vmatprep.subr.mxu0 0.0
        %4229 = vmatpush2.msra.mxu0 0.0
        %4230 = vmatprep.subr.mxu0 0.0
        %4231 = vmatpush2.msra.mxu0 0.0
        %4232 = vmatprep.subr.mxu0 0.0
        %4233 = vmatpush2.msra.mxu0 0.0
        %4234 = vmatprep.subr.mxu0 0.0
        %4235 = vmatpush2.msra.mxu0 0.0
        %4236 = vmatprep.subr.mxu0 0.0
        %4237 = vmatpush2.msra.mxu0 0.0
        %4238 = vmatprep.subr.mxu0 0.0
        %4239 = vmatpush2.msra.mxu0 0.0
        %4240 = vmatprep.subr.mxu0 0.0
        %4241 = vmatpush2.msra.mxu0 0.0
        %4242 = vmatprep.subr.mxu0 0.0
        %4243 = vmatpush2.msra.mxu0 0.0
        %4244 = vmatprep.subr.mxu0 0.0
        %4245 = vmatpush2.msra.mxu0 0.0
        %4246 = vmatprep.subr.mxu0 0.0
        %4247 = vmatpush2.msra.mxu0 0.0
        %4248 = vmatprep.subr.mxu0 0.0
        %4249 = vmatpush2.msra.mxu0 0.0
        %4250 = vmatprep.subr.mxu0 0.0
        %4251 = vmatpush2.msra.mxu0 0.0
        %4252 = vmatprep.subr.mxu0 0.0
        %4253 = vmatpush2.msra.mxu0 0.0
        %4254 = vmatprep.mubr.f32.mxu0 0.0
        %4255 = vmatmul.mubr.f32.gmra.mxu0 %v4092
        %v4256 = vpop.f32.mrf.mxu0
        %v4257 = vadd.f32 0.0, %v4256
        %v4258 = vpop.f32.mrf.mxu0
        %4259 = vmatprep.mubr.f32.mxu0 0.0
        %4260 = vmatmul.mubr.f32.gmra.mxu0 %v4095
        %v4261 = vpop.f32.mrf.mxu0
        %v4262 = vadd.f32 0.0, %v4261
        %v4263 = vpop.f32.mrf.mxu0
        %4264 = vmatprep.mubr.f32.mxu0 0.0
        %4265 = vmatmul.mubr.f32.gmra.mxu0 %v4098
        %v4266 = vpop.f32.mrf.mxu0
        %v4267 = vadd.f32 0.0, %v4266
        %v4268 = vpop.f32.mrf.mxu0
        %4269 = vmatprep.mubr.f32.mxu0 0.0
        %4270 = vmatmul.mubr.f32.gmra.mxu0 %v4101
        %v4271 = vpop.f32.mrf.mxu0
        %v4272 = vadd.f32 0.0, %v4271
        %v4273 = vpop.f32.mrf.mxu0
        %4274 = vmatprep.mubr.f32.mxu0 0.0
        %4275 = vmatmul.mubr.f32.gmra.mxu0 %v4104
        %v4276 = vpop.f32.mrf.mxu0
        %v4277 = vadd.f32 0.0, %v4276
        %v4278 = vpop.f32.mrf.mxu0
        %4279 = vmatprep.mubr.f32.mxu0 0.0
        %4280 = vmatmul.mubr.f32.gmra.mxu0 %v4107
        %v4281 = vpop.f32.mrf.mxu0
        %v4282 = vadd.f32 0.0, %v4281
        %v4283 = vpop.f32.mrf.mxu0
        %4284 = vmatprep.mubr.f32.mxu0 0.0
        %4285 = vmatmul.mubr.f32.gmra.mxu0 %v4110
        %v4286 = vpop.f32.mrf.mxu0
        %v4287 = vadd.f32 0.0, %v4286
        %v4288 = vpop.f32.mrf.mxu0
        %4289 = vmatprep.mubr.f32.mxu0 0.0
        %4290 = vmatmul.mubr.f32.gmra.mxu0 %v4113
        %v4291 = vpop.f32.mrf.mxu0
        %v4292 = vadd.f32 0.0, %v4291
        %v4293 = vpop.f32.mrf.mxu0
        %4294 = vmatprep.mubr.f32.mxu0 0.0
        %4295 = vmatmul.mubr.f32.gmra.mxu0 %v4116
        %v4296 = vpop.f32.mrf.mxu0
        %v4297 = vadd.f32 0.0, %v4296
        %v4298 = vpop.f32.mrf.mxu0
        %4299 = vmatprep.mubr.f32.mxu0 0.0
        %4300 = vmatmul.mubr.f32.gmra.mxu0 %v4119
        %v4301 = vpop.f32.mrf.mxu0
        %v4302 = vadd.f32 0.0, %v4301
        %v4303 = vpop.f32.mrf.mxu0
        %4304 = vmatprep.mubr.f32.mxu0 0.0
        %4305 = vmatmul.mubr.f32.gmra.mxu0 %v4122
        %v4306 = vpop.f32.mrf.mxu0
        %v4307 = vadd.f32 0.0, %v4306
        %v4308 = vpop.f32.mrf.mxu0
        %4309 = vmatprep.mubr.f32.mxu0 0.0
        %4310 = vmatmul.mubr.f32.gmra.mxu0 %v4125
        %v4311 = vpop.f32.mrf.mxu0
        %v4312 = vadd.f32 0.0, %v4311
        %v4313 = vpop.f32.mrf.mxu0
        %4314 = vmatprep.mubr.f32.mxu0 0.0
        %4315 = vmatmul.mubr.f32.gmra.mxu0 %v4128
        %v4316 = vpop.f32.mrf.mxu0
        %v4317 = vadd.f32 0.0, %v4316
        %v4318 = vpop.f32.mrf.mxu0
        %4319 = vmatprep.mubr.f32.mxu0 0.0
        %4320 = vmatmul.mubr.f32.gmra.mxu0 %v4131
        %v4321 = vpop.f32.mrf.mxu0
        %v4322 = vadd.f32 0.0, %v4321
        %v4323 = vpop.f32.mrf.mxu0
        %4324 = vmatprep.mubr.f32.mxu0 0.0
        %4325 = vmatmul.mubr.f32.gmra.mxu0 %v4134
        %v4326 = vpop.f32.mrf.mxu0
        %v4327 = vadd.f32 0.0, %v4326
        %v4328 = vpop.f32.mrf.mxu0
        %4329 = vmatprep.mubr.f32.mxu0 0.0
        %4330 = vmatmul.mubr.f32.gmra.mxu0 %v4137
        %v4331 = vpop.f32.mrf.mxu0
        %v4332 = vadd.f32 0.0, %v4331
        %v4333 = vpop.f32.mrf.mxu0
        %4334 = vmatprep.mubr.f32.mxu0 0.0
        %4335 = vmatmul.mubr.f32.gmra.mxu0 %v4140
        %v4336 = vpop.f32.mrf.mxu0
        %v4337 = vadd.f32 0.0, %v4336
        %v4338 = vpop.f32.mrf.mxu0
        %4339 = vmatprep.mubr.f32.mxu0 0.0
        %4340 = vmatmul.mubr.f32.gmra.mxu0 %v4143
        %v4341 = vpop.f32.mrf.mxu0
        %v4342 = vadd.f32 0.0, %v4341
        %v4343 = vpop.f32.mrf.mxu0
        %4344 = vmatprep.mubr.f32.mxu0 0.0
        %4345 = vmatmul.mubr.f32.gmra.mxu0 %v4146
        %v4346 = vpop.f32.mrf.mxu0
        %v4347 = vadd.f32 0.0, %v4346
        %v4348 = vpop.f32.mrf.mxu0
        %4349 = vmatprep.mubr.f32.mxu0 0.0
        %4350 = vmatmul.mubr.f32.gmra.mxu0 %v4149
        %v4351 = vpop.f32.mrf.mxu0
        %v4352 = vadd.f32 0.0, %v4351
        %v4353 = vpop.f32.mrf.mxu0
        %4354 = vmatprep.mubr.f32.mxu0 0.0
        %4355 = vmatmul.mubr.f32.gmra.mxu0 %v4152
        %v4356 = vpop.f32.mrf.mxu0
        %v4357 = vadd.f32 0.0, %v4356
        %v4358 = vpop.f32.mrf.mxu0
        %4359 = vmatprep.mubr.f32.mxu0 0.0
        %4360 = vmatmul.mubr.f32.gmra.mxu0 %v4155
        %v4361 = vpop.f32.mrf.mxu0
        %v4362 = vadd.f32 0.0, %v4361
        %v4363 = vpop.f32.mrf.mxu0
        %4364 = vmatprep.mubr.f32.mxu0 0.0
        %4365 = vmatmul.mubr.f32.gmra.mxu0 %v4158
        %v4366 = vpop.f32.mrf.mxu0
        %v4367 = vadd.f32 0.0, %v4366
        %v4368 = vpop.f32.mrf.mxu0
        %4369 = vmatprep.mubr.f32.mxu0 0.0
        %4370 = vmatmul.mubr.f32.gmra.mxu0 %v4161
        %v4371 = vpop.f32.mrf.mxu0
        %v4372 = vadd.f32 0.0, %v4371
        %v4373 = vpop.f32.mrf.mxu0
        %4374 = vmatprep.mubr.f32.mxu0 0.0
        %4375 = vmatmul.mubr.f32.gmra.mxu0 %v4164
        %v4376 = vpop.f32.mrf.mxu0
        %v4377 = vadd.f32 0.0, %v4376
        %v4378 = vpop.f32.mrf.mxu0
        %4379 = vmatprep.mubr.f32.mxu0 0.0
        %4380 = vmatmul.mubr.f32.gmra.mxu0 %v4167
        %v4381 = vpop.f32.mrf.mxu0
        %v4382 = vadd.f32 0.0, %v4381
        %v4383 = vpop.f32.mrf.mxu0
        %4384 = vmatprep.mubr.f32.mxu0 0.0
        %4385 = vmatmul.mubr.f32.gmra.mxu0 %v4170
        %v4386 = vpop.f32.mrf.mxu0
        %v4387 = vadd.f32 0.0, %v4386
        %v4388 = vpop.f32.mrf.mxu0
        %4389 = vmatprep.mubr.f32.mxu0 0.0
        %4390 = vmatmul.mubr.f32.gmra.mxu0 %v4173
        %v4391 = vpop.f32.mrf.mxu0
        %v4392 = vadd.f32 0.0, %v4391
        %v4393 = vpop.f32.mrf.mxu0
        %4394 = vmatprep.mubr.f32.mxu0 0.0
        %4395 = vmatmul.mubr.f32.gmra.mxu0 %v4176
        %v4396 = vpop.f32.mrf.mxu0
        %v4397 = vadd.f32 0.0, %v4396
        %v4398 = vpop.f32.mrf.mxu0
        %4399 = vmatprep.mubr.f32.mxu0 0.0
        %4400 = vmatmul.mubr.f32.gmra.mxu0 %v4179
        %v4401 = vpop.f32.mrf.mxu0
        %v4402 = vadd.f32 0.0, %v4401
        %v4403 = vpop.f32.mrf.mxu0
        %4404 = vmatprep.mubr.f32.mxu0 0.0
        %4405 = vmatmul.mubr.f32.gmra.mxu0 %v4182
        %v4406 = vpop.f32.mrf.mxu0
        %v4407 = vadd.f32 0.0, %v4406
        %v4408 = vpop.f32.mrf.mxu0
        %4409 = vmatprep.mubr.f32.mxu0 0.0
        %4410 = vmatmul.mubr.f32.gmra.mxu0 %v4185
        %v4411 = vpop.f32.mrf.mxu0
        %v4412 = vadd.f32 0.0, %v4411
        %v4413 = vpop.f32.mrf.mxu0
        %4414 = vdwg.mxu0
        %v4415 = vadd.f32 %v4025, %v4257
        %v4416 = vadd.f32 %v4026, %v4262
        %v4417 = vadd.f32 %v4027, %v4267
        %v4418 = vadd.f32 %v4028, %v4272
        %v4419 = vadd.f32 %v4029, %v4277
        %v4420 = vadd.f32 %v4030, %v4282
        %v4421 = vadd.f32 %v4031, %v4287
        %v4422 = vadd.f32 %v4032, %v4292
        %v4423 = vadd.f32 %v4033, %v4297
        %v4424 = vadd.f32 %v4034, %v4302
        %v4425 = vadd.f32 %v4035, %v4307
        %v4426 = vadd.f32 %v4036, %v4312
        %v4427 = vadd.f32 %v4037, %v4317
        %v4428 = vadd.f32 %v4038, %v4322
        %v4429 = vadd.f32 %v4039, %v4327
        %v4430 = vadd.f32 %v4040, %v4332
        %v4431 = vadd.f32 %v4041, %v4337
        %v4432 = vadd.f32 %v4042, %v4342
        %v4433 = vadd.f32 %v4043, %v4347
        %v4434 = vadd.f32 %v4044, %v4352
        %v4435 = vadd.f32 %v4045, %v4357
        %v4436 = vadd.f32 %v4046, %v4362
        %v4437 = vadd.f32 %v4047, %v4367
        %v4438 = vadd.f32 %v4048, %v4372
        %v4439 = vadd.f32 %v4049, %v4377
        %v4440 = vadd.f32 %v4050, %v4382
        %v4441 = vadd.f32 %v4051, %v4387
        %v4442 = vadd.f32 %v4052, %v4392
        %v4443 = vadd.f32 %v4053, %v4397
        %v4444 = vadd.f32 %v4054, %v4402
        %v4445 = vadd.f32 %v4055, %v4407
        %v4446 = vadd.f32 %v4056, %v4412
        %v4447 = vld [vmem:[%s5] sm:$0x1]
        %v4449 = vlaneseq
        %v4450 = vshrl.u32 %v4449, 7
        %v4451 = vsub.s32 0, %v4450
        %v4452 = vrot.slane %v4447, %v4451
        %v4454 = vadd.f32 %v4415, %v4452
        %v4455 = vadd.f32 %v4416, %v4452
        %v4456 = vadd.f32 %v4417, %v4452
        %v4457 = vadd.f32 %v4418, %v4452
        %v4458 = vadd.f32 %v4419, %v4452
        %v4459 = vadd.f32 %v4420, %v4452
        %v4460 = vadd.f32 %v4421, %v4452
        %v4461 = vadd.f32 %v4422, %v4452
        %v4462 = vadd.f32 %v4423, %v4452
        %v4463 = vadd.f32 %v4424, %v4452
        %v4464 = vadd.f32 %v4425, %v4452
        %v4465 = vadd.f32 %v4426, %v4452
        %v4466 = vadd.f32 %v4427, %v4452
        %v4467 = vadd.f32 %v4428, %v4452
        %v4468 = vadd.f32 %v4429, %v4452
        %v4469 = vadd.f32 %v4430, %v4452
        %v4470 = vadd.f32 %v4431, %v4452
        %v4471 = vadd.f32 %v4432, %v4452
        %v4472 = vadd.f32 %v4433, %v4452
        %v4473 = vadd.f32 %v4434, %v4452
        %v4474 = vadd.f32 %v4435, %v4452
        %v4475 = vadd.f32 %v4436, %v4452
        %v4476 = vadd.f32 %v4437, %v4452
        %v4477 = vadd.f32 %v4438, %v4452
        %v4478 = vadd.f32 %v4439, %v4452
        %v4479 = vadd.f32 %v4440, %v4452
        %v4480 = vadd.f32 %v4441, %v4452
        %v4481 = vadd.f32 %v4442, %v4452
        %v4482 = vadd.f32 %v4443, %v4452
        %v4483 = vadd.f32 %v4444, %v4452
        %v4484 = vadd.f32 %v4445, %v4452
        %v4485 = vadd.f32 %v4446, %v4452
        %v4486 = vmax.f32 %v4454, 0.0
        %v4487 = vmax.f32 %v4455, 0.0
        %v4488 = vmax.f32 %v4456, 0.0
        %v4489 = vmax.f32 %v4457, 0.0
        %v4490 = vmax.f32 %v4458, 0.0
        %v4491 = vmax.f32 %v4459, 0.0
        %v4492 = vmax.f32 %v4460, 0.0
        %v4493 = vmax.f32 %v4461, 0.0
        %v4494 = vmax.f32 %v4462, 0.0
        %v4495 = vmax.f32 %v4463, 0.0
        %v4496 = vmax.f32 %v4464, 0.0
        %v4497 = vmax.f32 %v4465, 0.0
        %v4498 = vmax.f32 %v4466, 0.0
        %v4499 = vmax.f32 %v4467, 0.0
        %v4500 = vmax.f32 %v4468, 0.0
        %v4501 = vmax.f32 %v4469, 0.0
        %v4502 = vmax.f32 %v4470, 0.0
        %v4503 = vmax.f32 %v4471, 0.0
        %v4504 = vmax.f32 %v4472, 0.0
        %v4505 = vmax.f32 %v4473, 0.0
        %v4506 = vmax.f32 %v4474, 0.0
        %v4507 = vmax.f32 %v4475, 0.0
        %v4508 = vmax.f32 %v4476, 0.0
        %v4509 = vmax.f32 %v4477, 0.0
        %v4510 = vmax.f32 %v4478, 0.0
        %v4511 = vmax.f32 %v4479, 0.0
        %v4512 = vmax.f32 %v4480, 0.0
        %v4513 = vmax.f32 %v4481, 0.0
        %v4514 = vmax.f32 %v4482, 0.0
        %v4515 = vmax.f32 %v4483, 0.0
        %v4516 = vmax.f32 %v4484, 0.0
        %v4517 = vmax.f32 %v4485, 0.0
        %v4518 = vld [vmem:[%s3] sm:$0xf]
        %v4519 = vld [vmem:[%s6] sm:$0x1]
        %v4521 = vlaneseq
        %v4522 = vshrl.u32 %v4521, 7
        %v4523 = vsub.s32 0, %v4522
        %v4524 = vrot.slane %v4519, %v4523
        %v4527 = vsel %vm748, %v4486, 0
        %v4530 = vsel %vm748, %v4487, 0
        %v4533 = vsel %vm748, %v4488, 0
        %v4536 = vsel %vm748, %v4489, 0
        %v4539 = vsel %vm748, %v4490, 0
        %v4542 = vsel %vm748, %v4491, 0
        %v4545 = vsel %vm748, %v4492, 0
        %v4548 = vsel %vm748, %v4493, 0
        %v4551 = vsel %vm748, %v4494, 0
        %v4554 = vsel %vm748, %v4495, 0
        %v4557 = vsel %vm748, %v4496, 0
        %v4560 = vsel %vm748, %v4497, 0
        %v4563 = vsel %vm748, %v4498, 0
        %v4566 = vsel %vm748, %v4499, 0
        %v4569 = vsel %vm748, %v4500, 0
        %v4572 = vsel %vm748, %v4501, 0
        %v4575 = vsel %vm748, %v4502, 0
        %v4578 = vsel %vm748, %v4503, 0
        %v4581 = vsel %vm748, %v4504, 0
        %v4584 = vsel %vm748, %v4505, 0
        %v4587 = vsel %vm748, %v4506, 0
        %v4590 = vsel %vm748, %v4507, 0
        %v4593 = vsel %vm748, %v4508, 0
        %v4596 = vsel %vm748, %v4509, 0
        %v4599 = vsel %vm748, %v4510, 0
        %v4602 = vsel %vm748, %v4511, 0
        %v4605 = vsel %vm748, %v4512, 0
        %v4608 = vsel %vm748, %v4513, 0
        %v4611 = vsel %vm748, %v4514, 0
        %v4614 = vsel %vm748, %v4515, 0
        %v4617 = vsel %vm748, %v4516, 0
        %v4620 = vsel %vm748, %v4517, 0
        %v4623 = vsel %vm1163, %v4518, 0
        %4625 = vmatprep.subr.mxu0 0.0
        %4626 = vmatpush1.msra.mxu0 0.0
        %4627 = vmatprep.subr.mxu0 0.0
        %4628 = vmatpush1.msra.mxu0 0.0
        %4629 = vmatprep.subr.mxu0 0.0
        %4630 = vmatpush1.msra.mxu0 0.0
        %4631 = vmatprep.subr.mxu0 0.0
        %4632 = vmatpush1.msra.mxu0 0.0
        %4633 = vmatprep.subr.mxu0 0.0
        %4634 = vmatpush1.msra.mxu0 0.0
        %4635 = vmatprep.subr.mxu0 0.0
        %4636 = vmatpush1.msra.mxu0 0.0
        %4637 = vmatprep.subr.mxu0 0.0
        %4638 = vmatpush1.msra.mxu0 0.0
        %4639 = vmatprep.subr.mxu0 0.0
        %4640 = vmatpush1.msra.mxu0 0.0
        %4641 = vmatprep.subr.mxu0 0.0
        %4642 = vmatpush1.msra.mxu0 0.0
        %4643 = vmatprep.subr.mxu0 0.0
        %4644 = vmatpush1.msra.mxu0 0.0
        %4645 = vmatprep.subr.mxu0 0.0
        %4646 = vmatpush1.msra.mxu0 0.0
        %4647 = vmatprep.subr.mxu0 0.0
        %4648 = vmatpush1.msra.mxu0 0.0
        %4649 = vmatprep.subr.mxu0 0.0
        %4650 = vmatpush1.msra.mxu0 0.0
        %4651 = vmatprep.subr.mxu0 0.0
        %4652 = vmatpush1.msra.mxu0 0.0
        %4653 = vmatprep.subr.mxu0 0.0
        %4654 = vmatpush1.msra.mxu0 0.0
        %4655 = vmatprep.subr.mxu0 0.0
        %4656 = vmatpush1.msra.mxu0 %v4623
        %4657 = vmatprep.subr.mxu0 0.0
        %4658 = vmatpush2.msra.mxu0 0.0
        %4659 = vmatprep.subr.mxu0 0.0
        %4660 = vmatpush2.msra.mxu0 0.0
        %4661 = vmatprep.subr.mxu0 0.0
        %4662 = vmatpush2.msra.mxu0 0.0
        %4663 = vmatprep.subr.mxu0 0.0
        %4664 = vmatpush2.msra.mxu0 0.0
        %4665 = vmatprep.subr.mxu0 0.0
        %4666 = vmatpush2.msra.mxu0 0.0
        %4667 = vmatprep.subr.mxu0 0.0
        %4668 = vmatpush2.msra.mxu0 0.0
        %4669 = vmatprep.subr.mxu0 0.0
        %4670 = vmatpush2.msra.mxu0 0.0
        %4671 = vmatprep.subr.mxu0 0.0
        %4672 = vmatpush2.msra.mxu0 0.0
        %4673 = vmatprep.subr.mxu0 0.0
        %4674 = vmatpush2.msra.mxu0 0.0
        %4675 = vmatprep.subr.mxu0 0.0
        %4676 = vmatpush2.msra.mxu0 0.0
        %4677 = vmatprep.subr.mxu0 0.0
        %4678 = vmatpush2.msra.mxu0 0.0
        %4679 = vmatprep.subr.mxu0 0.0
        %4680 = vmatpush2.msra.mxu0 0.0
        %4681 = vmatprep.subr.mxu0 0.0
        %4682 = vmatpush2.msra.mxu0 0.0
        %4683 = vmatprep.subr.mxu0 0.0
        %4684 = vmatpush2.msra.mxu0 0.0
        %4685 = vmatprep.subr.mxu0 0.0
        %4686 = vmatpush2.msra.mxu0 0.0
        %4687 = vmatprep.subr.mxu0 0.0
        %4688 = vmatpush2.msra.mxu0 0.0
        %4689 = vmatprep.mubr.f32.mxu0 0.0
        %4690 = vmatmul.mubr.f32.gmra.mxu0 %v4527
        %v4691 = vpop.f32.mrf.mxu0
        %v4692 = vadd.f32 %v4524, %v4691
        %v4693 = vpop.f32.mrf.mxu0
        %4694 = vmatprep.mubr.f32.mxu0 0.0
        %4695 = vmatmul.mubr.f32.gmra.mxu0 %v4530
        %v4696 = vpop.f32.mrf.mxu0
        %v4697 = vadd.f32 %v4524, %v4696
        %v4698 = vpop.f32.mrf.mxu0
        %4699 = vmatprep.mubr.f32.mxu0 0.0
        %4700 = vmatmul.mubr.f32.gmra.mxu0 %v4533
        %v4701 = vpop.f32.mrf.mxu0
        %v4702 = vadd.f32 %v4524, %v4701
        %v4703 = vpop.f32.mrf.mxu0
        %4704 = vmatprep.mubr.f32.mxu0 0.0
        %4705 = vmatmul.mubr.f32.gmra.mxu0 %v4536
        %v4706 = vpop.f32.mrf.mxu0
        %v4707 = vadd.f32 %v4524, %v4706
        %v4708 = vpop.f32.mrf.mxu0
        %4709 = vmatprep.mubr.f32.mxu0 0.0
        %4710 = vmatmul.mubr.f32.gmra.mxu0 %v4539
        %v4711 = vpop.f32.mrf.mxu0
        %v4712 = vadd.f32 %v4524, %v4711
        %v4713 = vpop.f32.mrf.mxu0
        %4714 = vmatprep.mubr.f32.mxu0 0.0
        %4715 = vmatmul.mubr.f32.gmra.mxu0 %v4542
        %v4716 = vpop.f32.mrf.mxu0
        %v4717 = vadd.f32 %v4524, %v4716
        %v4718 = vpop.f32.mrf.mxu0
        %4719 = vmatprep.mubr.f32.mxu0 0.0
        %4720 = vmatmul.mubr.f32.gmra.mxu0 %v4545
        %v4721 = vpop.f32.mrf.mxu0
        %v4722 = vadd.f32 %v4524, %v4721
        %v4723 = vpop.f32.mrf.mxu0
        %4724 = vmatprep.mubr.f32.mxu0 0.0
        %4725 = vmatmul.mubr.f32.gmra.mxu0 %v4548
        %v4726 = vpop.f32.mrf.mxu0
        %v4727 = vadd.f32 %v4524, %v4726
        %v4728 = vpop.f32.mrf.mxu0
        %4729 = vmatprep.mubr.f32.mxu0 0.0
        %4730 = vmatmul.mubr.f32.gmra.mxu0 %v4551
        %v4731 = vpop.f32.mrf.mxu0
        %v4732 = vadd.f32 %v4524, %v4731
        %v4733 = vpop.f32.mrf.mxu0
        %4734 = vmatprep.mubr.f32.mxu0 0.0
        %4735 = vmatmul.mubr.f32.gmra.mxu0 %v4554
        %v4736 = vpop.f32.mrf.mxu0
        %v4737 = vadd.f32 %v4524, %v4736
        %v4738 = vpop.f32.mrf.mxu0
        %4739 = vmatprep.mubr.f32.mxu0 0.0
        %4740 = vmatmul.mubr.f32.gmra.mxu0 %v4557
        %v4741 = vpop.f32.mrf.mxu0
        %v4742 = vadd.f32 %v4524, %v4741
        %v4743 = vpop.f32.mrf.mxu0
        %4744 = vmatprep.mubr.f32.mxu0 0.0
        %4745 = vmatmul.mubr.f32.gmra.mxu0 %v4560
        %v4746 = vpop.f32.mrf.mxu0
        %v4747 = vadd.f32 %v4524, %v4746
        %v4748 = vpop.f32.mrf.mxu0
        %4749 = vmatprep.mubr.f32.mxu0 0.0
        %4750 = vmatmul.mubr.f32.gmra.mxu0 %v4563
        %v4751 = vpop.f32.mrf.mxu0
        %v4752 = vadd.f32 %v4524, %v4751
        %v4753 = vpop.f32.mrf.mxu0
        %4754 = vmatprep.mubr.f32.mxu0 0.0
        %4755 = vmatmul.mubr.f32.gmra.mxu0 %v4566
        %v4756 = vpop.f32.mrf.mxu0
        %v4757 = vadd.f32 %v4524, %v4756
        %v4758 = vpop.f32.mrf.mxu0
        %4759 = vmatprep.mubr.f32.mxu0 0.0
        %4760 = vmatmul.mubr.f32.gmra.mxu0 %v4569
        %v4761 = vpop.f32.mrf.mxu0
        %v4762 = vadd.f32 %v4524, %v4761
        %v4763 = vpop.f32.mrf.mxu0
        %4764 = vmatprep.mubr.f32.mxu0 0.0
        %4765 = vmatmul.mubr.f32.gmra.mxu0 %v4572
        %v4766 = vpop.f32.mrf.mxu0
        %v4767 = vadd.f32 %v4524, %v4766
        %v4768 = vpop.f32.mrf.mxu0
        %4769 = vmatprep.mubr.f32.mxu0 0.0
        %4770 = vmatmul.mubr.f32.gmra.mxu0 %v4575
        %v4771 = vpop.f32.mrf.mxu0
        %v4772 = vadd.f32 %v4524, %v4771
        %v4773 = vpop.f32.mrf.mxu0
        %4774 = vmatprep.mubr.f32.mxu0 0.0
        %4775 = vmatmul.mubr.f32.gmra.mxu0 %v4578
        %v4776 = vpop.f32.mrf.mxu0
        %v4777 = vadd.f32 %v4524, %v4776
        %v4778 = vpop.f32.mrf.mxu0
        %4779 = vmatprep.mubr.f32.mxu0 0.0
        %4780 = vmatmul.mubr.f32.gmra.mxu0 %v4581
        %v4781 = vpop.f32.mrf.mxu0
        %v4782 = vadd.f32 %v4524, %v4781
        %v4783 = vpop.f32.mrf.mxu0
        %4784 = vmatprep.mubr.f32.mxu0 0.0
        %4785 = vmatmul.mubr.f32.gmra.mxu0 %v4584
        %v4786 = vpop.f32.mrf.mxu0
        %v4787 = vadd.f32 %v4524, %v4786
        %v4788 = vpop.f32.mrf.mxu0
        %4789 = vmatprep.mubr.f32.mxu0 0.0
        %4790 = vmatmul.mubr.f32.gmra.mxu0 %v4587
        %v4791 = vpop.f32.mrf.mxu0
        %v4792 = vadd.f32 %v4524, %v4791
        %v4793 = vpop.f32.mrf.mxu0
        %4794 = vmatprep.mubr.f32.mxu0 0.0
        %4795 = vmatmul.mubr.f32.gmra.mxu0 %v4590
        %v4796 = vpop.f32.mrf.mxu0
        %v4797 = vadd.f32 %v4524, %v4796
        %v4798 = vpop.f32.mrf.mxu0
        %4799 = vmatprep.mubr.f32.mxu0 0.0
        %4800 = vmatmul.mubr.f32.gmra.mxu0 %v4593
        %v4801 = vpop.f32.mrf.mxu0
        %v4802 = vadd.f32 %v4524, %v4801
        %v4803 = vpop.f32.mrf.mxu0
        %4804 = vmatprep.mubr.f32.mxu0 0.0
        %4805 = vmatmul.mubr.f32.gmra.mxu0 %v4596
        %v4806 = vpop.f32.mrf.mxu0
        %v4807 = vadd.f32 %v4524, %v4806
        %v4808 = vpop.f32.mrf.mxu0
        %4809 = vmatprep.mubr.f32.mxu0 0.0
        %4810 = vmatmul.mubr.f32.gmra.mxu0 %v4599
        %v4811 = vpop.f32.mrf.mxu0
        %v4812 = vadd.f32 %v4524, %v4811
        %v4813 = vpop.f32.mrf.mxu0
        %4814 = vmatprep.mubr.f32.mxu0 0.0
        %4815 = vmatmul.mubr.f32.gmra.mxu0 %v4602
        %v4816 = vpop.f32.mrf.mxu0
        %v4817 = vadd.f32 %v4524, %v4816
        %v4818 = vpop.f32.mrf.mxu0
        %4819 = vmatprep.mubr.f32.mxu0 0.0
        %4820 = vmatmul.mubr.f32.gmra.mxu0 %v4605
        %v4821 = vpop.f32.mrf.mxu0
        %v4822 = vadd.f32 %v4524, %v4821
        %v4823 = vpop.f32.mrf.mxu0
        %4824 = vmatprep.mubr.f32.mxu0 0.0
        %4825 = vmatmul.mubr.f32.gmra.mxu0 %v4608
        %v4826 = vpop.f32.mrf.mxu0
        %v4827 = vadd.f32 %v4524, %v4826
        %v4828 = vpop.f32.mrf.mxu0
        %4829 = vmatprep.mubr.f32.mxu0 0.0
        %4830 = vmatmul.mubr.f32.gmra.mxu0 %v4611
        %v4831 = vpop.f32.mrf.mxu0
        %v4832 = vadd.f32 %v4524, %v4831
        %v4833 = vpop.f32.mrf.mxu0
        %4834 = vmatprep.mubr.f32.mxu0 0.0
        %4835 = vmatmul.mubr.f32.gmra.mxu0 %v4614
        %v4836 = vpop.f32.mrf.mxu0
        %v4837 = vadd.f32 %v4524, %v4836
        %v4838 = vpop.f32.mrf.mxu0
        %4839 = vmatprep.mubr.f32.mxu0 0.0
        %4840 = vmatmul.mubr.f32.gmra.mxu0 %v4617
        %v4841 = vpop.f32.mrf.mxu0
        %v4842 = vadd.f32 %v4524, %v4841
        %v4843 = vpop.f32.mrf.mxu0
        %4844 = vmatprep.mubr.f32.mxu0 0.0
        %4845 = vmatmul.mubr.f32.gmra.mxu0 %v4620
        %v4846 = vpop.f32.mrf.mxu0
        %v4847 = vadd.f32 %v4524, %v4846
        %v4848 = vpop.f32.mrf.mxu0
        %4849 = vdwg.mxu0
        %v4850 = vld [vmem:[%s351] sm:$0xff]
        %v4851 = vld [vmem:[%s351 + $0x8] sm:$0xff]
        %v4852 = vld [vmem:[%s351 + $0x10] sm:$0xff]
        %v4853 = vld [vmem:[%s351 + $0x18] sm:$0xff]
        %v4854 = vld [vmem:[%s351 + $0x20] sm:$0xff]
        %v4855 = vld [vmem:[%s351 + $0x28] sm:$0xff]
        %v4856 = vld [vmem:[%s351 + $0x30] sm:$0xff]
        %v4857 = vld [vmem:[%s351 + $0x38] sm:$0xff]
        %v4858 = vld [vmem:[%s351 + $0x40] sm:$0xff]
        %v4859 = vld [vmem:[%s351 + $0x48] sm:$0xff]
        %v4860 = vld [vmem:[%s351 + $0x50] sm:$0xff]
        %v4861 = vld [vmem:[%s351 + $0x58] sm:$0xff]
        %v4862 = vld [vmem:[%s351 + $0x60] sm:$0xff]
        %v4863 = vld [vmem:[%s351 + $0x68] sm:$0xff]
        %v4864 = vld [vmem:[%s351 + $0x70] sm:$0xff]
        %v4865 = vld [vmem:[%s351 + $0x78] sm:$0xff]
        %v4866 = vld [vmem:[%s351 + $0x80] sm:$0xff]
        %v4867 = vld [vmem:[%s351 + $0x88] sm:$0xff]
        %v4868 = vld [vmem:[%s351 + $0x90] sm:$0xff]
        %v4869 = vld [vmem:[%s351 + $0x98] sm:$0xff]
        %v4870 = vld [vmem:[%s351 + $0xa0] sm:$0xff]
        %v4871 = vld [vmem:[%s351 + $0xa8] sm:$0xff]
        %v4872 = vld [vmem:[%s351 + $0xb0] sm:$0xff]
        %v4873 = vld [vmem:[%s351 + $0xb8] sm:$0xff]
        %v4874 = vld [vmem:[%s351 + $0xc0] sm:$0xff]
        %v4875 = vld [vmem:[%s351 + $0xc8] sm:$0xff]
        %v4876 = vld [vmem:[%s351 + $0xd0] sm:$0xff]
        %v4877 = vld [vmem:[%s351 + $0xd8] sm:$0xff]
        %v4878 = vld [vmem:[%s351 + $0xe0] sm:$0xff]
        %v4879 = vld [vmem:[%s351 + $0xe8] sm:$0xff]
        %v4880 = vld [vmem:[%s351 + $0xf0] sm:$0xff]
        %v4881 = vld [vmem:[%s351 + $0xf8] sm:$0xff]
        %v4882 = vadd.f32 %v4692, %v4850
        %v4883 = vadd.f32 %v4697, %v4851
        %v4884 = vadd.f32 %v4702, %v4852
        %v4885 = vadd.f32 %v4707, %v4853
        %v4886 = vadd.f32 %v4712, %v4854
        %v4887 = vadd.f32 %v4717, %v4855
        %v4888 = vadd.f32 %v4722, %v4856
        %v4889 = vadd.f32 %v4727, %v4857
        %v4890 = vadd.f32 %v4732, %v4858
        %v4891 = vadd.f32 %v4737, %v4859
        %v4892 = vadd.f32 %v4742, %v4860
        %v4893 = vadd.f32 %v4747, %v4861
        %v4894 = vadd.f32 %v4752, %v4862
        %v4895 = vadd.f32 %v4757, %v4863
        %v4896 = vadd.f32 %v4762, %v4864
        %v4897 = vadd.f32 %v4767, %v4865
        %v4898 = vadd.f32 %v4772, %v4866
        %v4899 = vadd.f32 %v4777, %v4867
        %v4900 = vadd.f32 %v4782, %v4868
        %v4901 = vadd.f32 %v4787, %v4869
        %v4902 = vadd.f32 %v4792, %v4870
        %v4903 = vadd.f32 %v4797, %v4871
        %v4904 = vadd.f32 %v4802, %v4872
        %v4905 = vadd.f32 %v4807, %v4873
        %v4906 = vadd.f32 %v4812, %v4874
        %v4907 = vadd.f32 %v4817, %v4875
        %v4908 = vadd.f32 %v4822, %v4876
        %v4909 = vadd.f32 %v4827, %v4877
        %v4910 = vadd.f32 %v4832, %v4878
        %v4911 = vadd.f32 %v4837, %v4879
        %v4912 = vadd.f32 %v4842, %v4880
        %v4913 = vadd.f32 %v4847, %v4881
        %v4914 = vmax.f32 %v4882, 0.0
        %v4915 = vmax.f32 %v4883, 0.0
        %v4916 = vmax.f32 %v4884, 0.0
        %v4917 = vmax.f32 %v4885, 0.0
        %v4918 = vmax.f32 %v4886, 0.0
        %v4919 = vmax.f32 %v4887, 0.0
        %v4920 = vmax.f32 %v4888, 0.0
        %v4921 = vmax.f32 %v4889, 0.0
        %v4922 = vmax.f32 %v4890, 0.0
        %v4923 = vmax.f32 %v4891, 0.0
        %v4924 = vmax.f32 %v4892, 0.0
        %v4925 = vmax.f32 %v4893, 0.0
        %v4926 = vmax.f32 %v4894, 0.0
        %v4927 = vmax.f32 %v4895, 0.0
        %v4928 = vmax.f32 %v4896, 0.0
        %v4929 = vmax.f32 %v4897, 0.0
        %v4930 = vmax.f32 %v4898, 0.0
        %v4931 = vmax.f32 %v4899, 0.0
        %v4932 = vmax.f32 %v4900, 0.0
        %v4933 = vmax.f32 %v4901, 0.0
        %v4934 = vmax.f32 %v4902, 0.0
        %v4935 = vmax.f32 %v4903, 0.0
        %v4936 = vmax.f32 %v4904, 0.0
        %v4937 = vmax.f32 %v4905, 0.0
        %v4938 = vmax.f32 %v4906, 0.0
        %v4939 = vmax.f32 %v4907, 0.0
        %v4940 = vmax.f32 %v4908, 0.0
        %v4941 = vmax.f32 %v4909, 0.0
        %v4942 = vmax.f32 %v4910, 0.0
        %v4943 = vmax.f32 %v4911, 0.0
        %v4944 = vmax.f32 %v4912, 0.0
        %v4945 = vmax.f32 %v4913, 0.0
        %4946 = vst.msk [vmem:[%s310] sm:$0xff] %vm393, %v4914
        %4947 = vst.msk [vmem:[%s310 + $0x8] sm:$0xff] %vm393, %v4915
        %4948 = vst.msk [vmem:[%s310 + $0x10] sm:$0xff] %vm393, %v4916
        %4949 = vst.msk [vmem:[%s310 + $0x18] sm:$0xff] %vm393, %v4917
        %4950 = vst.msk [vmem:[%s310 + $0x20] sm:$0xff] %vm393, %v4918
        %4951 = vst.msk [vmem:[%s310 + $0x28] sm:$0xff] %vm393, %v4919
        %4952 = vst.msk [vmem:[%s310 + $0x30] sm:$0xff] %vm393, %v4920
        %4953 = vst.msk [vmem:[%s310 + $0x38] sm:$0xff] %vm393, %v4921
        %4954 = vst.msk [vmem:[%s310 + $0x40] sm:$0xff] %vm393, %v4922
        %4955 = vst.msk [vmem:[%s310 + $0x48] sm:$0xff] %vm393, %v4923
        %4956 = vst.msk [vmem:[%s310 + $0x50] sm:$0xff] %vm393, %v4924
        %4957 = vst.msk [vmem:[%s310 + $0x58] sm:$0xff] %vm393, %v4925
        %4958 = vst.msk [vmem:[%s310 + $0x60] sm:$0xff] %vm393, %v4926
        %4959 = vst.msk [vmem:[%s310 + $0x68] sm:$0xff] %vm393, %v4927
        %4960 = vst.msk [vmem:[%s310 + $0x70] sm:$0xff] %vm393, %v4928
        %4961 = vst.msk [vmem:[%s310 + $0x78] sm:$0xff] %vm393, %v4929
        %4962 = vst.msk [vmem:[%s310 + $0x80] sm:$0xff] %vm393, %v4930
        %4963 = vst.msk [vmem:[%s310 + $0x88] sm:$0xff] %vm393, %v4931
        %4964 = vst.msk [vmem:[%s310 + $0x90] sm:$0xff] %vm393, %v4932
        %4965 = vst.msk [vmem:[%s310 + $0x98] sm:$0xff] %vm393, %v4933
        %4966 = vst.msk [vmem:[%s310 + $0xa0] sm:$0xff] %vm393, %v4934
        %4967 = vst.msk [vmem:[%s310 + $0xa8] sm:$0xff] %vm393, %v4935
        %4968 = vst.msk [vmem:[%s310 + $0xb0] sm:$0xff] %vm393, %v4936
        %4969 = vst.msk [vmem:[%s310 + $0xb8] sm:$0xff] %vm393, %v4937
        %4970 = vst.msk [vmem:[%s310 + $0xc0] sm:$0xff] %vm393, %v4938
        %4971 = vst.msk [vmem:[%s310 + $0xc8] sm:$0xff] %vm393, %v4939
        %4972 = vst.msk [vmem:[%s310 + $0xd0] sm:$0xff] %vm393, %v4940
        %4973 = vst.msk [vmem:[%s310 + $0xd8] sm:$0xff] %vm393, %v4941
        %4974 = vst.msk [vmem:[%s310 + $0xe0] sm:$0xff] %vm393, %v4942
        %4975 = vst.msk [vmem:[%s310 + $0xe8] sm:$0xff] %vm393, %v4943
        %4976 = vst.msk [vmem:[%s310 + $0xf0] sm:$0xff] %vm393, %v4944
        %4977 = vst.msk [vmem:[%s310 + $0xf8] sm:$0xff] %vm393, %v4945
        %s4978 = sand.u32 %s198, 1
        %s4979 = scalar_lea.sflag [#allocation5], %s4978
        %s4980 = sand.u32 %s198, 1
        %s4981 = smul.addr %s4980, 256
        %s4982 = scalar_lea.vmem [#allocation6], %s4981
        // Predicated region
        $region69: #{tpu_custom_call.1} parent=47 // pred_check
          %p4983 = pneg %p208
        $region70: #{tpu_custom_call.1} parent=47 // pred_check_branch
          %4985 = sbr.rel (%p4983) target = $region72
        $region71: #{tpu_custom_call.1} parent=47 // pred_region
          %s4986 = smul.u32 16, %s29
          %s4988 = ssub.s32 4096, 4096
          %4989 = vsyncadd %s4979, %s4988
          %s4990 = smul.addr %s4986, 2
          %s4991 = smul.addr %s28, 32
          %s4992 = sadd.s32 %s4990, %s4991
          %s4993 = smul.addr %s4992, 128
          %s4994 = scalar_lea.hbm %s7, %s4993
          %s4995 = sshll.u32 %s4982, 4
          %s4996 = int_to_ptr.vmem [resolvable:$true] %s4995
          %5001 = dma.vmem_to_hbm [thread:$0]  %s4996, 4096, %s4994, %s4979, 128, 128, 8
        $region72: #{tpu_custom_call.1} parent=47 // pred_fallthru
          _
      $region48: #{tpu_custom_call.1} parent=5 // pred_fallthru
        _
      %p5002 = scmp.le.s32.totalorder 2, %s19
      // Predicated region
      $region73: #{tpu_custom_call.1} parent=5 // pred_check
        %p5003 = pneg %p5002
      $region74: #{tpu_custom_call.1} parent=5 // pred_check_branch
        %5005 = sbr.rel (%p5003) target = $region76
      $region75: #{tpu_custom_call.1} parent=5 // pred_region
        %s5006 = ssub.s32 %s19, 2
        // Predicated region
        $region77: #{tpu_custom_call.1} parent=75 // pred_check
          %p5007 = pneg %p214
        $region78: #{tpu_custom_call.1} parent=75 // pred_check_branch
          %5009 = sbr.rel (%p5007) target = $region80
        $region79: #{tpu_custom_call.1} parent=75 // pred_region
          %s5010 = sand.u32 %s199, 1
          %s5011 = scalar_lea.sflag [#allocation5], %s5010
          %s5012 = sand.u32 %s199, 1
          %s5013 = smul.addr %s5012, 256
          %s5014 = scalar_lea.vmem [#allocation6], %s5013
          %5015 = dma.done %s5011, 4096
        $region80: #{tpu_custom_call.1} parent=75 // pred_fallthru
          _
      $region76: #{tpu_custom_call.1} parent=5 // pred_fallthru
        _
    $region6: #{tpu_custom_call.1} parent=1 // loop_footer
      %s23 = sadd.s32 1, %s19
    $region7: #{tpu_custom_call.1} parent=1 // loop_footer_branch
      %18 = sbr.rel target = $region3
    $region8: #{tpu_custom_call.1} parent=1 // loop_exit
      _
    %5016 = vsyncpa [#allocation4], 1
    %s5017 = scalar_lea.sflag [#allocation4], 1
    %5018 = vsyncpa %s5017, 1
    %5019 = vsyncpa [#allocation5], 1
    %s5020 = scalar_lea.sflag [#allocation5], 1
    %5021 = vsyncpa %s5020, 1

</llo_original>
